<compile_context>
chip_gen: v6e
topology: v6e:2x2x1
jax: 0.10.0
libtpu: 0.0.40
codegen_flags: <defaults>
</compile_context>

<pallas_src>
import math

import jax
import jax.numpy as jnp
from jax import lax
from jax.experimental import pallas as pl
from jax.experimental.pallas import tpu as pltpu

SIGMA = 0.1
NUM_BINS = 256
EPS = 1e-3
NORMALIZE = True

# exp(-0.5*((v-b)/sigma)^2) == exp(-((v*KSCALE - b*KSCALE))^2)
KSCALE = 1.0 / (SIGMA * math.sqrt(2.0))

MAX_CHUNK_F32 = 2048    # samples per grid step, f32 elementwise path (v5e & older)
MAX_CHUNK_BF16 = 4096   # samples per grid step, bf16 VPU/EUP path (v6e / v7x)
BIG = 1e15              # masked-lane sentinel: exp(-(BIG*BIG)) == 0 in f32 and bf16


def _use_bf16_default():
    """bf16 VPU/EUP exists on v6e/v7x and later; keep f32 math on v2-v5."""
    try:
        kind = jax.devices()[0].device_kind.lower()
    except Exception:
        return False
    return not any(g in kind for g in ("v2", "v3", "v4", "v5"))


def _make_mi_kernel(n_samples, nc, normalize, use_bf16):
    """Kernel closure; n_samples is the TRUE sample count, nc the chunk size."""
    inv_n = 1.0 / float(n_samples)
    cdt = jnp.bfloat16 if use_bf16 else jnp.float32

    def kernel(x1_ref, x2_ref, bins_ref, out_ref,
               joint_acc, p1_acc, p2_acc, s1_acc, s2_acc):
        k = pl.program_id(1)

        @pl.when(k == 0)
        def _init():
            joint_acc[...] = jnp.zeros_like(joint_acc)
            p1_acc[...] = jnp.zeros_like(p1_acc)
            p2_acc[...] = jnp.zeros_like(p2_acc)
            s1_acc[...] = jnp.zeros_like(s1_acc)
            s2_acc[...] = jnp.zeros_like(s2_acc)

        # Ragged-tail mask on the (1, nc) sample row: lanes past the remaining
        # sample count are dead (no jnp.pad / sentinel pass in the wrapper).
        lane = lax.broadcasted_iota(jnp.int32, (1, nc), 1)
        valid = lane < (n_samples - k * nc)

        bins_sc = bins_ref[...]     # (NB, nc) f32, pre-scaled & pre-broadcast

        def kv_tile(x_ref, s_acc):
            # Fused affine scaling of the raw inputs (one pass, (1, nc) only).
            v = (x_ref[0] + 1e-4) * 255.0                        # (1, nc) f32
            # Per-batch sum of the scaled values (for the torch early-exit).
            s_acc[...] += jnp.sum(jnp.where(valid, v, 0.0), keepdims=True)
            xs = jnp.where(valid, v * KSCALE, BIG)               # (1, nc) f32
            # f32 subtraction (large operands -> cancellation-sensitive), then
            # narrow to the compute dtype for square / negate / exp.
            d = (xs - bins_sc).astype(cdt)                       # (NB, nc)
            kv = jnp.exp(-(d * d))                               # (NB, nc), EUP
            return kv.astype(jnp.bfloat16)                       # no-op if bf16

        kv1 = kv_tile(x1_ref, s1_acc)
        kv2 = kv_tile(x2_ref, s2_acc)

        nt = (((1,), (1,)), ((), ()))  # contract dim 1 of both operands (NT)

        # Marginal pdf partial sums on the (otherwise idle) MXU, f32 accumulate.
        ones_mm = jnp.ones((128, nc), jnp.bfloat16)
        p1_acc[...] += lax.dot_general(kv1, ones_mm, nt,
                                       preferred_element_type=jnp.float32)
        p2_acc[...] += lax.dot_general(kv2, ones_mm, nt,
                                       preferred_element_type=jnp.float32)

        # Joint partial: joint[i, j] += sum_n kv1[i, n] * kv2[j, n]
        # == (kernel_values1^T @ kernel_values2)[i, j] of the torch code.
        joint_acc[...] += lax.dot_general(kv1, kv2, nt,
                                          preferred_element_type=jnp.float32)

        @pl.when(k == pl.num_programs(1) - 1)
        def _finalize():
            # All 128 lanes of p*_acc hold the same value; take lane 0.
            pdf1 = p1_acc[...][:, 0:1] * inv_n                         # (NB, 1)
            pdf1 = pdf1 * pl.reciprocal(jnp.sum(pdf1, keepdims=True) + EPS)
            pdf2 = p2_acc[...][:, 0:1] * inv_n
            pdf2 = pdf2 * pl.reciprocal(jnp.sum(pdf2, keepdims=True) + EPS)

            joint = joint_acc[...]
            joint = joint * pl.reciprocal(jnp.sum(joint, keepdims=True) + EPS)

            h1 = -jnp.sum(pdf1 * jnp.log2(pdf1 + EPS))
            h2 = -jnp.sum(pdf2 * jnp.log2(pdf2 + EPS))
            h12 = -jnp.sum(joint * jnp.log2(joint + EPS))
            mi = h1 + h2 - h12
            if normalize:
                mi = (2.0 * mi + EPS) / (h1 + h2 + EPS)

            # Pack [mi, sum(x1_scaled), sum(x2_scaled)] into lanes 0..2 of the
            # output block; everything stays in the vector domain.
            ol = lax.broadcasted_iota(jnp.int32, out_ref.shape, 2)
            packed = (jnp.where(ol == 0, mi, 0.0)
                      + jnp.where(ol == 1, s1_acc[...].reshape(1, 1, 1), 0.0)
                      + jnp.where(ol == 2, s2_acc[...].reshape(1, 1, 1), 0.0))
            out_ref[...] = packed.astype(out_ref.dtype)

    return kernel


def mutual_information(input1, input2, bins, use_bf16=None):
    """input1, input2: (B, C, H, W) with C == 1. Returns (B,) float32."""
    if use_bf16 is None:
        use_bf16 = _use_bf16_default()
    B, C, H, W = input1.shape
    assert input1.shape == input2.shape
    assert C == 1, "torch broadcasting against `bins` requires C == 1"
    N = H * W

    x1 = input1.reshape(B, 1, N).astype(jnp.float32)
    x2 = input2.reshape(B, 1, N).astype(jnp.float32)

    max_chunk = MAX_CHUNK_BF16 if use_bf16 else MAX_CHUNK_F32
    if N <= max_chunk:
        nc = N           # single chunk; block == full array dim (always legal)
    else:
        nc = max_chunk   # multiple of 128; ragged tail handled by in-kernel mask
    k_chunks = (N + nc - 1) // nc

    # Pre-scaled, pre-broadcast bins: fetched once (constant index_map) and
    # resident in VMEM for the whole call, so the kernel never re-materializes
    # the (NB, 1) -> (NB, nc) lane broadcast per chunk.
    bins_sc = jnp.broadcast_to(
        (bins.astype(jnp.float32) * KSCALE).reshape(NUM_BINS, 1),
        (NUM_BINS, nc))

    kernel = _make_mi_kernel(N, nc, NORMALIZE, use_bf16)

    out = pl.pallas_call(
        kernel,
        out_shape=jax.ShapeDtypeStruct((B, 8, 128), jnp.float32),
        grid_spec=pltpu.PrefetchScalarGridSpec(
            num_scalar_prefetch=0,
            grid=(B, k_chunks),
            in_specs=[
                pl.BlockSpec((1, 1, nc), lambda b, k: (b, 0, k)),
                pl.BlockSpec((1, 1, nc), lambda b, k: (b, 0, k)),
                pl.BlockSpec((NUM_BINS, nc), lambda b, k: (0, 0)),
            ],
            out_specs=pl.BlockSpec((1, 8, 128), lambda b, k: (b, 0, 0)),
            scratch_shapes=[
                pltpu.VMEM((NUM_BINS, NUM_BINS), jnp.float32),  # joint_acc
                pltpu.VMEM((NUM_BINS, 128), jnp.float32),       # p1_acc
                pltpu.VMEM((NUM_BINS, 128), jnp.float32),       # p2_acc
                pltpu.VMEM((1, 1), jnp.float32),                # s1_acc
                pltpu.VMEM((1, 1), jnp.float32),                # s2_acc
            ]),
        compiler_params=pltpu.CompilerParams(
            dimension_semantics=("parallel", "arbitrary"),
            vmem_limit_bytes=40 * 1024 * 1024),
    )(x1, x2, bins_sc)

    mi = out[:, 0, 0]

    # Device-side equivalent of the torch global early-exit; the per-batch sums
    # of the scaled inputs come straight out of the kernel (no extra HBM pass).
    m1 = jnp.sum(out[:, 0, 1]) / float(B * N)
    m2 = jnp.sum(out[:, 0, 2]) / float(B * N)
    # TODO(synk): torch returns a 0-d scalar 1.0 on this branch; we keep the
    # (B,) output shape and fill it with 1.0 instead for shape consistency.
    return jnp.where((m1 < 1e-3) & (m2 < 1e-3), jnp.ones_like(mi), mi)


def mutual_information_ref(input1, input2, bins):
    """Pure-JAX f32 reference matching the PyTorch forward (normalize=True)."""
    B, C, H, W = input1.shape
    x1 = ((input1 + 1e-4) * 255.0).reshape(B, H * W, C)
    x2 = ((input2 + 1e-4) * 255.0).reshape(B, H * W, C)

    def marginal(v):
        res = v - bins[None, None, :]
        kv = jnp.exp(-0.5 * jnp.square(res / SIGMA))
        pdf = jnp.mean(kv, axis=1)
        pdf = pdf / (jnp.sum(pdf, axis=1, keepdims=True) + EPS)
        return pdf, kv

    p1, kv1 = marginal(x1)
    p2, kv2 = marginal(x2)
    joint = jnp.einsum("bnk,bnl->bkl", kv1, kv2)
    joint = joint / (jnp.sum(joint, axis=(1, 2)).reshape(-1, 1, 1) + EPS)
    h1 = -jnp.sum(p1 * jnp.log2(p1 + EPS), axis=1)
    h2 = -jnp.sum(p2 * jnp.log2(p2 + EPS), axis=1)
    h12 = -jnp.sum(joint * jnp.log2(joint + EPS), axis=(1, 2))
    mi = h1 + h2 - h12
    return (2.0 * mi + EPS) / (h1 + h2 + EPS)


if __name__ == "__main__":
    key = jax.random.PRNGKey(0)
    # nn.Parameter(torch.linspace(0, 255, num_bins)) -- deterministic init.
    bins = jnp.linspace(0.0, 255.0, NUM_BINS, dtype=jnp.float32)

    fn = jax.jit(mutual_information)

    # Tolerance absorbs the bf16 VPU/EUP math + bf16 MXU operands on v6e/v7x
    # (residual subtraction is kept in f32 so the error stays ~1% per cell and
    # largely cancels in the normalized entropies).
    RTOL = ATOL = 2.5e-2

    # Case 1: B=2, 16x16 -- single chunk per image.
    k1, k2 = jax.random.split(key)
    a1 = jax.random.uniform(k1, (2, 1, 16, 16), dtype=jnp.float32)
    a2 = jax.random.uniform(k2, (2, 1, 16, 16), dtype=jnp.float32)
    out1 = jax.block_until_ready(fn(a1, a2, bins))
    ref1 = mutual_information_ref(a1, a2, bins)
    assert out1.shape == (2,)
    assert jnp.allclose(out1, ref1, rtol=RTOL, atol=ATOL), (out1, ref1)

    # Case 2: B=1, 72x72 -- exercises multi-chunk accumulation and the ragged
    # tail mask (N = 5184 is not a multiple of either chunk size).
    k3, k4 = jax.random.split(k2)
    b1 = jax.random.uniform(k3, (1, 1, 72, 72), dtype=jnp.float32)
    b2 = jax.random.uniform(k4, (1, 1, 72, 72), dtype=jnp.float32)
    out2 = jax.block_until_ready(fn(b1, b2, bins))
    ref2 = mutual_information_ref(b1, b2, bins)
    assert out2.shape == (1,)
    assert jnp.allclose(out2, ref2, rtol=RTOL, atol=ATOL), (out2, ref2)

    print("KERNEL_OK")
</pallas_src>

<mosaic_0001>
module attributes {stable_mosaic.version = 11 : i64} {
  func.func @kernel(%arg0: i32, %arg1: i32, %arg2: memref<1x1x256xf32, #tpu.memory_space<vmem>>, %arg3: memref<1x1x256xf32, #tpu.memory_space<vmem>>, %arg4: memref<256x256xf32, #tpu.memory_space<vmem>>, %arg5: memref<1x8x128xf32, #tpu.memory_space<vmem>>, %arg6: memref<256x256xf32, #tpu.memory_space<vmem>>, %arg7: memref<256x128xf32, #tpu.memory_space<vmem>>, %arg8: memref<256x128xf32, #tpu.memory_space<vmem>>, %arg9: memref<1x1xf32, #tpu.memory_space<vmem>>, %arg10: memref<1x1xf32, #tpu.memory_space<vmem>>) attributes {dimension_semantics = [#tpu.dimension_semantics<parallel>, #tpu.dimension_semantics<arbitrary>], iteration_bounds = array<i64: 2, 1>, scalar_prefetch = 0 : i64, scratch_operands = 5 : i64, tpu.core_type = #tpu.core_type<tc>, window_params = [{transform_indices = @transform_0, window_bounds = array<i64: 1, 1, 256>}, {transform_indices = @transform_1, window_bounds = array<i64: 1, 1, 256>}, {pipeline_mode = #tpu.pipeline_mode<synchronous>, transform_indices = @transform_2, window_bounds = array<i64: 256, 256>}, {transform_indices = @transform_3, window_bounds = array<i64: 1, 8, 128>}]} {
    %c0_i32 = arith.constant 0 : i32
    %0 = arith.cmpi eq, %arg1, %c0_i32 : i32
    %1 = arith.extui %0 : i1 to i32
    %c0_i32_0 = arith.constant 0 : i32
    %2 = arith.cmpi ne, %1, %c0_i32_0 : i32
    scf.if %2 {
      %cst_48 = arith.constant 0.000000e+00 : f32
      %79 = vector.broadcast %cst_48 : f32 to vector<256x256xf32>
      %c0_49 = arith.constant 0 : index
      %c0_50 = arith.constant 0 : index
      %80 = vector.load %arg6[%c0_49, %c0_50] : memref<256x256xf32, #tpu.memory_space<vmem>>, vector<256x256xf32>
      tpu.vector_store %arg6[%c0_49, %c0_50], %79 {strides = array<i32>} : memref<256x256xf32, #tpu.memory_space<vmem>>, vector<256x256xf32>,
      %cst_51 = arith.constant 0.000000e+00 : f32
      %81 = vector.broadcast %cst_51 : f32 to vector<256x128xf32>
      %c0_52 = arith.constant 0 : index
      %c0_53 = arith.constant 0 : index
      %82 = vector.load %arg7[%c0_52, %c0_53] : memref<256x128xf32, #tpu.memory_space<vmem>>, vector<256x128xf32>
      tpu.vector_store %arg7[%c0_52, %c0_53], %81 {strides = array<i32>} : memref<256x128xf32, #tpu.memory_space<vmem>>, vector<256x128xf32>,
      %cst_54 = arith.constant 0.000000e+00 : f32
      %83 = vector.broadcast %cst_54 : f32 to vector<256x128xf32>
      %c0_55 = arith.constant 0 : index
      %c0_56 = arith.constant 0 : index
      %84 = vector.load %arg8[%c0_55, %c0_56] : memref<256x128xf32, #tpu.memory_space<vmem>>, vector<256x128xf32>
      tpu.vector_store %arg8[%c0_55, %c0_56], %83 {strides = array<i32>} : memref<256x128xf32, #tpu.memory_space<vmem>>, vector<256x128xf32>,
      %cst_57 = arith.constant 0.000000e+00 : f32
      %85 = vector.broadcast %cst_57 : f32 to vector<1x1xf32>
      %c0_58 = arith.constant 0 : index
      %c0_59 = arith.constant 0 : index
      %86 = vector.load %arg9[%c0_58, %c0_59] : memref<1x1xf32, #tpu.memory_space<vmem>>, vector<1x1xf32>
      tpu.vector_store %arg9[%c0_58, %c0_59], %85 {strides = array<i32>} : memref<1x1xf32, #tpu.memory_space<vmem>>, vector<1x1xf32>,
      %cst_60 = arith.constant 0.000000e+00 : f32
      %87 = vector.broadcast %cst_60 : f32 to vector<1x1xf32>
      %c0_61 = arith.constant 0 : index
      %c0_62 = arith.constant 0 : index
      %88 = vector.load %arg10[%c0_61, %c0_62] : memref<1x1xf32, #tpu.memory_space<vmem>>, vector<1x1xf32>
      tpu.vector_store %arg10[%c0_61, %c0_62], %87 {strides = array<i32>} : memref<1x1xf32, #tpu.memory_space<vmem>>, vector<1x1xf32>,
    } else {
    }
    %3 = tpu.iota {dimensions = array<i32: 1>} : vector<1x256xi32>
    %c256_i32 = arith.constant 256 : i32
    %4 = arith.muli %arg1, %c256_i32 : i32
    %c256_i32_1 = arith.constant 256 : i32
    %5 = arith.subi %c256_i32_1, %4 : i32
    %6 = vector.broadcast %5 : i32 to vector<1x256xi32>
    %7 = arith.cmpi slt, %3, %6 : vector<1x256xi32>
    %c0 = arith.constant 0 : index
    %c0_2 = arith.constant 0 : index
    %8 = vector.load %arg4[%c0, %c0_2] : memref<256x256xf32, #tpu.memory_space<vmem>>, vector<256x256xf32>
    %c0_3 = arith.constant 0 : index
    %c0_4 = arith.constant 0 : index
    %c0_5 = arith.constant 0 : index
    %9 = vector.load %arg2[%c0_3, %c0_4, %c0_5] : memref<1x1x256xf32, #tpu.memory_space<vmem>>, vector<1x1x256xf32>
    %10 = vector.shape_cast %9 : vector<1x1x256xf32> to vector<1x256xf32>
    %cst = arith.constant 9.99999974E-5 : f32
    %11 = vector.broadcast %cst : f32 to vector<1x256xf32>
    %12 = arith.addf %10, %11 : vector<1x256xf32>
    %cst_6 = arith.constant 2.550000e+02 : f32
    %13 = vector.broadcast %cst_6 : f32 to vector<1x256xf32>
    %14 = arith.mulf %12, %13 : vector<1x256xf32>
    %c0_7 = arith.constant 0 : index
    %c0_8 = arith.constant 0 : index
    %15 = vector.load %arg9[%c0_7, %c0_8] : memref<1x1xf32, #tpu.memory_space<vmem>>, vector<1x1xf32>
    %cst_9 = arith.constant 0.000000e+00 : f32
    %16 = vector.broadcast %cst_9 : f32 to vector<1x256xf32>
    %17 = arith.select %7, %14, %16 : vector<1x256xi1>, vector<1x256xf32>
    %18 = vector.shape_cast %17 : vector<1x256xf32> to vector<1x1x256xf32>
    %cst_10 = arith.constant dense<0.000000e+00> : vector<1xf32>
    %19 = vector.multi_reduction <add>, %18, %cst_10 [1, 2] : vector<1x1x256xf32> to vector<1xf32>
    %20 = vector.shape_cast %19 : vector<1xf32> to vector<1x1x1xf32>
    %21 = vector.extract %20[0, 0, 0] : f32 from vector<1x1x1xf32>
    %22 = vector.broadcast %21 : f32 to vector<1x1xf32>
    %23 = arith.addf %15, %22 : vector<1x1xf32>
    %c0_11 = arith.constant 0 : index
    %c0_12 = arith.constant 0 : index
    %24 = vector.load %arg9[%c0_11, %c0_12] : memref<1x1xf32, #tpu.memory_space<vmem>>, vector<1x1xf32>
    tpu.vector_store %arg9[%c0_11, %c0_12], %23 {strides = array<i32>} : memref<1x1xf32, #tpu.memory_space<vmem>>, vector<1x1xf32>,
    %cst_13 = arith.constant 7.07106781 : f32
    %25 = vector.broadcast %cst_13 : f32 to vector<1x256xf32>
    %26 = arith.mulf %14, %25 : vector<1x256xf32>
    %cst_14 = arith.constant 9.99999986E+14 : f32
    %27 = vector.broadcast %cst_14 : f32 to vector<1x256xf32>
    %28 = arith.select %7, %26, %27 : vector<1x256xi1>, vector<1x256xf32>
    %29 = vector.broadcast %28 : vector<1x256xf32> to vector<256x256xf32>
    %30 = arith.subf %29, %8 : vector<256x256xf32>
    %31 = arith.truncf %30 : vector<256x256xf32> to vector<256x256xbf16>
    %32 = arith.mulf %31, %31 : vector<256x256xbf16>
    %cst_15 = arith.constant 0.000000e+00 : bf16
    %33 = vector.broadcast %cst_15 : bf16 to vector<256x256xbf16>
    %34 = arith.subf %33, %32 : vector<256x256xbf16>
    %35 = math.exp %34 : vector<256x256xbf16>
    %c0_16 = arith.constant 0 : index
    %c0_17 = arith.constant 0 : index
    %c0_18 = arith.constant 0 : index
    %36 = vector.load %arg3[%c0_16, %c0_17, %c0_18] : memref<1x1x256xf32, #tpu.memory_space<vmem>>, vector<1x1x256xf32>
    %37 = vector.shape_cast %36 : vector<1x1x256xf32> to vector<1x256xf32>
    %cst_19 = arith.constant 9.99999974E-5 : f32
    %38 = vector.broadcast %cst_19 : f32 to vector<1x256xf32>
    %39 = arith.addf %37, %38 : vector<1x256xf32>
    %cst_20 = arith.constant 2.550000e+02 : f32
    %40 = vector.broadcast %cst_20 : f32 to vector<1x256xf32>
    %41 = arith.mulf %39, %40 : vector<1x256xf32>
    %c0_21 = arith.constant 0 : index
    %c0_22 = arith.constant 0 : index
    %42 = vector.load %arg10[%c0_21, %c0_22] : memref<1x1xf32, #tpu.memory_space<vmem>>, vector<1x1xf32>
    %cst_23 = arith.constant 0.000000e+00 : f32
    %43 = vector.broadcast %cst_23 : f32 to vector<1x256xf32>
    %44 = arith.select %7, %41, %43 : vector<1x256xi1>, vector<1x256xf32>
    %45 = vector.shape_cast %44 : vector<1x256xf32> to vector<1x1x256xf32>
    %cst_24 = arith.constant dense<0.000000e+00> : vector<1xf32>
    %46 = vector.multi_reduction <add>, %45, %cst_24 [1, 2] : vector<1x1x256xf32> to vector<1xf32>
    %47 = vector.shape_cast %46 : vector<1xf32> to vector<1x1x1xf32>
    %48 = vector.extract %47[0, 0, 0] : f32 from vector<1x1x1xf32>
    %49 = vector.broadcast %48 : f32 to vector<1x1xf32>
    %50 = arith.addf %42, %49 : vector<1x1xf32>
    %c0_25 = arith.constant 0 : index
    %c0_26 = arith.constant 0 : index
    %51 = vector.load %arg10[%c0_25, %c0_26] : memref<1x1xf32, #tpu.memory_space<vmem>>, vector<1x1xf32>
    tpu.vector_store %arg10[%c0_25, %c0_26], %50 {strides = array<i32>} : memref<1x1xf32, #tpu.memory_space<vmem>>, vector<1x1xf32>,
    %cst_27 = arith.constant 7.07106781 : f32
    %52 = vector.broadcast %cst_27 : f32 to vector<1x256xf32>
    %53 = arith.mulf %41, %52 : vector<1x256xf32>
    %cst_28 = arith.constant 9.99999986E+14 : f32
    %54 = vector.broadcast %cst_28 : f32 to vector<1x256xf32>
    %55 = arith.select %7, %53, %54 : vector<1x256xi1>, vector<1x256xf32>
    %56 = vector.broadcast %55 : vector<1x256xf32> to vector<256x256xf32>
    %57 = arith.subf %56, %8 : vector<256x256xf32>
    %58 = arith.truncf %57 : vector<256x256xf32> to vector<256x256xbf16>
    %59 = arith.mulf %58, %58 : vector<256x256xbf16>
    %cst_29 = arith.constant 0.000000e+00 : bf16
    %60 = vector.broadcast %cst_29 : bf16 to vector<256x256xbf16>
    %61 = arith.subf %60, %59 : vector<256x256xbf16>
    %62 = math.exp %61 : vector<256x256xbf16>
    %cst_30 = arith.constant 1.000000e+00 : bf16
    %63 = vector.broadcast %cst_30 : bf16 to vector<128x256xbf16>
    %c0_31 = arith.constant 0 : index
    %c0_32 = arith.constant 0 : index
    %64 = vector.load %arg7[%c0_31, %c0_32] : memref<256x128xf32, #tpu.memory_space<vmem>>, vector<256x128xf32>
    %cst_33 = arith.constant dense<0.000000e+00> : vector<256x128xf32>
    %65 = tpu.matmul %35, %63, %cst_33 {dimension_numbers = #tpu.dot_dimension_numbers<[1], [1], [0], [0], [0, 0, 1, 0], [], []>} : vector<256x256xbf16>, vector<128x256xbf16>, vector<256x128xf32> -> vector<256x128xf32>
    %66 = arith.addf %64, %65 : vector<256x128xf32>
    %c0_34 = arith.constant 0 : index
    %c0_35 = arith.constant 0 : index
    %67 = vector.load %arg7[%c0_34, %c0_35] : memref<256x128xf32, #tpu.memory_space<vmem>>, vector<256x128xf32>
    tpu.vector_store %arg7[%c0_34, %c0_35], %66 {strides = array<i32>} : memref<256x128xf32, #tpu.memory_space<vmem>>, vector<256x128xf32>,
    %c0_36 = arith.constant 0 : index
    %c0_37 = arith.constant 0 : index
    %68 = vector.load %arg8[%c0_36, %c0_37] : memref<256x128xf32, #tpu.memory_space<vmem>>, vector<256x128xf32>
    %cst_38 = arith.constant dense<0.000000e+00> : vector<256x128xf32>
    %69 = tpu.matmul %62, %63, %cst_38 {dimension_numbers = #tpu.dot_dimension_numbers<[1], [1], [0], [0], [0, 0, 1, 0], [], []>} : vector<256x256xbf16>, vector<128x256xbf16>, vector<256x128xf32> -> vector<256x128xf32>
    %70 = arith.addf %68, %69 : vector<256x128xf32>
    %c0_39 = arith.constant 0 : index
    %c0_40 = arith.constant 0 : index
    %71 = vector.load %arg8[%c0_39, %c0_40] : memref<256x128xf32, #tpu.memory_space<vmem>>, vector<256x128xf32>
    tpu.vector_store %arg8[%c0_39, %c0_40], %70 {strides = array<i32>} : memref<256x128xf32, #tpu.memory_space<vmem>>, vector<256x128xf32>,
    %c0_41 = arith.constant 0 : index
    %c0_42 = arith.constant 0 : index
    %72 = vector.load %arg6[%c0_41, %c0_42] : memref<256x256xf32, #tpu.memory_space<vmem>>, vector<256x256xf32>
    %cst_43 = arith.constant dense<0.000000e+00> : vector<256x256xf32>
    %73 = tpu.matmul %35, %62, %cst_43 {dimension_numbers = #tpu.dot_dimension_numbers<[1], [1], [0], [0], [0, 0, 1, 0], [], []>} : vector<256x256xbf16>, vector<256x256xbf16>, vector<256x256xf32> -> vector<256x256xf32>
    %74 = arith.addf %72, %73 : vector<256x256xf32>
    %c0_44 = arith.constant 0 : index
    %c0_45 = arith.constant 0 : index
    %75 = vector.load %arg6[%c0_44, %c0_45] : memref<256x256xf32, #tpu.memory_space<vmem>>, vector<256x256xf32>
    tpu.vector_store %arg6[%c0_44, %c0_45], %74 {strides = array<i32>} : memref<256x256xf32, #tpu.memory_space<vmem>>, vector<256x256xf32>,
    %c0_i32_46 = arith.constant 0 : i32
    %76 = arith.cmpi eq, %arg1, %c0_i32_46 : i32
    %77 = arith.extui %76 : i1 to i32
    %c0_i32_47 = arith.constant 0 : i32
    %78 = arith.cmpi ne, %77, %c0_i32_47 : i32
    scf.if %78 {
      %c0_48 = arith.constant 0 : index
      %c0_49 = arith.constant 0 : index
      %79 = vector.load %arg7[%c0_48, %c0_49] : memref<256x128xf32, #tpu.memory_space<vmem>>, vector<256x128xf32>
      %80 = vector.extract_strided_slice %79 {offsets = [0, 0], sizes = [256, 1], strides = [1, 1]} : vector<256x128xf32> to vector<256x1xf32>
      %cst_50 = arith.constant 3.906250e-03 : f32
      %81 = vector.broadcast %cst_50 : f32 to vector<256x1xf32>
      %82 = arith.mulf %80, %81 : vector<256x1xf32>
      %83 = vector.shape_cast %82 : vector<256x1xf32> to vector<1x256x1xf32>
      %cst_51 = arith.constant dense<0.000000e+00> : vector<1xf32>
      %84 = vector.multi_reduction <add>, %83, %cst_51 [1, 2] : vector<1x256x1xf32> to vector<1xf32>
      %85 = vector.shape_cast %84 : vector<1xf32> to vector<1x1x1xf32>
      %86 = vector.extract %85[0, 0, 0] : f32 from vector<1x1x1xf32>
      %87 = vector.broadcast %86 : f32 to vector<1x1xf32>
      %cst_52 = arith.constant 1.000000e-03 : f32
      %88 = vector.broadcast %cst_52 : f32 to vector<1x1xf32>
      %89 = arith.addf %87, %88 : vector<1x1xf32>
      %90 = tpu.reciprocal %89 : vector<1x1xf32> -> vector<1x1xf32>
      %91 = vector.broadcast %90 : vector<1x1xf32> to vector<256x1xf32>
      %92 = arith.mulf %82, %91 : vector<256x1xf32>
      %c0_53 = arith.constant 0 : index
      %c0_54 = arith.constant 0 : index
      %93 = vector.load %arg8[%c0_53, %c0_54] : memref<256x128xf32, #tpu.memory_space<vmem>>, vector<256x128xf32>
      %94 = vector.extract_strided_slice %93 {offsets = [0, 0], sizes = [256, 1], strides = [1, 1]} : vector<256x128xf32> to vector<256x1xf32>
      %cst_55 = arith.constant 3.906250e-03 : f32
      %95 = vector.broadcast %cst_55 : f32 to vector<256x1xf32>
      %96 = arith.mulf %94, %95 : vector<256x1xf32>
      %97 = vector.shape_cast %96 : vector<256x1xf32> to vector<1x256x1xf32>
      %cst_56 = arith.constant dense<0.000000e+00> : vector<1xf32>
      %98 = vector.multi_reduction <add>, %97, %cst_56 [1, 2] : vector<1x256x1xf32> to vector<1xf32>
      %99 = vector.shape_cast %98 : vector<1xf32> to vector<1x1x1xf32>
      %100 = vector.extract %99[0, 0, 0] : f32 from vector<1x1x1xf32>
      %101 = vector.broadcast %100 : f32 to vector<1x1xf32>
      %cst_57 = arith.constant 1.000000e-03 : f32
      %102 = vector.broadcast %cst_57 : f32 to vector<1x1xf32>
      %103 = arith.addf %101, %102 : vector<1x1xf32>
      %104 = tpu.reciprocal %103 : vector<1x1xf32> -> vector<1x1xf32>
      %105 = vector.broadcast %104 : vector<1x1xf32> to vector<256x1xf32>
      %106 = arith.mulf %96, %105 : vector<256x1xf32>
      %c0_58 = arith.constant 0 : index
      %c0_59 = arith.constant 0 : index
      %107 = vector.load %arg6[%c0_58, %c0_59] : memref<256x256xf32, #tpu.memory_space<vmem>>, vector<256x256xf32>
      %108 = vector.shape_cast %107 : vector<256x256xf32> to vector<1x256x256xf32>
      %cst_60 = arith.constant dense<0.000000e+00> : vector<1xf32>
      %109 = vector.multi_reduction <add>, %108, %cst_60 [1, 2] : vector<1x256x256xf32> to vector<1xf32>
      %110 = vector.shape_cast %109 : vector<1xf32> to vector<1x1x1xf32>
      %111 = vector.extract %110[0, 0, 0] : f32 from vector<1x1x1xf32>
      %112 = vector.broadcast %111 : f32 to vector<1x1xf32>
      %cst_61 = arith.constant 1.000000e-03 : f32
      %113 = vector.broadcast %cst_61 : f32 to vector<1x1xf32>
      %114 = arith.addf %112, %113 : vector<1x1xf32>
      %115 = tpu.reciprocal %114 : vector<1x1xf32> -> vector<1x1xf32>
      %116 = vector.broadcast %115 : vector<1x1xf32> to vector<256x256xf32>
      %117 = arith.mulf %107, %116 : vector<256x256xf32>
      %cst_62 = arith.constant 1.000000e-03 : f32
      %118 = vector.broadcast %cst_62 : f32 to vector<256x1xf32>
      %119 = arith.addf %92, %118 : vector<256x1xf32>
      %120 = math.log %119 : vector<256x1xf32>
      %cst_63 = arith.constant 2.000000e+00 : f32
      %121 = math.log %cst_63 : f32
      %122 = vector.broadcast %121 : f32 to vector<256x1xf32>
      %123 = arith.divf %120, %122 : vector<256x1xf32>
      %124 = arith.mulf %92, %123 : vector<256x1xf32>
      %125 = vector.shape_cast %124 : vector<256x1xf32> to vector<1x256x1xf32>
      %cst_64 = arith.constant dense<0.000000e+00> : vector<1xf32>
      %126 = vector.multi_reduction <add>, %125, %cst_64 [1, 2] : vector<1x256x1xf32> to vector<1xf32>
      %127 = vector.shape_cast %126 : vector<1xf32> to vector<1x1x1xf32>
      %128 = vector.extract %127[0, 0, 0] : f32 from vector<1x1x1xf32>
      %cst_65 = arith.constant 0.000000e+00 : f32
      %129 = arith.subf %cst_65, %128 : f32
      %cst_66 = arith.constant 1.000000e-03 : f32
      %130 = vector.broadcast %cst_66 : f32 to vector<256x1xf32>
      %131 = arith.addf %106, %130 : vector<256x1xf32>
      %132 = math.log %131 : vector<256x1xf32>
      %cst_67 = arith.constant 2.000000e+00 : f32
      %133 = math.log %cst_67 : f32
      %134 = vector.broadcast %133 : f32 to vector<256x1xf32>
      %135 = arith.divf %132, %134 : vector<256x1xf32>
      %136 = arith.mulf %106, %135 : vector<256x1xf32>
      %137 = vector.shape_cast %136 : vector<256x1xf32> to vector<1x256x1xf32>
      %cst_68 = arith.constant dense<0.000000e+00> : vector<1xf32>
      %138 = vector.multi_reduction <add>, %137, %cst_68 [1, 2] : vector<1x256x1xf32> to vector<1xf32>
      %139 = vector.shape_cast %138 : vector<1xf32> to vector<1x1x1xf32>
      %140 = vector.extract %139[0, 0, 0] : f32 from vector<1x1x1xf32>
      %cst_69 = arith.constant 0.000000e+00 : f32
      %141 = arith.subf %cst_69, %140 : f32
      %cst_70 = arith.constant 1.000000e-03 : f32
      %142 = vector.broadcast %cst_70 : f32 to vector<256x256xf32>
      %143 = arith.addf %117, %142 : vector<256x256xf32>
      %144 = math.log %143 : vector<256x256xf32>
      %cst_71 = arith.constant 2.000000e+00 : f32
      %145 = math.log %cst_71 : f32
      %146 = vector.broadcast %145 : f32 to vector<256x256xf32>
      %147 = arith.divf %144, %146 : vector<256x256xf32>
      %148 = arith.mulf %117, %147 : vector<256x256xf32>
      %149 = vector.shape_cast %148 : vector<256x256xf32> to vector<1x256x256xf32>
      %cst_72 = arith.constant dense<0.000000e+00> : vector<1xf32>
      %150 = vector.multi_reduction <add>, %149, %cst_72 [1, 2] : vector<1x256x256xf32> to vector<1xf32>
      %151 = vector.shape_cast %150 : vector<1xf32> to vector<1x1x1xf32>
      %152 = vector.extract %151[0, 0, 0] : f32 from vector<1x1x1xf32>
      %cst_73 = arith.constant 0.000000e+00 : f32
      %153 = arith.subf %cst_73, %152 : f32
      %154 = arith.addf %129, %141 : f32
      %155 = arith.subf %154, %153 : f32
      %cst_74 = arith.constant 2.000000e+00 : f32
      %156 = arith.mulf %cst_74, %155 : f32
      %cst_75 = arith.constant 1.000000e-03 : f32
      %157 = arith.addf %156, %cst_75 : f32
      %158 = arith.addf %129, %141 : f32
      %cst_76 = arith.constant 1.000000e-03 : f32
      %159 = arith.addf %158, %cst_76 : f32
      %160 = arith.divf %157, %159 : f32
      %161 = tpu.iota {dimensions = array<i32: 2>} : vector<1x8x128xi32>
      %c0_i32_77 = arith.constant 0 : i32
      %162 = vector.broadcast %c0_i32_77 : i32 to vector<1x8x128xi32>
      %163 = arith.cmpi eq, %161, %162 : vector<1x8x128xi32>
      %cst_78 = arith.constant 0.000000e+00 : f32
      %164 = vector.broadcast %160 : f32 to vector<1x8x128xf32>
      %165 = vector.broadcast %cst_78 : f32 to vector<1x8x128xf32>
      %166 = arith.select %163, %164, %165 : vector<1x8x128xi1>, vector<1x8x128xf32>
      %c1_i32 = arith.constant 1 : i32
      %167 = vector.broadcast %c1_i32 : i32 to vector<1x8x128xi32>
      %168 = arith.cmpi eq, %161, %167 : vector<1x8x128xi32>
      %c0_79 = arith.constant 0 : index
      %c0_80 = arith.constant 0 : index
      %169 = vector.load %arg9[%c0_79, %c0_80] : memref<1x1xf32, #tpu.memory_space<vmem>>, vector<1x1xf32>
      %170 = vector.shape_cast %169 : vector<1x1xf32> to vector<1x1x1xf32>
      %cst_81 = arith.constant 0.000000e+00 : f32
      %171 = vector.shape_cast %170 : vector<1x1x1xf32> to vector<1x1x1xf32>
      %172 = vector.broadcast %171 : vector<1x1x1xf32> to vector<1x8x128xf32>
      %173 = vector.broadcast %cst_81 : f32 to vector<1x8x128xf32>
      %174 = arith.select %168, %172, %173 : vector<1x8x128xi1>, vector<1x8x128xf32>
      %175 = arith.addf %166, %174 : vector<1x8x128xf32>
      %c2_i32 = arith.constant 2 : i32
      %176 = vector.broadcast %c2_i32 : i32 to vector<1x8x128xi32>
      %177 = arith.cmpi eq, %161, %176 : vector<1x8x128xi32>
      %c0_82 = arith.constant 0 : index
      %c0_83 = arith.constant 0 : index
      %178 = vector.load %arg10[%c0_82, %c0_83] : memref<1x1xf32, #tpu.memory_space<vmem>>, vector<1x1xf32>
      %179 = vector.shape_cast %178 : vector<1x1xf32> to vector<1x1x1xf32>
      %cst_84 = arith.constant 0.000000e+00 : f32
      %180 = vector.shape_cast %179 : vector<1x1x1xf32> to vector<1x1x1xf32>
      %181 = vector.broadcast %180 : vector<1x1x1xf32> to vector<1x8x128xf32>
      %182 = vector.broadcast %cst_84 : f32 to vector<1x8x128xf32>
      %183 = arith.select %177, %181, %182 : vector<1x8x128xi1>, vector<1x8x128xf32>
      %184 = arith.addf %175, %183 : vector<1x8x128xf32>
      %c0_85 = arith.constant 0 : index
      %c0_86 = arith.constant 0 : index
      %c0_87 = arith.constant 0 : index
      %185 = vector.load %arg5[%c0_85, %c0_86, %c0_87] : memref<1x8x128xf32, #tpu.memory_space<vmem>>, vector<1x8x128xf32>
      tpu.vector_store %arg5[%c0_85, %c0_86, %c0_87], %184 {strides = array<i32>} : memref<1x8x128xf32, #tpu.memory_space<vmem>>, vector<1x8x128xf32>,
    } else {
    }
    return
  }
  func.func @transform_0(%arg0: i32, %arg1: i32) -> (i32, i32, i32) {
    %c0_i32 = arith.constant 0 : i32
    %c0_i32_0 = arith.constant 0 : i32
    return %arg0, %c0_i32, %arg1 : i32, i32, i32
  }
  func.func @transform_1(%arg0: i32, %arg1: i32) -> (i32, i32, i32) {
    %c0_i32 = arith.constant 0 : i32
    %c0_i32_0 = arith.constant 0 : i32
    return %arg0, %c0_i32, %arg1 : i32, i32, i32
  }
  func.func @transform_2(%arg0: i32, %arg1: i32) -> (i32, i32) {
    %c0_i32 = arith.constant 0 : i32
    %c0_i32_0 = arith.constant 0 : i32
    %c0_i32_1 = arith.constant 0 : i32
    return %c0_i32, %c0_i32_0 : i32, i32
  }
  func.func @transform_3(%arg0: i32, %arg1: i32) -> (i32, i32, i32) {
    %c0_i32 = arith.constant 0 : i32
    %c0_i32_0 = arith.constant 0 : i32
    %c0_i32_1 = arith.constant 0 : i32
    return %arg0, %c0_i32, %c0_i32_0 : i32, i32, i32
  }
}

</mosaic_0001>

<llo_original>
// kernel: mutual_information.1
$region0: #{mutual_information.1}
  #allocation0 [shape = 'u32[]', space=smem, size = 0x4, offset = 0x4, fixed_abs, tag = 'smem constant byte address 0x4 - core index']
  #allocation1 [shape = 'u32[144,128]{1,0:T(1,128)}', space=vmem, size = 0x12000, scoped, tag = 'internal scratch']
  #allocation2 [shape = 'f32[256,256]{1,0:T(8,128)}', space=vmem, size = 0x40000, scoped, tag = 'scratch operand']
  #allocation3 [shape = 'f32[256,128]{1,0:T(8,128)}', space=vmem, size = 0x20000, scoped, tag = 'scratch operand']
  #allocation4 [shape = 'f32[256,128]{1,0:T(8,128)}', space=vmem, size = 0x20000, scoped, tag = 'scratch operand']
  #allocation5 [shape = 'f32[1,1]{1,0:T(1,128)}', space=vmem, size = 0x200, scoped, tag = 'scratch operand']
  #allocation6 [shape = 'f32[1,1]{1,0:T(1,128)}', space=vmem, size = 0x200, scoped, tag = 'scratch operand']
  %s0 = inlined_call_operand.vmem [shape: f32[2,1,256], index: 0, kind: input, shape index: {}]
  %s1 = inlined_call_operand.vmem [shape: f32[2,1,256], index: 1, kind: input, shape index: {}]
  %s2 = inlined_call_operand.vmem [shape: f32[256,256], index: 2, kind: input, shape index: {}]
  %s3 = inlined_call_operand.vmem [shape: f32[2,8,128], index: 3, kind: output, shape index: {}]
  %s4 = sld [smem:[#allocation0]]
  $region53: #{mutual_information.1} parent=0
    _
  %s6 = ssub.s32 1, %s4
  %s7 = scalar_select 0, %s6, %s4
  loop: start=0, step=1, limit=4
  $region2: #{mutual_information.1} parent=0 // loop_pre_header
    _
  $region3: #{mutual_information.1} parent=0 // loop_header
    %s9 = sphi 0, %s13
    %p10 = scmp.ge.s32.totalorder %s9, 4
    %s16 = sphi 0, %s28
    %s17 = sphi 0, %s24
    %s18 = sphi 0, %s16
    %s19 = sphi 0, %s17
    %s20 = sphi 0, %s18
    %s21 = sphi 0, %s19
    %s33 = sphi 0, %s35
    %s36 = sphi 0, %s33
    %s37 = sphi 0, %s36
    %s53 = sphi 0, %s37
    %s61 = sphi 0, %s63
    %s64 = sphi 0, %s61
    %s65 = sphi 0, %s64
    %s81 = sphi 0, %s65
    %s85 = sphi 0, %s85
    %s87 = sphi 0, %s85
    %s88 = sphi 0, %s87
    %s102 = sphi 0, %s88
    %s108 = sphi 0, %s110
    %s111 = sphi 0, %s108
    %s112 = sphi 0, %s111
    %s128 = sphi 0, %s112
  $region4: #{mutual_information.1} parent=0 // loop_header_branch
    %12 = sbr.rel (%p10) target = $region8
  $region5: #{mutual_information.1} parent=0 // loop_body
    %s14 = ssub.s32 %s9, 1
    %s15 = ssub.s32 %s9, 2
    %s22 = sadd.s32 1, %s17
    %p23 = scmp.ge.s32.totalorder %s22, 1
    %s24 = scalar_select %p23, 0, %s22
    %s25 = sadd.s32 1, %s16
    %s26 = scalar_select %p23, %s25, %s16
    %p27 = scmp.ge.s32.totalorder %s26, 2
    %s28 = scalar_select %p27, 0, %s26
    %s29 = ssub.s32 %s16, %s28
    %s30 = ssub.s32 %s17, %s24
    %s31 = sor.u32 %s29, %s30
    %p32 = scmp.eq.s32.totalorder %s31, 0
    %s34 = sadd.s32 %s33, 1
    %s35 = scalar_select %p32, %s33, %s34
    %p38 = pneg %p32
    %p39 = scmp.eq.s32.totalorder %s9, 1
    %p40 = por %p38, %p39
    %p41 = scmp.ne.s32.totalorder %s33, %s36
    %p42 = scmp.eq.s32.totalorder %s9, 0
    %p43 = por %p41, %p42
    %p44 = scmp.ne.s32.totalorder %s33, %s36
    %p45 = scmp.eq.s32.totalorder %s14, 1
    %p46 = por %p44, %p45
    %p47 = scmp.ne.s32.totalorder %s36, %s37
    %p48 = scmp.eq.s32.totalorder %s14, 0
    %p49 = por %p47, %p48
    %p50 = scmp.ne.s32.totalorder %s36, %s37
    %p51 = scmp.eq.s32.totalorder %s15, 1
    %p52 = por %p50, %p51
    %p54 = scmp.ne.s32.totalorder %s37, %s53
    %p55 = scmp.eq.s32.totalorder %s15, 0
    %p56 = por %p54, %p55
    %s57 = ssub.s32 %s16, %s28
    %s58 = ssub.s32 %s17, %s24
    %s59 = sor.u32 %s57, %s58
    %p60 = scmp.eq.s32.totalorder %s59, 0
    %s62 = sadd.s32 %s61, 1
    %s63 = scalar_select %p60, %s61, %s62
    %p66 = pneg %p60
    %p67 = scmp.eq.s32.totalorder %s9, 1
    %p68 = por %p66, %p67
    %p69 = scmp.ne.s32.totalorder %s61, %s64
    %p70 = scmp.eq.s32.totalorder %s9, 0
    %p71 = por %p69, %p70
    %p72 = scmp.ne.s32.totalorder %s61, %s64
    %p73 = scmp.eq.s32.totalorder %s14, 1
    %p74 = por %p72, %p73
    %p75 = scmp.ne.s32.totalorder %s64, %s65
    %p76 = scmp.eq.s32.totalorder %s14, 0
    %p77 = por %p75, %p76
    %p78 = scmp.ne.s32.totalorder %s64, %s65
    %p79 = scmp.eq.s32.totalorder %s15, 1
    %p80 = por %p78, %p79
    %p82 = scmp.ne.s32.totalorder %s65, %s81
    %p83 = scmp.eq.s32.totalorder %s15, 0
    %p84 = por %p82, %p83
    %s86 = sadd.s32 %s85, 1
    %p89 = scmp.eq.s32.totalorder %s9, 1
    %p90 = scmp.ne.s32.totalorder %s85, %s87
    %p91 = scmp.eq.s32.totalorder %s9, 0
    %p92 = por %p90, %p91
    %p93 = scmp.ne.s32.totalorder %s85, %s87
    %p94 = scmp.eq.s32.totalorder %s14, 1
    %p95 = por %p93, %p94
    %p96 = scmp.ne.s32.totalorder %s87, %s88
    %p97 = scmp.eq.s32.totalorder %s14, 0
    %p98 = por %p96, %p97
    %p99 = scmp.ne.s32.totalorder %s87, %s88
    %p100 = scmp.eq.s32.totalorder %s15, 1
    %p101 = por %p99, %p100
    %p103 = scmp.ne.s32.totalorder %s88, %s102
    %p104 = scmp.eq.s32.totalorder %s15, 0
    %p105 = por %p103, %p104
    %s106 = ssub.s32 %s16, %s28
    %p107 = scmp.eq.s32.totalorder %s106, 0
    %s109 = sadd.s32 %s108, 1
    %s110 = scalar_select %p107, %s108, %s109
    %p113 = pneg %p107
    %p114 = scmp.eq.s32.totalorder %s9, 1
    %p115 = por %p113, %p114
    %p116 = scmp.ne.s32.totalorder %s108, %s111
    %p117 = scmp.eq.s32.totalorder %s9, 0
    %p118 = por %p116, %p117
    %p119 = scmp.ne.s32.totalorder %s108, %s111
    %p120 = scmp.eq.s32.totalorder %s14, 1
    %p121 = por %p119, %p120
    %p122 = scmp.ne.s32.totalorder %s111, %s112
    %p123 = scmp.eq.s32.totalorder %s14, 0
    %p124 = por %p122, %p123
    %p125 = scmp.ne.s32.totalorder %s111, %s112
    %p126 = scmp.eq.s32.totalorder %s15, 1
    %p127 = por %p125, %p126
    %p129 = scmp.ne.s32.totalorder %s112, %s128
    %p130 = scmp.eq.s32.totalorder %s15, 0
    %p131 = por %p129, %p130
    %p132 = scmp.le.s32.totalorder 1, %s9
    %p133 = scmp.lt.s32.totalorder %s9, 3
    %p134 = pnand %p132, %p133
    %p135 = pneg %p134
    // Predicated region
    $region9: #{mutual_information.1} parent=5 // pred_check
      _
    $region10: #{mutual_information.1} parent=5 // pred_check_branch
      %137 = sbr.rel (%p134) target = $region12
    $region11: #{mutual_information.1} parent=5 // pred_region
      %s138 = ssub.s32 %s9, 1
      // Predicated region
      $region13: #{mutual_information.1} parent=11 // pred_check
        %p139 = pneg %p98
      $region14: #{mutual_information.1} parent=11 // pred_check_branch
        %141 = sbr.rel (%p139) target = $region16
      $region15: #{mutual_information.1} parent=11 // pred_region
        _
      $region16: #{mutual_information.1} parent=11 // pred_fallthru
        _
    $region12: #{mutual_information.1} parent=5 // pred_fallthru
      _
    %p142 = scmp.lt.s32.totalorder %s9, 2
    // Predicated region
    $region17: #{mutual_information.1} parent=5 // pred_check
      %p143 = pneg %p142
    $region18: #{mutual_information.1} parent=5 // pred_check_branch
      %145 = sbr.rel (%p143) target = $region20
    $region19: #{mutual_information.1} parent=5 // pred_region
      // Predicated region
      $region21: #{mutual_information.1} parent=19 // pred_check
        %p146 = pneg %p43
      $region22: #{mutual_information.1} parent=19 // pred_check_branch
        %148 = sbr.rel (%p146) target = $region24
      $region23: #{mutual_information.1} parent=19 // pred_region
        %s149 = smul.u32 2, %s17
        %p150 = scmp.lt.s32.totalorder %s16, 1
        %s151 = scalar_select %p150, %s16, 1
        %p152 = scmp.lt.s32.totalorder %s149, 1
        %s153 = scalar_select %p152, %s149, 1
        %s154 = smul.addr %s151, 2
        %s155 = sadd.s32 %s153, %s154
        %s156 = scalar_lea.vmem %s0, %s155
        %s157 = smul.u32 2, %s17
      $region24: #{mutual_information.1} parent=19 // pred_fallthru
        _
      // Predicated region
      $region25: #{mutual_information.1} parent=19 // pred_check
        %p158 = pneg %p71
      $region26: #{mutual_information.1} parent=19 // pred_check_branch
        %160 = sbr.rel (%p158) target = $region28
      $region27: #{mutual_information.1} parent=19 // pred_region
        %s161 = smul.u32 2, %s17
        %p162 = scmp.lt.s32.totalorder %s16, 1
        %s163 = scalar_select %p162, %s16, 1
        %p164 = scmp.lt.s32.totalorder %s161, 1
        %s165 = scalar_select %p164, %s161, 1
        %s166 = smul.addr %s163, 2
        %s167 = sadd.s32 %s165, %s166
        %s168 = scalar_lea.vmem %s1, %s167
        %s169 = smul.u32 2, %s17
      $region28: #{mutual_information.1} parent=19 // pred_fallthru
        _
    $region20: #{mutual_information.1} parent=5 // pred_fallthru
      _
    %p170 = scmp.le.s32.totalorder 1, %s9
    %p171 = scmp.lt.s32.totalorder %s9, 3
    %p172 = pnand %p170, %p171
    %p173 = pneg %p172
    // Predicated region
    $region29: #{mutual_information.1} parent=5 // pred_check
      _
    $region30: #{mutual_information.1} parent=5 // pred_check_branch
      %175 = sbr.rel (%p172) target = $region32
    $region31: #{mutual_information.1} parent=5 // pred_region
      %s176 = ssub.s32 %s9, 1
      %s177 = smul.u32 2, %s19
      %p178 = scmp.lt.s32.totalorder %s18, 1
      %s179 = scalar_select %p178, %s18, 1
      %p180 = scmp.lt.s32.totalorder %s177, 1
      %s181 = scalar_select %p180, %s177, 1
      %s182 = smul.addr %s179, 2
      %s183 = sadd.s32 %s181, %s182
      %s184 = scalar_lea.vmem %s0, %s183
      %p185 = pneg %p49
      %p186 = pneg %p46
      %s187 = smul.u32 2, %s19
      %p188 = scmp.lt.s32.totalorder %s18, 1
      %s189 = scalar_select %p188, %s18, 1
      %p190 = scmp.lt.s32.totalorder %s187, 1
      %s191 = scalar_select %p190, %s187, 1
      %s192 = smul.addr %s189, 2
      %s193 = sadd.s32 %s191, %s192
      %s194 = scalar_lea.vmem %s1, %s193
      %p195 = pneg %p77
      %p196 = pneg %p74
      %p197 = pneg %p98
      %p198 = pneg %p95
      %p199 = pneg %p124
      %p200 = pneg %p121
      %p201 = scmp.lt.s32.totalorder %s18, 1
      %s202 = scalar_select %p201, %s18, 1
      %s203 = smul.addr %s202, 8
      %s204 = scalar_lea.vmem %s3, %s203
      %s205 = smul.u32 2, %s19
      %p206 = scmp.lt.s32.totalorder %s18, 1
      %s207 = scalar_select %p206, %s18, 1
      %p208 = scmp.lt.s32.totalorder %s205, 1
      %s209 = scalar_select %p208, %s205, 1
      %s210 = smul.addr %s207, 2
      %s211 = sadd.s32 %s209, %s210
      %s212 = scalar_lea.vmem %s0, %s211
      %s213 = smul.u32 2, %s19
      %s214 = smul.u32 2, %s19
      %p215 = scmp.lt.s32.totalorder %s18, 1
      %s216 = scalar_select %p215, %s18, 1
      %p217 = scmp.lt.s32.totalorder %s214, 1
      %s218 = scalar_select %p217, %s214, 1
      %s219 = smul.addr %s216, 2
      %s220 = sadd.s32 %s218, %s219
      %s221 = scalar_lea.vmem %s1, %s220
      %s222 = smul.u32 2, %s19
      %p223 = scmp.lt.s32.totalorder %s18, 1
      %s224 = scalar_select %p223, %s18, 1
      %s225 = smul.addr %s224, 8
      %s226 = scalar_lea.vmem %s3, %s225
      %p229 = scmp.eq.s32.totalorder %s19, 0
      // Predicated region
      $region33: #{mutual_information.1} parent=31 // pred_check
        %p230 = pneg %p229
      $region34: #{mutual_information.1} parent=31 // pred_check_branch
        %232 = sbr.rel (%p230) target = $region36
      $region35: #{mutual_information.1} parent=31 // pred_region
        %233 = vst [vmem:[#allocation2] sm:$0xff] 0.0
        %234 = vst [vmem:[#allocation2 + $0x8] sm:$0xff] 0.0
        %235 = vst [vmem:[#allocation2 + $0x10] sm:$0xff] 0.0
        %236 = vst [vmem:[#allocation2 + $0x18] sm:$0xff] 0.0
        %237 = vst [vmem:[#allocation2 + $0x20] sm:$0xff] 0.0
        %238 = vst [vmem:[#allocation2 + $0x28] sm:$0xff] 0.0
        %239 = vst [vmem:[#allocation2 + $0x30] sm:$0xff] 0.0
        %240 = vst [vmem:[#allocation2 + $0x38] sm:$0xff] 0.0
        %241 = vst [vmem:[#allocation2 + $0x40] sm:$0xff] 0.0
        %242 = vst [vmem:[#allocation2 + $0x48] sm:$0xff] 0.0
        %243 = vst [vmem:[#allocation2 + $0x50] sm:$0xff] 0.0
        %244 = vst [vmem:[#allocation2 + $0x58] sm:$0xff] 0.0
        %245 = vst [vmem:[#allocation2 + $0x60] sm:$0xff] 0.0
        %246 = vst [vmem:[#allocation2 + $0x68] sm:$0xff] 0.0
        %247 = vst [vmem:[#allocation2 + $0x70] sm:$0xff] 0.0
        %248 = vst [vmem:[#allocation2 + $0x78] sm:$0xff] 0.0
        %249 = vst [vmem:[#allocation2 + $0x80] sm:$0xff] 0.0
        %250 = vst [vmem:[#allocation2 + $0x88] sm:$0xff] 0.0
        %251 = vst [vmem:[#allocation2 + $0x90] sm:$0xff] 0.0
        %252 = vst [vmem:[#allocation2 + $0x98] sm:$0xff] 0.0
        %253 = vst [vmem:[#allocation2 + $0xa0] sm:$0xff] 0.0
        %254 = vst [vmem:[#allocation2 + $0xa8] sm:$0xff] 0.0
        %255 = vst [vmem:[#allocation2 + $0xb0] sm:$0xff] 0.0
        %256 = vst [vmem:[#allocation2 + $0xb8] sm:$0xff] 0.0
        %257 = vst [vmem:[#allocation2 + $0xc0] sm:$0xff] 0.0
        %258 = vst [vmem:[#allocation2 + $0xc8] sm:$0xff] 0.0
        %259 = vst [vmem:[#allocation2 + $0xd0] sm:$0xff] 0.0
        %260 = vst [vmem:[#allocation2 + $0xd8] sm:$0xff] 0.0
        %261 = vst [vmem:[#allocation2 + $0xe0] sm:$0xff] 0.0
        %262 = vst [vmem:[#allocation2 + $0xe8] sm:$0xff] 0.0
        %263 = vst [vmem:[#allocation2 + $0xf0] sm:$0xff] 0.0
        %264 = vst [vmem:[#allocation2 + $0xf8] sm:$0xff] 0.0
        %265 = vst [vmem:[#allocation2 + $0x100] sm:$0xff] 0.0
        %266 = vst [vmem:[#allocation2 + $0x108] sm:$0xff] 0.0
        %267 = vst [vmem:[#allocation2 + $0x110] sm:$0xff] 0.0
        %268 = vst [vmem:[#allocation2 + $0x118] sm:$0xff] 0.0
        %269 = vst [vmem:[#allocation2 + $0x120] sm:$0xff] 0.0
        %270 = vst [vmem:[#allocation2 + $0x128] sm:$0xff] 0.0
        %271 = vst [vmem:[#allocation2 + $0x130] sm:$0xff] 0.0
        %272 = vst [vmem:[#allocation2 + $0x138] sm:$0xff] 0.0
        %273 = vst [vmem:[#allocation2 + $0x140] sm:$0xff] 0.0
        %274 = vst [vmem:[#allocation2 + $0x148] sm:$0xff] 0.0
        %275 = vst [vmem:[#allocation2 + $0x150] sm:$0xff] 0.0
        %276 = vst [vmem:[#allocation2 + $0x158] sm:$0xff] 0.0
        %277 = vst [vmem:[#allocation2 + $0x160] sm:$0xff] 0.0
        %278 = vst [vmem:[#allocation2 + $0x168] sm:$0xff] 0.0
        %279 = vst [vmem:[#allocation2 + $0x170] sm:$0xff] 0.0
        %280 = vst [vmem:[#allocation2 + $0x178] sm:$0xff] 0.0
        %281 = vst [vmem:[#allocation2 + $0x180] sm:$0xff] 0.0
        %282 = vst [vmem:[#allocation2 + $0x188] sm:$0xff] 0.0
        %283 = vst [vmem:[#allocation2 + $0x190] sm:$0xff] 0.0
        %284 = vst [vmem:[#allocation2 + $0x198] sm:$0xff] 0.0
        %285 = vst [vmem:[#allocation2 + $0x1a0] sm:$0xff] 0.0
        %286 = vst [vmem:[#allocation2 + $0x1a8] sm:$0xff] 0.0
        %287 = vst [vmem:[#allocation2 + $0x1b0] sm:$0xff] 0.0
        %288 = vst [vmem:[#allocation2 + $0x1b8] sm:$0xff] 0.0
        %289 = vst [vmem:[#allocation2 + $0x1c0] sm:$0xff] 0.0
        %290 = vst [vmem:[#allocation2 + $0x1c8] sm:$0xff] 0.0
        %291 = vst [vmem:[#allocation2 + $0x1d0] sm:$0xff] 0.0
        %292 = vst [vmem:[#allocation2 + $0x1d8] sm:$0xff] 0.0
        %293 = vst [vmem:[#allocation2 + $0x1e0] sm:$0xff] 0.0
        %294 = vst [vmem:[#allocation2 + $0x1e8] sm:$0xff] 0.0
        %295 = vst [vmem:[#allocation2 + $0x1f0] sm:$0xff] 0.0
        %296 = vst [vmem:[#allocation2 + $0x1f8] sm:$0xff] 0.0
        %297 = vst [vmem:[#allocation3] sm:$0xff] 0.0
        %298 = vst [vmem:[#allocation3 + $0x8] sm:$0xff] 0.0
        %299 = vst [vmem:[#allocation3 + $0x10] sm:$0xff] 0.0
        %300 = vst [vmem:[#allocation3 + $0x18] sm:$0xff] 0.0
        %301 = vst [vmem:[#allocation3 + $0x20] sm:$0xff] 0.0
        %302 = vst [vmem:[#allocation3 + $0x28] sm:$0xff] 0.0
        %303 = vst [vmem:[#allocation3 + $0x30] sm:$0xff] 0.0
        %304 = vst [vmem:[#allocation3 + $0x38] sm:$0xff] 0.0
        %305 = vst [vmem:[#allocation3 + $0x40] sm:$0xff] 0.0
        %306 = vst [vmem:[#allocation3 + $0x48] sm:$0xff] 0.0
        %307 = vst [vmem:[#allocation3 + $0x50] sm:$0xff] 0.0
        %308 = vst [vmem:[#allocation3 + $0x58] sm:$0xff] 0.0
        %309 = vst [vmem:[#allocation3 + $0x60] sm:$0xff] 0.0
        %310 = vst [vmem:[#allocation3 + $0x68] sm:$0xff] 0.0
        %311 = vst [vmem:[#allocation3 + $0x70] sm:$0xff] 0.0
        %312 = vst [vmem:[#allocation3 + $0x78] sm:$0xff] 0.0
        %313 = vst [vmem:[#allocation3 + $0x80] sm:$0xff] 0.0
        %314 = vst [vmem:[#allocation3 + $0x88] sm:$0xff] 0.0
        %315 = vst [vmem:[#allocation3 + $0x90] sm:$0xff] 0.0
        %316 = vst [vmem:[#allocation3 + $0x98] sm:$0xff] 0.0
        %317 = vst [vmem:[#allocation3 + $0xa0] sm:$0xff] 0.0
        %318 = vst [vmem:[#allocation3 + $0xa8] sm:$0xff] 0.0
        %319 = vst [vmem:[#allocation3 + $0xb0] sm:$0xff] 0.0
        %320 = vst [vmem:[#allocation3 + $0xb8] sm:$0xff] 0.0
        %321 = vst [vmem:[#allocation3 + $0xc0] sm:$0xff] 0.0
        %322 = vst [vmem:[#allocation3 + $0xc8] sm:$0xff] 0.0
        %323 = vst [vmem:[#allocation3 + $0xd0] sm:$0xff] 0.0
        %324 = vst [vmem:[#allocation3 + $0xd8] sm:$0xff] 0.0
        %325 = vst [vmem:[#allocation3 + $0xe0] sm:$0xff] 0.0
        %326 = vst [vmem:[#allocation3 + $0xe8] sm:$0xff] 0.0
        %327 = vst [vmem:[#allocation3 + $0xf0] sm:$0xff] 0.0
        %328 = vst [vmem:[#allocation3 + $0xf8] sm:$0xff] 0.0
        %329 = vst [vmem:[#allocation4] sm:$0xff] 0.0
        %330 = vst [vmem:[#allocation4 + $0x8] sm:$0xff] 0.0
        %331 = vst [vmem:[#allocation4 + $0x10] sm:$0xff] 0.0
        %332 = vst [vmem:[#allocation4 + $0x18] sm:$0xff] 0.0
        %333 = vst [vmem:[#allocation4 + $0x20] sm:$0xff] 0.0
        %334 = vst [vmem:[#allocation4 + $0x28] sm:$0xff] 0.0
        %335 = vst [vmem:[#allocation4 + $0x30] sm:$0xff] 0.0
        %336 = vst [vmem:[#allocation4 + $0x38] sm:$0xff] 0.0
        %337 = vst [vmem:[#allocation4 + $0x40] sm:$0xff] 0.0
        %338 = vst [vmem:[#allocation4 + $0x48] sm:$0xff] 0.0
        %339 = vst [vmem:[#allocation4 + $0x50] sm:$0xff] 0.0
        %340 = vst [vmem:[#allocation4 + $0x58] sm:$0xff] 0.0
        %341 = vst [vmem:[#allocation4 + $0x60] sm:$0xff] 0.0
        %342 = vst [vmem:[#allocation4 + $0x68] sm:$0xff] 0.0
        %343 = vst [vmem:[#allocation4 + $0x70] sm:$0xff] 0.0
        %344 = vst [vmem:[#allocation4 + $0x78] sm:$0xff] 0.0
        %345 = vst [vmem:[#allocation4 + $0x80] sm:$0xff] 0.0
        %346 = vst [vmem:[#allocation4 + $0x88] sm:$0xff] 0.0
        %347 = vst [vmem:[#allocation4 + $0x90] sm:$0xff] 0.0
        %348 = vst [vmem:[#allocation4 + $0x98] sm:$0xff] 0.0
        %349 = vst [vmem:[#allocation4 + $0xa0] sm:$0xff] 0.0
        %350 = vst [vmem:[#allocation4 + $0xa8] sm:$0xff] 0.0
        %351 = vst [vmem:[#allocation4 + $0xb0] sm:$0xff] 0.0
        %352 = vst [vmem:[#allocation4 + $0xb8] sm:$0xff] 0.0
        %353 = vst [vmem:[#allocation4 + $0xc0] sm:$0xff] 0.0
        %354 = vst [vmem:[#allocation4 + $0xc8] sm:$0xff] 0.0
        %355 = vst [vmem:[#allocation4 + $0xd0] sm:$0xff] 0.0
        %356 = vst [vmem:[#allocation4 + $0xd8] sm:$0xff] 0.0
        %357 = vst [vmem:[#allocation4 + $0xe0] sm:$0xff] 0.0
        %358 = vst [vmem:[#allocation4 + $0xe8] sm:$0xff] 0.0
        %359 = vst [vmem:[#allocation4 + $0xf0] sm:$0xff] 0.0
        %360 = vst [vmem:[#allocation4 + $0xf8] sm:$0xff] 0.0
        %vm361 = vcmask 0
        %362 = vst.msk [vmem:[#allocation5] sm:$0x1] %vm361, 0.0
        %363 = vst.msk [vmem:[#allocation6] sm:$0x1] %vm361, 0.0
      $region36: #{mutual_information.1} parent=31 // pred_fallthru
        _
      %v364 = vlaneseq
      %v365 = vand.u32 %v364, 127
      %v366 = vadd.s32 %v365, 128
      %s367 = smul.u32 %s19, 256
      %s368 = ssub.s32 256, %s367
      %v369 = vstv %s368
      %vm370 = vcmp.lt.s32.totalorder %v365, %v369
      %vm371 = vcmp.lt.s32.totalorder %v366, %v369
      %v372 = vld [vmem:[%s2] sm:$0xff]
      %v373 = vld [vmem:[%s2 + $0x8] sm:$0xff]
      %v374 = vld [vmem:[%s2 + $0x10] sm:$0xff]
      %v375 = vld [vmem:[%s2 + $0x18] sm:$0xff]
      %v376 = vld [vmem:[%s2 + $0x20] sm:$0xff]
      %v377 = vld [vmem:[%s2 + $0x28] sm:$0xff]
      %v378 = vld [vmem:[%s2 + $0x30] sm:$0xff]
      %v379 = vld [vmem:[%s2 + $0x38] sm:$0xff]
      %v380 = vld [vmem:[%s2 + $0x40] sm:$0xff]
      %v381 = vld [vmem:[%s2 + $0x48] sm:$0xff]
      %v382 = vld [vmem:[%s2 + $0x50] sm:$0xff]
      %v383 = vld [vmem:[%s2 + $0x58] sm:$0xff]
      %v384 = vld [vmem:[%s2 + $0x60] sm:$0xff]
      %v385 = vld [vmem:[%s2 + $0x68] sm:$0xff]
      %v386 = vld [vmem:[%s2 + $0x70] sm:$0xff]
      %v387 = vld [vmem:[%s2 + $0x78] sm:$0xff]
      %v388 = vld [vmem:[%s2 + $0x80] sm:$0xff]
      %v389 = vld [vmem:[%s2 + $0x88] sm:$0xff]
      %v390 = vld [vmem:[%s2 + $0x90] sm:$0xff]
      %v391 = vld [vmem:[%s2 + $0x98] sm:$0xff]
      %v392 = vld [vmem:[%s2 + $0xa0] sm:$0xff]
      %v393 = vld [vmem:[%s2 + $0xa8] sm:$0xff]
      %v394 = vld [vmem:[%s2 + $0xb0] sm:$0xff]
      %v395 = vld [vmem:[%s2 + $0xb8] sm:$0xff]
      %v396 = vld [vmem:[%s2 + $0xc0] sm:$0xff]
      %v397 = vld [vmem:[%s2 + $0xc8] sm:$0xff]
      %v398 = vld [vmem:[%s2 + $0xd0] sm:$0xff]
      %v399 = vld [vmem:[%s2 + $0xd8] sm:$0xff]
      %v400 = vld [vmem:[%s2 + $0xe0] sm:$0xff]
      %v401 = vld [vmem:[%s2 + $0xe8] sm:$0xff]
      %v402 = vld [vmem:[%s2 + $0xf0] sm:$0xff]
      %v403 = vld [vmem:[%s2 + $0xf8] sm:$0xff]
      %v404 = vld [vmem:[%s2 + $0x100] sm:$0xff]
      %v405 = vld [vmem:[%s2 + $0x108] sm:$0xff]
      %v406 = vld [vmem:[%s2 + $0x110] sm:$0xff]
      %v407 = vld [vmem:[%s2 + $0x118] sm:$0xff]
      %v408 = vld [vmem:[%s2 + $0x120] sm:$0xff]
      %v409 = vld [vmem:[%s2 + $0x128] sm:$0xff]
      %v410 = vld [vmem:[%s2 + $0x130] sm:$0xff]
      %v411 = vld [vmem:[%s2 + $0x138] sm:$0xff]
      %v412 = vld [vmem:[%s2 + $0x140] sm:$0xff]
      %v413 = vld [vmem:[%s2 + $0x148] sm:$0xff]
      %v414 = vld [vmem:[%s2 + $0x150] sm:$0xff]
      %v415 = vld [vmem:[%s2 + $0x158] sm:$0xff]
      %v416 = vld [vmem:[%s2 + $0x160] sm:$0xff]
      %v417 = vld [vmem:[%s2 + $0x168] sm:$0xff]
      %v418 = vld [vmem:[%s2 + $0x170] sm:$0xff]
      %v419 = vld [vmem:[%s2 + $0x178] sm:$0xff]
      %v420 = vld [vmem:[%s2 + $0x180] sm:$0xff]
      %v421 = vld [vmem:[%s2 + $0x188] sm:$0xff]
      %v422 = vld [vmem:[%s2 + $0x190] sm:$0xff]
      %v423 = vld [vmem:[%s2 + $0x198] sm:$0xff]
      %v424 = vld [vmem:[%s2 + $0x1a0] sm:$0xff]
      %v425 = vld [vmem:[%s2 + $0x1a8] sm:$0xff]
      %v426 = vld [vmem:[%s2 + $0x1b0] sm:$0xff]
      %v427 = vld [vmem:[%s2 + $0x1b8] sm:$0xff]
      %v428 = vld [vmem:[%s2 + $0x1c0] sm:$0xff]
      %v429 = vld [vmem:[%s2 + $0x1c8] sm:$0xff]
      %v430 = vld [vmem:[%s2 + $0x1d0] sm:$0xff]
      %v431 = vld [vmem:[%s2 + $0x1d8] sm:$0xff]
      %v432 = vld [vmem:[%s2 + $0x1e0] sm:$0xff]
      %v433 = vld [vmem:[%s2 + $0x1e8] sm:$0xff]
      %v434 = vld [vmem:[%s2 + $0x1f0] sm:$0xff]
      %v435 = vld [vmem:[%s2 + $0x1f8] sm:$0xff]
      %v436 = vld [vmem:[%s212] sm:$0x3]
      %v437 = vadd.f32 %v436, 0.0001
      %v438 = vmul.f32 %v437, 255.0
      %v439 = vld [vmem:[#allocation5] sm:$0x1]
      %v441 = vlaneseq
      %v442 = vshrl.u32 %v441, 7
      %v443 = vsub.s32 0, %v442
      %v444 = vrot.slane %v438, %v443
      %v445 = vlaneseq
      %v446 = vshrl.u32 %v445, 7
      %v447 = vsub.s32 1, %v446
      %v448 = vrot.slane %v438, %v447
      %v451 = vsel %vm370, %v444, 0.0
      %v452 = vsel %vm371, %v448, 0.0
      %vm453 = vcmask 1040384
      %v454 = vsel %vm453, %v451, 0.0
      %v455 = vsel %vm453, %v452, 0.0
      %v456 = vadd.f32 %v454, %v455
      %457 = vadd.xlane.f32.xlu0 %v456
      %v458 = vpop.xlane.xlu0 %457
      %v459 = vrot.slane %v458, 4
      %v460 = vadd.f32 %v458, %v459
      %v461 = vrot.slane %v460, 2
      %v462 = vadd.f32 %v460, %v461
      %v463 = vrot.slane %v462, 1
      %v464 = vadd.f32 %v462, %v463
      %s465 = vtos %v464
      %v466 = vstv %s465
      %v467 = vadd.f32 %v439, %v466
      %vm468 = vcmask 0
      %469 = vst.msk [vmem:[#allocation5] sm:$0x1] %vm468, %v467
      %v470 = vmul.f32 %v438, 7.071068
      %v472 = vlaneseq
      %v473 = vshrl.u32 %v472, 7
      %v474 = vsub.s32 0, %v473
      %v475 = vrot.slane %v470, %v474
      %v476 = vlaneseq
      %v477 = vshrl.u32 %v476, 7
      %v478 = vsub.s32 1, %v477
      %v479 = vrot.slane %v470, %v478
      %v482 = vsel %vm370, %v475, 1e+15
      %v483 = vsel %vm371, %v479, 1e+15
      %v484 = vlaneseq
      %v485 = vshrl.u32 %v484, 7
      %v486 = vsub.s32 0, %v485
      %v487 = vrot.slane %v482, %v486
      %v488 = vlaneseq
      %v489 = vshrl.u32 %v488, 7
      %v490 = vsub.s32 0, %v489
      %v491 = vrot.slane %v483, %v490
      %v492 = vsub.f32 %v487, %v372
      %v493 = vsub.f32 %v491, %v373
      %v494 = vsub.f32 %v487, %v374
      %v495 = vsub.f32 %v491, %v375
      %v496 = vsub.f32 %v487, %v376
      %v497 = vsub.f32 %v491, %v377
      %v498 = vsub.f32 %v487, %v378
      %v499 = vsub.f32 %v491, %v379
      %v500 = vsub.f32 %v487, %v380
      %v501 = vsub.f32 %v491, %v381
      %v502 = vsub.f32 %v487, %v382
      %v503 = vsub.f32 %v491, %v383
      %v504 = vsub.f32 %v487, %v384
      %v505 = vsub.f32 %v491, %v385
      %v506 = vsub.f32 %v487, %v386
      %v507 = vsub.f32 %v491, %v387
      %v508 = vsub.f32 %v487, %v388
      %v509 = vsub.f32 %v491, %v389
      %v510 = vsub.f32 %v487, %v390
      %v511 = vsub.f32 %v491, %v391
      %v512 = vsub.f32 %v487, %v392
      %v513 = vsub.f32 %v491, %v393
      %v514 = vsub.f32 %v487, %v394
      %v515 = vsub.f32 %v491, %v395
      %v516 = vsub.f32 %v487, %v396
      %v517 = vsub.f32 %v491, %v397
      %v518 = vsub.f32 %v487, %v398
      %v519 = vsub.f32 %v491, %v399
      %v520 = vsub.f32 %v487, %v400
      %v521 = vsub.f32 %v491, %v401
      %v522 = vsub.f32 %v487, %v402
      %v523 = vsub.f32 %v491, %v403
      %v524 = vsub.f32 %v487, %v404
      %v525 = vsub.f32 %v491, %v405
      %v526 = vsub.f32 %v487, %v406
      %v527 = vsub.f32 %v491, %v407
      %v528 = vsub.f32 %v487, %v408
      %v529 = vsub.f32 %v491, %v409
      %v530 = vsub.f32 %v487, %v410
      %v531 = vsub.f32 %v491, %v411
      %v532 = vsub.f32 %v487, %v412
      %v533 = vsub.f32 %v491, %v413
      %v534 = vsub.f32 %v487, %v414
      %v535 = vsub.f32 %v491, %v415
      %v536 = vsub.f32 %v487, %v416
      %v537 = vsub.f32 %v491, %v417
      %v538 = vsub.f32 %v487, %v418
      %v539 = vsub.f32 %v491, %v419
      %v540 = vsub.f32 %v487, %v420
      %v541 = vsub.f32 %v491, %v421
      %v542 = vsub.f32 %v487, %v422
      %v543 = vsub.f32 %v491, %v423
      %v544 = vsub.f32 %v487, %v424
      %v545 = vsub.f32 %v491, %v425
      %v546 = vsub.f32 %v487, %v426
      %v547 = vsub.f32 %v491, %v427
      %v548 = vsub.f32 %v487, %v428
      %v549 = vsub.f32 %v491, %v429
      %v550 = vsub.f32 %v487, %v430
      %v551 = vsub.f32 %v491, %v431
      %v552 = vsub.f32 %v487, %v432
      %v553 = vsub.f32 %v491, %v433
      %v554 = vsub.f32 %v487, %v434
      %v555 = vsub.f32 %v491, %v435
      %v556 = vpack.c.bf16 %v494, %v492
      %v557 = vpack.c.bf16 %v495, %v493
      %v558 = vpack.c.bf16 %v498, %v496
      %v559 = vpack.c.bf16 %v499, %v497
      %v560 = vpack.c.bf16 %v502, %v500
      %v561 = vpack.c.bf16 %v503, %v501
      %v562 = vpack.c.bf16 %v506, %v504
      %v563 = vpack.c.bf16 %v507, %v505
      %v564 = vpack.c.bf16 %v510, %v508
      %v565 = vpack.c.bf16 %v511, %v509
      %v566 = vpack.c.bf16 %v514, %v512
      %v567 = vpack.c.bf16 %v515, %v513
      %v568 = vpack.c.bf16 %v518, %v516
      %v569 = vpack.c.bf16 %v519, %v517
      %v570 = vpack.c.bf16 %v522, %v520
      %v571 = vpack.c.bf16 %v523, %v521
      %v572 = vpack.c.bf16 %v526, %v524
      %v573 = vpack.c.bf16 %v527, %v525
      %v574 = vpack.c.bf16 %v530, %v528
      %v575 = vpack.c.bf16 %v531, %v529
      %v576 = vpack.c.bf16 %v534, %v532
      %v577 = vpack.c.bf16 %v535, %v533
      %v578 = vpack.c.bf16 %v538, %v536
      %v579 = vpack.c.bf16 %v539, %v537
      %v580 = vpack.c.bf16 %v542, %v540
      %v581 = vpack.c.bf16 %v543, %v541
      %v582 = vpack.c.bf16 %v546, %v544
      %v583 = vpack.c.bf16 %v547, %v545
      %v584 = vpack.c.bf16 %v550, %v548
      %v585 = vpack.c.bf16 %v551, %v549
      %v586 = vpack.c.bf16 %v554, %v552
      %v587 = vpack.c.bf16 %v555, %v553
      %v588 = vmul.bf16 %v556, %v556
      %v589 = vmul.bf16 %v557, %v557
      %v590 = vmul.bf16 %v558, %v558
      %v591 = vmul.bf16 %v559, %v559
      %v592 = vmul.bf16 %v560, %v560
      %v593 = vmul.bf16 %v561, %v561
      %v594 = vmul.bf16 %v562, %v562
      %v595 = vmul.bf16 %v563, %v563
      %v596 = vmul.bf16 %v564, %v564
      %v597 = vmul.bf16 %v565, %v565
      %v598 = vmul.bf16 %v566, %v566
      %v599 = vmul.bf16 %v567, %v567
      %v600 = vmul.bf16 %v568, %v568
      %v601 = vmul.bf16 %v569, %v569
      %v602 = vmul.bf16 %v570, %v570
      %v603 = vmul.bf16 %v571, %v571
      %v604 = vmul.bf16 %v572, %v572
      %v605 = vmul.bf16 %v573, %v573
      %v606 = vmul.bf16 %v574, %v574
      %v607 = vmul.bf16 %v575, %v575
      %v608 = vmul.bf16 %v576, %v576
      %v609 = vmul.bf16 %v577, %v577
      %v610 = vmul.bf16 %v578, %v578
      %v611 = vmul.bf16 %v579, %v579
      %v612 = vmul.bf16 %v580, %v580
      %v613 = vmul.bf16 %v581, %v581
      %v614 = vmul.bf16 %v582, %v582
      %v615 = vmul.bf16 %v583, %v583
      %v616 = vmul.bf16 %v584, %v584
      %v617 = vmul.bf16 %v585, %v585
      %v618 = vmul.bf16 %v586, %v586
      %v619 = vmul.bf16 %v587, %v587
      %v620 = vsub.bf16 0, %v588
      %v621 = vsub.bf16 0, %v589
      %v622 = vsub.bf16 0, %v590
      %v623 = vsub.bf16 0, %v591
      %v624 = vsub.bf16 0, %v592
      %v625 = vsub.bf16 0, %v593
      %v626 = vsub.bf16 0, %v594
      %v627 = vsub.bf16 0, %v595
      %v628 = vsub.bf16 0, %v596
      %v629 = vsub.bf16 0, %v597
      %v630 = vsub.bf16 0, %v598
      %v631 = vsub.bf16 0, %v599
      %v632 = vsub.bf16 0, %v600
      %v633 = vsub.bf16 0, %v601
      %v634 = vsub.bf16 0, %v602
      %v635 = vsub.bf16 0, %v603
      %v636 = vsub.bf16 0, %v604
      %v637 = vsub.bf16 0, %v605
      %v638 = vsub.bf16 0, %v606
      %v639 = vsub.bf16 0, %v607
      %v640 = vsub.bf16 0, %v608
      %v641 = vsub.bf16 0, %v609
      %v642 = vsub.bf16 0, %v610
      %v643 = vsub.bf16 0, %v611
      %v644 = vsub.bf16 0, %v612
      %v645 = vsub.bf16 0, %v613
      %v646 = vsub.bf16 0, %v614
      %v647 = vsub.bf16 0, %v615
      %v648 = vsub.bf16 0, %v616
      %v649 = vsub.bf16 0, %v617
      %v650 = vsub.bf16 0, %v618
      %v651 = vsub.bf16 0, %v619
      %v653 = vmul.bf16 %v620, 1069105081
      %v654 = vpow.bf16.pop %v653
      %v656 = vmul.bf16 %v621, 1069105081
      %v657 = vpow.bf16.pop %v656
      %v659 = vmul.bf16 %v622, 1069105081
      %v660 = vpow.bf16.pop %v659
      %v662 = vmul.bf16 %v623, 1069105081
      %v663 = vpow.bf16.pop %v662
      %v665 = vmul.bf16 %v624, 1069105081
      %v666 = vpow.bf16.pop %v665
      %v668 = vmul.bf16 %v625, 1069105081
      %v669 = vpow.bf16.pop %v668
      %v671 = vmul.bf16 %v626, 1069105081
      %v672 = vpow.bf16.pop %v671
      %v674 = vmul.bf16 %v627, 1069105081
      %v675 = vpow.bf16.pop %v674
      %v677 = vmul.bf16 %v628, 1069105081
      %v678 = vpow.bf16.pop %v677
      %v680 = vmul.bf16 %v629, 1069105081
      %v681 = vpow.bf16.pop %v680
      %v683 = vmul.bf16 %v630, 1069105081
      %v684 = vpow.bf16.pop %v683
      %v686 = vmul.bf16 %v631, 1069105081
      %v687 = vpow.bf16.pop %v686
      %v689 = vmul.bf16 %v632, 1069105081
      %v690 = vpow.bf16.pop %v689
      %v692 = vmul.bf16 %v633, 1069105081
      %v693 = vpow.bf16.pop %v692
      %v695 = vmul.bf16 %v634, 1069105081
      %v696 = vpow.bf16.pop %v695
      %v698 = vmul.bf16 %v635, 1069105081
      %v699 = vpow.bf16.pop %v698
      %v701 = vmul.bf16 %v636, 1069105081
      %v702 = vpow.bf16.pop %v701
      %v704 = vmul.bf16 %v637, 1069105081
      %v705 = vpow.bf16.pop %v704
      %v707 = vmul.bf16 %v638, 1069105081
      %v708 = vpow.bf16.pop %v707
      %v710 = vmul.bf16 %v639, 1069105081
      %v711 = vpow.bf16.pop %v710
      %v713 = vmul.bf16 %v640, 1069105081
      %v714 = vpow.bf16.pop %v713
      %v716 = vmul.bf16 %v641, 1069105081
      %v717 = vpow.bf16.pop %v716
      %v719 = vmul.bf16 %v642, 1069105081
      %v720 = vpow.bf16.pop %v719
      %v722 = vmul.bf16 %v643, 1069105081
      %v723 = vpow.bf16.pop %v722
      %v725 = vmul.bf16 %v644, 1069105081
      %v726 = vpow.bf16.pop %v725
      %v728 = vmul.bf16 %v645, 1069105081
      %v729 = vpow.bf16.pop %v728
      %v731 = vmul.bf16 %v646, 1069105081
      %v732 = vpow.bf16.pop %v731
      %v734 = vmul.bf16 %v647, 1069105081
      %v735 = vpow.bf16.pop %v734
      %v737 = vmul.bf16 %v648, 1069105081
      %v738 = vpow.bf16.pop %v737
      %v740 = vmul.bf16 %v649, 1069105081
      %v741 = vpow.bf16.pop %v740
      %v743 = vmul.bf16 %v650, 1069105081
      %v744 = vpow.bf16.pop %v743
      %v746 = vmul.bf16 %v651, 1069105081
      %v747 = vpow.bf16.pop %v746
      %v748 = vld [vmem:[%s221] sm:$0x3]
      %v749 = vadd.f32 %v748, 0.0001
      %v750 = vmul.f32 %v749, 255.0
      %v751 = vld [vmem:[#allocation6] sm:$0x1]
      %v753 = vlaneseq
      %v754 = vshrl.u32 %v753, 7
      %v755 = vsub.s32 0, %v754
      %v756 = vrot.slane %v750, %v755
      %v757 = vlaneseq
      %v758 = vshrl.u32 %v757, 7
      %v759 = vsub.s32 1, %v758
      %v760 = vrot.slane %v750, %v759
      %v763 = vsel %vm370, %v756, 0.0
      %v764 = vsel %vm371, %v760, 0.0
      %v765 = vsel %vm453, %v763, 0.0
      %v766 = vsel %vm453, %v764, 0.0
      %v767 = vadd.f32 %v765, %v766
      %768 = vadd.xlane.f32.xlu0 %v767
      %v769 = vpop.xlane.xlu0 %768
      %v770 = vrot.slane %v769, 4
      %v771 = vadd.f32 %v769, %v770
      %v772 = vrot.slane %v771, 2
      %v773 = vadd.f32 %v771, %v772
      %v774 = vrot.slane %v773, 1
      %v775 = vadd.f32 %v773, %v774
      %s776 = vtos %v775
      %v777 = vstv %s776
      %v778 = vadd.f32 %v751, %v777
      %779 = vst.msk [vmem:[#allocation6] sm:$0x1] %vm468, %v778
      %v780 = vmul.f32 %v750, 7.071068
      %v782 = vlaneseq
      %v783 = vshrl.u32 %v782, 7
      %v784 = vsub.s32 0, %v783
      %v785 = vrot.slane %v780, %v784
      %v786 = vlaneseq
      %v787 = vshrl.u32 %v786, 7
      %v788 = vsub.s32 1, %v787
      %v789 = vrot.slane %v780, %v788
      %v792 = vsel %vm370, %v785, 1e+15
      %v793 = vsel %vm371, %v789, 1e+15
      %v794 = vlaneseq
      %v795 = vshrl.u32 %v794, 7
      %v796 = vsub.s32 0, %v795
      %v797 = vrot.slane %v792, %v796
      %v798 = vlaneseq
      %v799 = vshrl.u32 %v798, 7
      %v800 = vsub.s32 0, %v799
      %v801 = vrot.slane %v793, %v800
      %v802 = vsub.f32 %v797, %v372
      %v803 = vsub.f32 %v801, %v373
      %v804 = vsub.f32 %v797, %v374
      %v805 = vsub.f32 %v801, %v375
      %v806 = vsub.f32 %v797, %v376
      %v807 = vsub.f32 %v801, %v377
      %v808 = vsub.f32 %v797, %v378
      %v809 = vsub.f32 %v801, %v379
      %v810 = vsub.f32 %v797, %v380
      %v811 = vsub.f32 %v801, %v381
      %v812 = vsub.f32 %v797, %v382
      %v813 = vsub.f32 %v801, %v383
      %v814 = vsub.f32 %v797, %v384
      %v815 = vsub.f32 %v801, %v385
      %v816 = vsub.f32 %v797, %v386
      %v817 = vsub.f32 %v801, %v387
      %v818 = vsub.f32 %v797, %v388
      %v819 = vsub.f32 %v801, %v389
      %v820 = vsub.f32 %v797, %v390
      %v821 = vsub.f32 %v801, %v391
      %v822 = vsub.f32 %v797, %v392
      %v823 = vsub.f32 %v801, %v393
      %v824 = vsub.f32 %v797, %v394
      %v825 = vsub.f32 %v801, %v395
      %v826 = vsub.f32 %v797, %v396
      %v827 = vsub.f32 %v801, %v397
      %v828 = vsub.f32 %v797, %v398
      %v829 = vsub.f32 %v801, %v399
      %v830 = vsub.f32 %v797, %v400
      %v831 = vsub.f32 %v801, %v401
      %v832 = vsub.f32 %v797, %v402
      %v833 = vsub.f32 %v801, %v403
      %v834 = vsub.f32 %v797, %v404
      %v835 = vsub.f32 %v801, %v405
      %v836 = vsub.f32 %v797, %v406
      %v837 = vsub.f32 %v801, %v407
      %v838 = vsub.f32 %v797, %v408
      %v839 = vsub.f32 %v801, %v409
      %v840 = vsub.f32 %v797, %v410
      %v841 = vsub.f32 %v801, %v411
      %v842 = vsub.f32 %v797, %v412
      %v843 = vsub.f32 %v801, %v413
      %v844 = vsub.f32 %v797, %v414
      %v845 = vsub.f32 %v801, %v415
      %v846 = vsub.f32 %v797, %v416
      %v847 = vsub.f32 %v801, %v417
      %v848 = vsub.f32 %v797, %v418
      %v849 = vsub.f32 %v801, %v419
      %v850 = vsub.f32 %v797, %v420
      %v851 = vsub.f32 %v801, %v421
      %v852 = vsub.f32 %v797, %v422
      %v853 = vsub.f32 %v801, %v423
      %v854 = vsub.f32 %v797, %v424
      %v855 = vsub.f32 %v801, %v425
      %v856 = vsub.f32 %v797, %v426
      %v857 = vsub.f32 %v801, %v427
      %v858 = vsub.f32 %v797, %v428
      %v859 = vsub.f32 %v801, %v429
      %v860 = vsub.f32 %v797, %v430
      %v861 = vsub.f32 %v801, %v431
      %v862 = vsub.f32 %v797, %v432
      %v863 = vsub.f32 %v801, %v433
      %v864 = vsub.f32 %v797, %v434
      %v865 = vsub.f32 %v801, %v435
      %v866 = vpack.c.bf16 %v804, %v802
      %v867 = vpack.c.bf16 %v805, %v803
      %v868 = vpack.c.bf16 %v808, %v806
      %v869 = vpack.c.bf16 %v809, %v807
      %v870 = vpack.c.bf16 %v812, %v810
      %v871 = vpack.c.bf16 %v813, %v811
      %v872 = vpack.c.bf16 %v816, %v814
      %v873 = vpack.c.bf16 %v817, %v815
      %v874 = vpack.c.bf16 %v820, %v818
      %v875 = vpack.c.bf16 %v821, %v819
      %v876 = vpack.c.bf16 %v824, %v822
      %v877 = vpack.c.bf16 %v825, %v823
      %v878 = vpack.c.bf16 %v828, %v826
      %v879 = vpack.c.bf16 %v829, %v827
      %v880 = vpack.c.bf16 %v832, %v830
      %v881 = vpack.c.bf16 %v833, %v831
      %v882 = vpack.c.bf16 %v836, %v834
      %v883 = vpack.c.bf16 %v837, %v835
      %v884 = vpack.c.bf16 %v840, %v838
      %v885 = vpack.c.bf16 %v841, %v839
      %v886 = vpack.c.bf16 %v844, %v842
      %v887 = vpack.c.bf16 %v845, %v843
      %v888 = vpack.c.bf16 %v848, %v846
      %v889 = vpack.c.bf16 %v849, %v847
      %v890 = vpack.c.bf16 %v852, %v850
      %v891 = vpack.c.bf16 %v853, %v851
      %v892 = vpack.c.bf16 %v856, %v854
      %v893 = vpack.c.bf16 %v857, %v855
      %v894 = vpack.c.bf16 %v860, %v858
      %v895 = vpack.c.bf16 %v861, %v859
      %v896 = vpack.c.bf16 %v864, %v862
      %v897 = vpack.c.bf16 %v865, %v863
      %v898 = vmul.bf16 %v866, %v866
      %v899 = vmul.bf16 %v867, %v867
      %v900 = vmul.bf16 %v868, %v868
      %v901 = vmul.bf16 %v869, %v869
      %v902 = vmul.bf16 %v870, %v870
      %v903 = vmul.bf16 %v871, %v871
      %v904 = vmul.bf16 %v872, %v872
      %v905 = vmul.bf16 %v873, %v873
      %v906 = vmul.bf16 %v874, %v874
      %v907 = vmul.bf16 %v875, %v875
      %v908 = vmul.bf16 %v876, %v876
      %v909 = vmul.bf16 %v877, %v877
      %v910 = vmul.bf16 %v878, %v878
      %v911 = vmul.bf16 %v879, %v879
      %v912 = vmul.bf16 %v880, %v880
      %v913 = vmul.bf16 %v881, %v881
      %v914 = vmul.bf16 %v882, %v882
      %v915 = vmul.bf16 %v883, %v883
      %v916 = vmul.bf16 %v884, %v884
      %v917 = vmul.bf16 %v885, %v885
      %v918 = vmul.bf16 %v886, %v886
      %v919 = vmul.bf16 %v887, %v887
      %v920 = vmul.bf16 %v888, %v888
      %v921 = vmul.bf16 %v889, %v889
      %v922 = vmul.bf16 %v890, %v890
      %v923 = vmul.bf16 %v891, %v891
      %v924 = vmul.bf16 %v892, %v892
      %v925 = vmul.bf16 %v893, %v893
      %v926 = vmul.bf16 %v894, %v894
      %v927 = vmul.bf16 %v895, %v895
      %v928 = vmul.bf16 %v896, %v896
      %v929 = vmul.bf16 %v897, %v897
      %v930 = vsub.bf16 0, %v898
      %v931 = vsub.bf16 0, %v899
      %v932 = vsub.bf16 0, %v900
      %v933 = vsub.bf16 0, %v901
      %v934 = vsub.bf16 0, %v902
      %v935 = vsub.bf16 0, %v903
      %v936 = vsub.bf16 0, %v904
      %v937 = vsub.bf16 0, %v905
      %v938 = vsub.bf16 0, %v906
      %v939 = vsub.bf16 0, %v907
      %v940 = vsub.bf16 0, %v908
      %v941 = vsub.bf16 0, %v909
      %v942 = vsub.bf16 0, %v910
      %v943 = vsub.bf16 0, %v911
      %v944 = vsub.bf16 0, %v912
      %v945 = vsub.bf16 0, %v913
      %v946 = vsub.bf16 0, %v914
      %v947 = vsub.bf16 0, %v915
      %v948 = vsub.bf16 0, %v916
      %v949 = vsub.bf16 0, %v917
      %v950 = vsub.bf16 0, %v918
      %v951 = vsub.bf16 0, %v919
      %v952 = vsub.bf16 0, %v920
      %v953 = vsub.bf16 0, %v921
      %v954 = vsub.bf16 0, %v922
      %v955 = vsub.bf16 0, %v923
      %v956 = vsub.bf16 0, %v924
      %v957 = vsub.bf16 0, %v925
      %v958 = vsub.bf16 0, %v926
      %v959 = vsub.bf16 0, %v927
      %v960 = vsub.bf16 0, %v928
      %v961 = vsub.bf16 0, %v929
      %v963 = vmul.bf16 %v930, 1069105081
      %v964 = vpow.bf16.pop %v963
      %v966 = vmul.bf16 %v931, 1069105081
      %v967 = vpow.bf16.pop %v966
      %v969 = vmul.bf16 %v932, 1069105081
      %v970 = vpow.bf16.pop %v969
      %v972 = vmul.bf16 %v933, 1069105081
      %v973 = vpow.bf16.pop %v972
      %v975 = vmul.bf16 %v934, 1069105081
      %v976 = vpow.bf16.pop %v975
      %v978 = vmul.bf16 %v935, 1069105081
      %v979 = vpow.bf16.pop %v978
      %v981 = vmul.bf16 %v936, 1069105081
      %v982 = vpow.bf16.pop %v981
      %v984 = vmul.bf16 %v937, 1069105081
      %v985 = vpow.bf16.pop %v984
      %v987 = vmul.bf16 %v938, 1069105081
      %v988 = vpow.bf16.pop %v987
      %v990 = vmul.bf16 %v939, 1069105081
      %v991 = vpow.bf16.pop %v990
      %v993 = vmul.bf16 %v940, 1069105081
      %v994 = vpow.bf16.pop %v993
      %v996 = vmul.bf16 %v941, 1069105081
      %v997 = vpow.bf16.pop %v996
      %v999 = vmul.bf16 %v942, 1069105081
      %v1000 = vpow.bf16.pop %v999
      %v1002 = vmul.bf16 %v943, 1069105081
      %v1003 = vpow.bf16.pop %v1002
      %v1005 = vmul.bf16 %v944, 1069105081
      %v1006 = vpow.bf16.pop %v1005
      %v1008 = vmul.bf16 %v945, 1069105081
      %v1009 = vpow.bf16.pop %v1008
      %v1011 = vmul.bf16 %v946, 1069105081
      %v1012 = vpow.bf16.pop %v1011
      %v1014 = vmul.bf16 %v947, 1069105081
      %v1015 = vpow.bf16.pop %v1014
      %v1017 = vmul.bf16 %v948, 1069105081
      %v1018 = vpow.bf16.pop %v1017
      %v1020 = vmul.bf16 %v949, 1069105081
      %v1021 = vpow.bf16.pop %v1020
      %v1023 = vmul.bf16 %v950, 1069105081
      %v1024 = vpow.bf16.pop %v1023
      %v1026 = vmul.bf16 %v951, 1069105081
      %v1027 = vpow.bf16.pop %v1026
      %v1029 = vmul.bf16 %v952, 1069105081
      %v1030 = vpow.bf16.pop %v1029
      %v1032 = vmul.bf16 %v953, 1069105081
      %v1033 = vpow.bf16.pop %v1032
      %v1035 = vmul.bf16 %v954, 1069105081
      %v1036 = vpow.bf16.pop %v1035
      %v1038 = vmul.bf16 %v955, 1069105081
      %v1039 = vpow.bf16.pop %v1038
      %v1041 = vmul.bf16 %v956, 1069105081
      %v1042 = vpow.bf16.pop %v1041
      %v1044 = vmul.bf16 %v957, 1069105081
      %v1045 = vpow.bf16.pop %v1044
      %v1047 = vmul.bf16 %v958, 1069105081
      %v1048 = vpow.bf16.pop %v1047
      %v1050 = vmul.bf16 %v959, 1069105081
      %v1051 = vpow.bf16.pop %v1050
      %v1053 = vmul.bf16 %v960, 1069105081
      %v1054 = vpow.bf16.pop %v1053
      %v1056 = vmul.bf16 %v961, 1069105081
      %v1057 = vpow.bf16.pop %v1056
      %v1058 = vld [vmem:[#allocation3] sm:$0xff]
      %v1059 = vld [vmem:[#allocation3 + $0x8] sm:$0xff]
      %v1060 = vld [vmem:[#allocation3 + $0x10] sm:$0xff]
      %v1061 = vld [vmem:[#allocation3 + $0x18] sm:$0xff]
      %v1062 = vld [vmem:[#allocation3 + $0x20] sm:$0xff]
      %v1063 = vld [vmem:[#allocation3 + $0x28] sm:$0xff]
      %v1064 = vld [vmem:[#allocation3 + $0x30] sm:$0xff]
      %v1065 = vld [vmem:[#allocation3 + $0x38] sm:$0xff]
      %v1066 = vld [vmem:[#allocation3 + $0x40] sm:$0xff]
      %v1067 = vld [vmem:[#allocation3 + $0x48] sm:$0xff]
      %v1068 = vld [vmem:[#allocation3 + $0x50] sm:$0xff]
      %v1069 = vld [vmem:[#allocation3 + $0x58] sm:$0xff]
      %v1070 = vld [vmem:[#allocation3 + $0x60] sm:$0xff]
      %v1071 = vld [vmem:[#allocation3 + $0x68] sm:$0xff]
      %v1072 = vld [vmem:[#allocation3 + $0x70] sm:$0xff]
      %v1073 = vld [vmem:[#allocation3 + $0x78] sm:$0xff]
      %v1074 = vld [vmem:[#allocation3 + $0x80] sm:$0xff]
      %v1075 = vld [vmem:[#allocation3 + $0x88] sm:$0xff]
      %v1076 = vld [vmem:[#allocation3 + $0x90] sm:$0xff]
      %v1077 = vld [vmem:[#allocation3 + $0x98] sm:$0xff]
      %v1078 = vld [vmem:[#allocation3 + $0xa0] sm:$0xff]
      %v1079 = vld [vmem:[#allocation3 + $0xa8] sm:$0xff]
      %v1080 = vld [vmem:[#allocation3 + $0xb0] sm:$0xff]
      %v1081 = vld [vmem:[#allocation3 + $0xb8] sm:$0xff]
      %v1082 = vld [vmem:[#allocation3 + $0xc0] sm:$0xff]
      %v1083 = vld [vmem:[#allocation3 + $0xc8] sm:$0xff]
      %v1084 = vld [vmem:[#allocation3 + $0xd0] sm:$0xff]
      %v1085 = vld [vmem:[#allocation3 + $0xd8] sm:$0xff]
      %v1086 = vld [vmem:[#allocation3 + $0xe0] sm:$0xff]
      %v1087 = vld [vmem:[#allocation3 + $0xe8] sm:$0xff]
      %v1088 = vld [vmem:[#allocation3 + $0xf0] sm:$0xff]
      %v1089 = vld [vmem:[#allocation3 + $0xf8] sm:$0xff]
      %1090 = vmatprep.subr.bf16.mxu0 1065369472
      %1091 = vmatpush1.bf16.xpose.msra.mxu0 1065369472
      %1092 = vmatprep.subr.bf16.mxu0 1065369472
      %1093 = vmatpush1.bf16.xpose.msra.mxu0 1065369472
      %1094 = vmatprep.subr.bf16.mxu0 1065369472
      %1095 = vmatpush1.bf16.xpose.msra.mxu0 1065369472
      %1096 = vmatprep.subr.bf16.mxu0 1065369472
      %1097 = vmatpush1.bf16.xpose.msra.mxu0 1065369472
      %1098 = vmatprep.subr.bf16.mxu0 1065369472
      %1099 = vmatpush1.bf16.xpose.msra.mxu0 1065369472
      %1100 = vmatprep.subr.bf16.mxu0 1065369472
      %1101 = vmatpush1.bf16.xpose.msra.mxu0 1065369472
      %1102 = vmatprep.subr.bf16.mxu0 1065369472
      %1103 = vmatpush1.bf16.xpose.msra.mxu0 1065369472
      %1104 = vmatprep.subr.bf16.mxu0 1065369472
      %1105 = vmatpush1.bf16.xpose.msra.mxu0 1065369472
      %1106 = vmatprep.subr.bf16.mxu0 0
      %1107 = vmatpush2.bf16.xpose.msra.mxu0 0
      %1108 = vmatprep.subr.bf16.mxu0 0
      %1109 = vmatpush2.bf16.xpose.msra.mxu0 0
      %1110 = vmatprep.subr.bf16.mxu0 0
      %1111 = vmatpush2.bf16.xpose.msra.mxu0 0
      %1112 = vmatprep.subr.bf16.mxu0 0
      %1113 = vmatpush2.bf16.xpose.msra.mxu0 0
      %1114 = vmatprep.subr.bf16.mxu0 0
      %1115 = vmatpush2.bf16.xpose.msra.mxu0 0
      %1116 = vmatprep.subr.bf16.mxu0 0
      %1117 = vmatpush2.bf16.xpose.msra.mxu0 0
      %1118 = vmatprep.subr.bf16.mxu0 0
      %1119 = vmatpush2.bf16.xpose.msra.mxu0 0
      %1120 = vmatprep.subr.bf16.mxu0 0
      %1121 = vmatpush2.bf16.xpose.msra.mxu0 0
      %1122 = vmatprep.mubr.bf16.mxu0 %v657
      %1123 = vmatmul.mubr.bf16.gmra.mxu0 %v654
      %v1124 = vpop.f32.mrf.mxu0
      %v1125 = vadd.f32 0.0, %v1124
      %v1126 = vpop.f32.mrf.mxu0
      %v1127 = vpop.f32.mrf.mxu0
      %v1128 = vadd.f32 0.0, %v1127
      %v1129 = vpop.f32.mrf.mxu0
      %1130 = vmatprep.mubr.bf16.mxu0 %v663
      %1131 = vmatmul.mubr.bf16.gmra.mxu0 %v660
      %v1132 = vpop.f32.mrf.mxu0
      %v1133 = vadd.f32 0.0, %v1132
      %v1134 = vpop.f32.mrf.mxu0
      %v1135 = vpop.f32.mrf.mxu0
      %v1136 = vadd.f32 0.0, %v1135
      %v1137 = vpop.f32.mrf.mxu0
      %1138 = vmatprep.mubr.bf16.mxu0 %v669
      %1139 = vmatmul.mubr.bf16.gmra.mxu0 %v666
      %v1140 = vpop.f32.mrf.mxu0
      %v1141 = vadd.f32 0.0, %v1140
      %v1142 = vpop.f32.mrf.mxu0
      %v1143 = vpop.f32.mrf.mxu0
      %v1144 = vadd.f32 0.0, %v1143
      %v1145 = vpop.f32.mrf.mxu0
      %1146 = vmatprep.mubr.bf16.mxu0 %v675
      %1147 = vmatmul.mubr.bf16.gmra.mxu0 %v672
      %v1148 = vpop.f32.mrf.mxu0
      %v1149 = vadd.f32 0.0, %v1148
      %v1150 = vpop.f32.mrf.mxu0
      %v1151 = vpop.f32.mrf.mxu0
      %v1152 = vadd.f32 0.0, %v1151
      %v1153 = vpop.f32.mrf.mxu0
      %1154 = vmatprep.mubr.bf16.mxu0 %v681
      %1155 = vmatmul.mubr.bf16.gmra.mxu0 %v678
      %v1156 = vpop.f32.mrf.mxu0
      %v1157 = vadd.f32 0.0, %v1156
      %v1158 = vpop.f32.mrf.mxu0
      %v1159 = vpop.f32.mrf.mxu0
      %v1160 = vadd.f32 0.0, %v1159
      %v1161 = vpop.f32.mrf.mxu0
      %1162 = vmatprep.mubr.bf16.mxu0 %v687
      %1163 = vmatmul.mubr.bf16.gmra.mxu0 %v684
      %v1164 = vpop.f32.mrf.mxu0
      %v1165 = vadd.f32 0.0, %v1164
      %v1166 = vpop.f32.mrf.mxu0
      %v1167 = vpop.f32.mrf.mxu0
      %v1168 = vadd.f32 0.0, %v1167
      %v1169 = vpop.f32.mrf.mxu0
      %1170 = vmatprep.mubr.bf16.mxu0 %v693
      %1171 = vmatmul.mubr.bf16.gmra.mxu0 %v690
      %v1172 = vpop.f32.mrf.mxu0
      %v1173 = vadd.f32 0.0, %v1172
      %v1174 = vpop.f32.mrf.mxu0
      %v1175 = vpop.f32.mrf.mxu0
      %v1176 = vadd.f32 0.0, %v1175
      %v1177 = vpop.f32.mrf.mxu0
      %1178 = vmatprep.mubr.bf16.mxu0 %v699
      %1179 = vmatmul.mubr.bf16.gmra.mxu0 %v696
      %v1180 = vpop.f32.mrf.mxu0
      %v1181 = vadd.f32 0.0, %v1180
      %v1182 = vpop.f32.mrf.mxu0
      %v1183 = vpop.f32.mrf.mxu0
      %v1184 = vadd.f32 0.0, %v1183
      %v1185 = vpop.f32.mrf.mxu0
      %1186 = vmatprep.mubr.bf16.mxu0 %v705
      %1187 = vmatmul.mubr.bf16.gmra.mxu0 %v702
      %v1188 = vpop.f32.mrf.mxu0
      %v1189 = vadd.f32 0.0, %v1188
      %v1190 = vpop.f32.mrf.mxu0
      %v1191 = vpop.f32.mrf.mxu0
      %v1192 = vadd.f32 0.0, %v1191
      %v1193 = vpop.f32.mrf.mxu0
      %1194 = vmatprep.mubr.bf16.mxu0 %v711
      %1195 = vmatmul.mubr.bf16.gmra.mxu0 %v708
      %v1196 = vpop.f32.mrf.mxu0
      %v1197 = vadd.f32 0.0, %v1196
      %v1198 = vpop.f32.mrf.mxu0
      %v1199 = vpop.f32.mrf.mxu0
      %v1200 = vadd.f32 0.0, %v1199
      %v1201 = vpop.f32.mrf.mxu0
      %1202 = vmatprep.mubr.bf16.mxu0 %v717
      %1203 = vmatmul.mubr.bf16.gmra.mxu0 %v714
      %v1204 = vpop.f32.mrf.mxu0
      %v1205 = vadd.f32 0.0, %v1204
      %v1206 = vpop.f32.mrf.mxu0
      %v1207 = vpop.f32.mrf.mxu0
      %v1208 = vadd.f32 0.0, %v1207
      %v1209 = vpop.f32.mrf.mxu0
      %1210 = vmatprep.mubr.bf16.mxu0 %v723
      %1211 = vmatmul.mubr.bf16.gmra.mxu0 %v720
      %v1212 = vpop.f32.mrf.mxu0
      %v1213 = vadd.f32 0.0, %v1212
      %v1214 = vpop.f32.mrf.mxu0
      %v1215 = vpop.f32.mrf.mxu0
      %v1216 = vadd.f32 0.0, %v1215
      %v1217 = vpop.f32.mrf.mxu0
      %1218 = vmatprep.mubr.bf16.mxu0 %v729
      %1219 = vmatmul.mubr.bf16.gmra.mxu0 %v726
      %v1220 = vpop.f32.mrf.mxu0
      %v1221 = vadd.f32 0.0, %v1220
      %v1222 = vpop.f32.mrf.mxu0
      %v1223 = vpop.f32.mrf.mxu0
      %v1224 = vadd.f32 0.0, %v1223
      %v1225 = vpop.f32.mrf.mxu0
      %1226 = vmatprep.mubr.bf16.mxu0 %v735
      %1227 = vmatmul.mubr.bf16.gmra.mxu0 %v732
      %v1228 = vpop.f32.mrf.mxu0
      %v1229 = vadd.f32 0.0, %v1228
      %v1230 = vpop.f32.mrf.mxu0
      %v1231 = vpop.f32.mrf.mxu0
      %v1232 = vadd.f32 0.0, %v1231
      %v1233 = vpop.f32.mrf.mxu0
      %1234 = vmatprep.mubr.bf16.mxu0 %v741
      %1235 = vmatmul.mubr.bf16.gmra.mxu0 %v738
      %v1236 = vpop.f32.mrf.mxu0
      %v1237 = vadd.f32 0.0, %v1236
      %v1238 = vpop.f32.mrf.mxu0
      %v1239 = vpop.f32.mrf.mxu0
      %v1240 = vadd.f32 0.0, %v1239
      %v1241 = vpop.f32.mrf.mxu0
      %1242 = vmatprep.mubr.bf16.mxu0 %v747
      %1243 = vmatmul.mubr.bf16.gmra.mxu0 %v744
      %v1244 = vpop.f32.mrf.mxu0
      %v1245 = vadd.f32 0.0, %v1244
      %v1246 = vpop.f32.mrf.mxu0
      %v1247 = vpop.f32.mrf.mxu0
      %v1248 = vadd.f32 0.0, %v1247
      %v1249 = vpop.f32.mrf.mxu0
      %1250 = vdwg.mxu0
      %v1251 = vadd.f32 %v1058, %v1125
      %v1252 = vadd.f32 %v1059, %v1128
      %v1253 = vadd.f32 %v1060, %v1133
      %v1254 = vadd.f32 %v1061, %v1136
      %v1255 = vadd.f32 %v1062, %v1141
      %v1256 = vadd.f32 %v1063, %v1144
      %v1257 = vadd.f32 %v1064, %v1149
      %v1258 = vadd.f32 %v1065, %v1152
      %v1259 = vadd.f32 %v1066, %v1157
      %v1260 = vadd.f32 %v1067, %v1160
      %v1261 = vadd.f32 %v1068, %v1165
      %v1262 = vadd.f32 %v1069, %v1168
      %v1263 = vadd.f32 %v1070, %v1173
      %v1264 = vadd.f32 %v1071, %v1176
      %v1265 = vadd.f32 %v1072, %v1181
      %v1266 = vadd.f32 %v1073, %v1184
      %v1267 = vadd.f32 %v1074, %v1189
      %v1268 = vadd.f32 %v1075, %v1192
      %v1269 = vadd.f32 %v1076, %v1197
      %v1270 = vadd.f32 %v1077, %v1200
      %v1271 = vadd.f32 %v1078, %v1205
      %v1272 = vadd.f32 %v1079, %v1208
      %v1273 = vadd.f32 %v1080, %v1213
      %v1274 = vadd.f32 %v1081, %v1216
      %v1275 = vadd.f32 %v1082, %v1221
      %v1276 = vadd.f32 %v1083, %v1224
      %v1277 = vadd.f32 %v1084, %v1229
      %v1278 = vadd.f32 %v1085, %v1232
      %v1279 = vadd.f32 %v1086, %v1237
      %v1280 = vadd.f32 %v1087, %v1240
      %v1281 = vadd.f32 %v1088, %v1245
      %v1282 = vadd.f32 %v1089, %v1248
      %1283 = vst [vmem:[#allocation3] sm:$0xff] %v1251
      %1284 = vst [vmem:[#allocation3 + $0x8] sm:$0xff] %v1252
      %1285 = vst [vmem:[#allocation3 + $0x10] sm:$0xff] %v1253
      %1286 = vst [vmem:[#allocation3 + $0x18] sm:$0xff] %v1254
      %1287 = vst [vmem:[#allocation3 + $0x20] sm:$0xff] %v1255
      %1288 = vst [vmem:[#allocation3 + $0x28] sm:$0xff] %v1256
      %1289 = vst [vmem:[#allocation3 + $0x30] sm:$0xff] %v1257
      %1290 = vst [vmem:[#allocation3 + $0x38] sm:$0xff] %v1258
      %1291 = vst [vmem:[#allocation3 + $0x40] sm:$0xff] %v1259
      %1292 = vst [vmem:[#allocation3 + $0x48] sm:$0xff] %v1260
      %1293 = vst [vmem:[#allocation3 + $0x50] sm:$0xff] %v1261
      %1294 = vst [vmem:[#allocation3 + $0x58] sm:$0xff] %v1262
      %1295 = vst [vmem:[#allocation3 + $0x60] sm:$0xff] %v1263
      %1296 = vst [vmem:[#allocation3 + $0x68] sm:$0xff] %v1264
      %1297 = vst [vmem:[#allocation3 + $0x70] sm:$0xff] %v1265
      %1298 = vst [vmem:[#allocation3 + $0x78] sm:$0xff] %v1266
      %1299 = vst [vmem:[#allocation3 + $0x80] sm:$0xff] %v1267
      %1300 = vst [vmem:[#allocation3 + $0x88] sm:$0xff] %v1268
      %1301 = vst [vmem:[#allocation3 + $0x90] sm:$0xff] %v1269
      %1302 = vst [vmem:[#allocation3 + $0x98] sm:$0xff] %v1270
      %1303 = vst [vmem:[#allocation3 + $0xa0] sm:$0xff] %v1271
      %1304 = vst [vmem:[#allocation3 + $0xa8] sm:$0xff] %v1272
      %1305 = vst [vmem:[#allocation3 + $0xb0] sm:$0xff] %v1273
      %1306 = vst [vmem:[#allocation3 + $0xb8] sm:$0xff] %v1274
      %1307 = vst [vmem:[#allocation3 + $0xc0] sm:$0xff] %v1275
      %1308 = vst [vmem:[#allocation3 + $0xc8] sm:$0xff] %v1276
      %1309 = vst [vmem:[#allocation3 + $0xd0] sm:$0xff] %v1277
      %1310 = vst [vmem:[#allocation3 + $0xd8] sm:$0xff] %v1278
      %1311 = vst [vmem:[#allocation3 + $0xe0] sm:$0xff] %v1279
      %1312 = vst [vmem:[#allocation3 + $0xe8] sm:$0xff] %v1280
      %1313 = vst [vmem:[#allocation3 + $0xf0] sm:$0xff] %v1281
      %1314 = vst [vmem:[#allocation3 + $0xf8] sm:$0xff] %v1282
      %v1315 = vld [vmem:[#allocation4] sm:$0xff]
      %v1316 = vld [vmem:[#allocation4 + $0x8] sm:$0xff]
      %v1317 = vld [vmem:[#allocation4 + $0x10] sm:$0xff]
      %v1318 = vld [vmem:[#allocation4 + $0x18] sm:$0xff]
      %v1319 = vld [vmem:[#allocation4 + $0x20] sm:$0xff]
      %v1320 = vld [vmem:[#allocation4 + $0x28] sm:$0xff]
      %v1321 = vld [vmem:[#allocation4 + $0x30] sm:$0xff]
      %v1322 = vld [vmem:[#allocation4 + $0x38] sm:$0xff]
      %v1323 = vld [vmem:[#allocation4 + $0x40] sm:$0xff]
      %v1324 = vld [vmem:[#allocation4 + $0x48] sm:$0xff]
      %v1325 = vld [vmem:[#allocation4 + $0x50] sm:$0xff]
      %v1326 = vld [vmem:[#allocation4 + $0x58] sm:$0xff]
      %v1327 = vld [vmem:[#allocation4 + $0x60] sm:$0xff]
      %v1328 = vld [vmem:[#allocation4 + $0x68] sm:$0xff]
      %v1329 = vld [vmem:[#allocation4 + $0x70] sm:$0xff]
      %v1330 = vld [vmem:[#allocation4 + $0x78] sm:$0xff]
      %v1331 = vld [vmem:[#allocation4 + $0x80] sm:$0xff]
      %v1332 = vld [vmem:[#allocation4 + $0x88] sm:$0xff]
      %v1333 = vld [vmem:[#allocation4 + $0x90] sm:$0xff]
      %v1334 = vld [vmem:[#allocation4 + $0x98] sm:$0xff]
      %v1335 = vld [vmem:[#allocation4 + $0xa0] sm:$0xff]
      %v1336 = vld [vmem:[#allocation4 + $0xa8] sm:$0xff]
      %v1337 = vld [vmem:[#allocation4 + $0xb0] sm:$0xff]
      %v1338 = vld [vmem:[#allocation4 + $0xb8] sm:$0xff]
      %v1339 = vld [vmem:[#allocation4 + $0xc0] sm:$0xff]
      %v1340 = vld [vmem:[#allocation4 + $0xc8] sm:$0xff]
      %v1341 = vld [vmem:[#allocation4 + $0xd0] sm:$0xff]
      %v1342 = vld [vmem:[#allocation4 + $0xd8] sm:$0xff]
      %v1343 = vld [vmem:[#allocation4 + $0xe0] sm:$0xff]
      %v1344 = vld [vmem:[#allocation4 + $0xe8] sm:$0xff]
      %v1345 = vld [vmem:[#allocation4 + $0xf0] sm:$0xff]
      %v1346 = vld [vmem:[#allocation4 + $0xf8] sm:$0xff]
      %1347 = vmatprep.subr.bf16.mxu0 1065369472
      %1348 = vmatpush1.bf16.xpose.msra.mxu0 1065369472
      %1349 = vmatprep.subr.bf16.mxu0 1065369472
      %1350 = vmatpush1.bf16.xpose.msra.mxu0 1065369472
      %1351 = vmatprep.subr.bf16.mxu0 1065369472
      %1352 = vmatpush1.bf16.xpose.msra.mxu0 1065369472
      %1353 = vmatprep.subr.bf16.mxu0 1065369472
      %1354 = vmatpush1.bf16.xpose.msra.mxu0 1065369472
      %1355 = vmatprep.subr.bf16.mxu0 1065369472
      %1356 = vmatpush1.bf16.xpose.msra.mxu0 1065369472
      %1357 = vmatprep.subr.bf16.mxu0 1065369472
      %1358 = vmatpush1.bf16.xpose.msra.mxu0 1065369472
      %1359 = vmatprep.subr.bf16.mxu0 1065369472
      %1360 = vmatpush1.bf16.xpose.msra.mxu0 1065369472
      %1361 = vmatprep.subr.bf16.mxu0 1065369472
      %1362 = vmatpush1.bf16.xpose.msra.mxu0 1065369472
      %1363 = vmatprep.subr.bf16.mxu0 0
      %1364 = vmatpush2.bf16.xpose.msra.mxu0 0
      %1365 = vmatprep.subr.bf16.mxu0 0
      %1366 = vmatpush2.bf16.xpose.msra.mxu0 0
      %1367 = vmatprep.subr.bf16.mxu0 0
      %1368 = vmatpush2.bf16.xpose.msra.mxu0 0
      %1369 = vmatprep.subr.bf16.mxu0 0
      %1370 = vmatpush2.bf16.xpose.msra.mxu0 0
      %1371 = vmatprep.subr.bf16.mxu0 0
      %1372 = vmatpush2.bf16.xpose.msra.mxu0 0
      %1373 = vmatprep.subr.bf16.mxu0 0
      %1374 = vmatpush2.bf16.xpose.msra.mxu0 0
      %1375 = vmatprep.subr.bf16.mxu0 0
      %1376 = vmatpush2.bf16.xpose.msra.mxu0 0
      %1377 = vmatprep.subr.bf16.mxu0 0
      %1378 = vmatpush2.bf16.xpose.msra.mxu0 0
      %1379 = vmatprep.mubr.bf16.mxu0 %v967
      %1380 = vmatmul.mubr.bf16.gmra.mxu0 %v964
      %v1381 = vpop.f32.mrf.mxu0
      %v1382 = vadd.f32 0.0, %v1381
      %v1383 = vpop.f32.mrf.mxu0
      %v1384 = vpop.f32.mrf.mxu0
      %v1385 = vadd.f32 0.0, %v1384
      %v1386 = vpop.f32.mrf.mxu0
      %1387 = vmatprep.mubr.bf16.mxu0 %v973
      %1388 = vmatmul.mubr.bf16.gmra.mxu0 %v970
      %v1389 = vpop.f32.mrf.mxu0
      %v1390 = vadd.f32 0.0, %v1389
      %v1391 = vpop.f32.mrf.mxu0
      %v1392 = vpop.f32.mrf.mxu0
      %v1393 = vadd.f32 0.0, %v1392
      %v1394 = vpop.f32.mrf.mxu0
      %1395 = vmatprep.mubr.bf16.mxu0 %v979
      %1396 = vmatmul.mubr.bf16.gmra.mxu0 %v976
      %v1397 = vpop.f32.mrf.mxu0
      %v1398 = vadd.f32 0.0, %v1397
      %v1399 = vpop.f32.mrf.mxu0
      %v1400 = vpop.f32.mrf.mxu0
      %v1401 = vadd.f32 0.0, %v1400
      %v1402 = vpop.f32.mrf.mxu0
      %1403 = vmatprep.mubr.bf16.mxu0 %v985
      %1404 = vmatmul.mubr.bf16.gmra.mxu0 %v982
      %v1405 = vpop.f32.mrf.mxu0
      %v1406 = vadd.f32 0.0, %v1405
      %v1407 = vpop.f32.mrf.mxu0
      %v1408 = vpop.f32.mrf.mxu0
      %v1409 = vadd.f32 0.0, %v1408
      %v1410 = vpop.f32.mrf.mxu0
      %1411 = vmatprep.mubr.bf16.mxu0 %v991
      %1412 = vmatmul.mubr.bf16.gmra.mxu0 %v988
      %v1413 = vpop.f32.mrf.mxu0
      %v1414 = vadd.f32 0.0, %v1413
      %v1415 = vpop.f32.mrf.mxu0
      %v1416 = vpop.f32.mrf.mxu0
      %v1417 = vadd.f32 0.0, %v1416
      %v1418 = vpop.f32.mrf.mxu0
      %1419 = vmatprep.mubr.bf16.mxu0 %v997
      %1420 = vmatmul.mubr.bf16.gmra.mxu0 %v994
      %v1421 = vpop.f32.mrf.mxu0
      %v1422 = vadd.f32 0.0, %v1421
      %v1423 = vpop.f32.mrf.mxu0
      %v1424 = vpop.f32.mrf.mxu0
      %v1425 = vadd.f32 0.0, %v1424
      %v1426 = vpop.f32.mrf.mxu0
      %1427 = vmatprep.mubr.bf16.mxu0 %v1003
      %1428 = vmatmul.mubr.bf16.gmra.mxu0 %v1000
      %v1429 = vpop.f32.mrf.mxu0
      %v1430 = vadd.f32 0.0, %v1429
      %v1431 = vpop.f32.mrf.mxu0
      %v1432 = vpop.f32.mrf.mxu0
      %v1433 = vadd.f32 0.0, %v1432
      %v1434 = vpop.f32.mrf.mxu0
      %1435 = vmatprep.mubr.bf16.mxu0 %v1009
      %1436 = vmatmul.mubr.bf16.gmra.mxu0 %v1006
      %v1437 = vpop.f32.mrf.mxu0
      %v1438 = vadd.f32 0.0, %v1437
      %v1439 = vpop.f32.mrf.mxu0
      %v1440 = vpop.f32.mrf.mxu0
      %v1441 = vadd.f32 0.0, %v1440
      %v1442 = vpop.f32.mrf.mxu0
      %1443 = vmatprep.mubr.bf16.mxu0 %v1015
      %1444 = vmatmul.mubr.bf16.gmra.mxu0 %v1012
      %v1445 = vpop.f32.mrf.mxu0
      %v1446 = vadd.f32 0.0, %v1445
      %v1447 = vpop.f32.mrf.mxu0
      %v1448 = vpop.f32.mrf.mxu0
      %v1449 = vadd.f32 0.0, %v1448
      %v1450 = vpop.f32.mrf.mxu0
      %1451 = vmatprep.mubr.bf16.mxu0 %v1021
      %1452 = vmatmul.mubr.bf16.gmra.mxu0 %v1018
      %v1453 = vpop.f32.mrf.mxu0
      %v1454 = vadd.f32 0.0, %v1453
      %v1455 = vpop.f32.mrf.mxu0
      %v1456 = vpop.f32.mrf.mxu0
      %v1457 = vadd.f32 0.0, %v1456
      %v1458 = vpop.f32.mrf.mxu0
      %1459 = vmatprep.mubr.bf16.mxu0 %v1027
      %1460 = vmatmul.mubr.bf16.gmra.mxu0 %v1024
      %v1461 = vpop.f32.mrf.mxu0
      %v1462 = vadd.f32 0.0, %v1461
      %v1463 = vpop.f32.mrf.mxu0
      %v1464 = vpop.f32.mrf.mxu0
      %v1465 = vadd.f32 0.0, %v1464
      %v1466 = vpop.f32.mrf.mxu0
      %1467 = vmatprep.mubr.bf16.mxu0 %v1033
      %1468 = vmatmul.mubr.bf16.gmra.mxu0 %v1030
      %v1469 = vpop.f32.mrf.mxu0
      %v1470 = vadd.f32 0.0, %v1469
      %v1471 = vpop.f32.mrf.mxu0
      %v1472 = vpop.f32.mrf.mxu0
      %v1473 = vadd.f32 0.0, %v1472
      %v1474 = vpop.f32.mrf.mxu0
      %1475 = vmatprep.mubr.bf16.mxu0 %v1039
      %1476 = vmatmul.mubr.bf16.gmra.mxu0 %v1036
      %v1477 = vpop.f32.mrf.mxu0
      %v1478 = vadd.f32 0.0, %v1477
      %v1479 = vpop.f32.mrf.mxu0
      %v1480 = vpop.f32.mrf.mxu0
      %v1481 = vadd.f32 0.0, %v1480
      %v1482 = vpop.f32.mrf.mxu0
      %1483 = vmatprep.mubr.bf16.mxu0 %v1045
      %1484 = vmatmul.mubr.bf16.gmra.mxu0 %v1042
      %v1485 = vpop.f32.mrf.mxu0
      %v1486 = vadd.f32 0.0, %v1485
      %v1487 = vpop.f32.mrf.mxu0
      %v1488 = vpop.f32.mrf.mxu0
      %v1489 = vadd.f32 0.0, %v1488
      %v1490 = vpop.f32.mrf.mxu0
      %1491 = vmatprep.mubr.bf16.mxu0 %v1051
      %1492 = vmatmul.mubr.bf16.gmra.mxu0 %v1048
      %v1493 = vpop.f32.mrf.mxu0
      %v1494 = vadd.f32 0.0, %v1493
      %v1495 = vpop.f32.mrf.mxu0
      %v1496 = vpop.f32.mrf.mxu0
      %v1497 = vadd.f32 0.0, %v1496
      %v1498 = vpop.f32.mrf.mxu0
      %1499 = vmatprep.mubr.bf16.mxu0 %v1057
      %1500 = vmatmul.mubr.bf16.gmra.mxu0 %v1054
      %v1501 = vpop.f32.mrf.mxu0
      %v1502 = vadd.f32 0.0, %v1501
      %v1503 = vpop.f32.mrf.mxu0
      %v1504 = vpop.f32.mrf.mxu0
      %v1505 = vadd.f32 0.0, %v1504
      %v1506 = vpop.f32.mrf.mxu0
      %1507 = vdwg.mxu0
      %v1508 = vadd.f32 %v1315, %v1382
      %v1509 = vadd.f32 %v1316, %v1385
      %v1510 = vadd.f32 %v1317, %v1390
      %v1511 = vadd.f32 %v1318, %v1393
      %v1512 = vadd.f32 %v1319, %v1398
      %v1513 = vadd.f32 %v1320, %v1401
      %v1514 = vadd.f32 %v1321, %v1406
      %v1515 = vadd.f32 %v1322, %v1409
      %v1516 = vadd.f32 %v1323, %v1414
      %v1517 = vadd.f32 %v1324, %v1417
      %v1518 = vadd.f32 %v1325, %v1422
      %v1519 = vadd.f32 %v1326, %v1425
      %v1520 = vadd.f32 %v1327, %v1430
      %v1521 = vadd.f32 %v1328, %v1433
      %v1522 = vadd.f32 %v1329, %v1438
      %v1523 = vadd.f32 %v1330, %v1441
      %v1524 = vadd.f32 %v1331, %v1446
      %v1525 = vadd.f32 %v1332, %v1449
      %v1526 = vadd.f32 %v1333, %v1454
      %v1527 = vadd.f32 %v1334, %v1457
      %v1528 = vadd.f32 %v1335, %v1462
      %v1529 = vadd.f32 %v1336, %v1465
      %v1530 = vadd.f32 %v1337, %v1470
      %v1531 = vadd.f32 %v1338, %v1473
      %v1532 = vadd.f32 %v1339, %v1478
      %v1533 = vadd.f32 %v1340, %v1481
      %v1534 = vadd.f32 %v1341, %v1486
      %v1535 = vadd.f32 %v1342, %v1489
      %v1536 = vadd.f32 %v1343, %v1494
      %v1537 = vadd.f32 %v1344, %v1497
      %v1538 = vadd.f32 %v1345, %v1502
      %v1539 = vadd.f32 %v1346, %v1505
      %1540 = vst [vmem:[#allocation4] sm:$0xff] %v1508
      %1541 = vst [vmem:[#allocation4 + $0x8] sm:$0xff] %v1509
      %1542 = vst [vmem:[#allocation4 + $0x10] sm:$0xff] %v1510
      %1543 = vst [vmem:[#allocation4 + $0x18] sm:$0xff] %v1511
      %1544 = vst [vmem:[#allocation4 + $0x20] sm:$0xff] %v1512
      %1545 = vst [vmem:[#allocation4 + $0x28] sm:$0xff] %v1513
      %1546 = vst [vmem:[#allocation4 + $0x30] sm:$0xff] %v1514
      %1547 = vst [vmem:[#allocation4 + $0x38] sm:$0xff] %v1515
      %1548 = vst [vmem:[#allocation4 + $0x40] sm:$0xff] %v1516
      %1549 = vst [vmem:[#allocation4 + $0x48] sm:$0xff] %v1517
      %1550 = vst [vmem:[#allocation4 + $0x50] sm:$0xff] %v1518
      %1551 = vst [vmem:[#allocation4 + $0x58] sm:$0xff] %v1519
      %1552 = vst [vmem:[#allocation4 + $0x60] sm:$0xff] %v1520
      %1553 = vst [vmem:[#allocation4 + $0x68] sm:$0xff] %v1521
      %1554 = vst [vmem:[#allocation4 + $0x70] sm:$0xff] %v1522
      %1555 = vst [vmem:[#allocation4 + $0x78] sm:$0xff] %v1523
      %1556 = vst [vmem:[#allocation4 + $0x80] sm:$0xff] %v1524
      %1557 = vst [vmem:[#allocation4 + $0x88] sm:$0xff] %v1525
      %1558 = vst [vmem:[#allocation4 + $0x90] sm:$0xff] %v1526
      %1559 = vst [vmem:[#allocation4 + $0x98] sm:$0xff] %v1527
      %1560 = vst [vmem:[#allocation4 + $0xa0] sm:$0xff] %v1528
      %1561 = vst [vmem:[#allocation4 + $0xa8] sm:$0xff] %v1529
      %1562 = vst [vmem:[#allocation4 + $0xb0] sm:$0xff] %v1530
      %1563 = vst [vmem:[#allocation4 + $0xb8] sm:$0xff] %v1531
      %1564 = vst [vmem:[#allocation4 + $0xc0] sm:$0xff] %v1532
      %1565 = vst [vmem:[#allocation4 + $0xc8] sm:$0xff] %v1533
      %1566 = vst [vmem:[#allocation4 + $0xd0] sm:$0xff] %v1534
      %1567 = vst [vmem:[#allocation4 + $0xd8] sm:$0xff] %v1535
      %1568 = vst [vmem:[#allocation4 + $0xe0] sm:$0xff] %v1536
      %1569 = vst [vmem:[#allocation4 + $0xe8] sm:$0xff] %v1537
      %1570 = vst [vmem:[#allocation4 + $0xf0] sm:$0xff] %v1538
      %1571 = vst [vmem:[#allocation4 + $0xf8] sm:$0xff] %v1539
      %v1572 = vld [vmem:[#allocation2] sm:$0xff]
      %v1573 = vld [vmem:[#allocation2 + $0x8] sm:$0xff]
      %v1574 = vld [vmem:[#allocation2 + $0x10] sm:$0xff]
      %v1575 = vld [vmem:[#allocation2 + $0x18] sm:$0xff]
      %v1576 = vld [vmem:[#allocation2 + $0x20] sm:$0xff]
      %v1577 = vld [vmem:[#allocation2 + $0x28] sm:$0xff]
      %v1578 = vld [vmem:[#allocation2 + $0x30] sm:$0xff]
      %v1579 = vld [vmem:[#allocation2 + $0x38] sm:$0xff]
      %v1580 = vld [vmem:[#allocation2 + $0x40] sm:$0xff]
      %v1581 = vld [vmem:[#allocation2 + $0x48] sm:$0xff]
      %v1582 = vld [vmem:[#allocation2 + $0x50] sm:$0xff]
      %v1583 = vld [vmem:[#allocation2 + $0x58] sm:$0xff]
      %v1584 = vld [vmem:[#allocation2 + $0x60] sm:$0xff]
      %v1585 = vld [vmem:[#allocation2 + $0x68] sm:$0xff]
      %v1586 = vld [vmem:[#allocation2 + $0x70] sm:$0xff]
      %v1587 = vld [vmem:[#allocation2 + $0x78] sm:$0xff]
      %v1588 = vld [vmem:[#allocation2 + $0x80] sm:$0xff]
      %v1589 = vld [vmem:[#allocation2 + $0x88] sm:$0xff]
      %v1590 = vld [vmem:[#allocation2 + $0x90] sm:$0xff]
      %v1591 = vld [vmem:[#allocation2 + $0x98] sm:$0xff]
      %v1592 = vld [vmem:[#allocation2 + $0xa0] sm:$0xff]
      %v1593 = vld [vmem:[#allocation2 + $0xa8] sm:$0xff]
      %v1594 = vld [vmem:[#allocation2 + $0xb0] sm:$0xff]
      %v1595 = vld [vmem:[#allocation2 + $0xb8] sm:$0xff]
      %v1596 = vld [vmem:[#allocation2 + $0xc0] sm:$0xff]
      %v1597 = vld [vmem:[#allocation2 + $0xc8] sm:$0xff]
      %v1598 = vld [vmem:[#allocation2 + $0xd0] sm:$0xff]
      %v1599 = vld [vmem:[#allocation2 + $0xd8] sm:$0xff]
      %v1600 = vld [vmem:[#allocation2 + $0xe0] sm:$0xff]
      %v1601 = vld [vmem:[#allocation2 + $0xe8] sm:$0xff]
      %v1602 = vld [vmem:[#allocation2 + $0xf0] sm:$0xff]
      %v1603 = vld [vmem:[#allocation2 + $0xf8] sm:$0xff]
      %v1604 = vld [vmem:[#allocation2 + $0x100] sm:$0xff]
      %v1605 = vld [vmem:[#allocation2 + $0x108] sm:$0xff]
      %v1606 = vld [vmem:[#allocation2 + $0x110] sm:$0xff]
      %v1607 = vld [vmem:[#allocation2 + $0x118] sm:$0xff]
      %v1608 = vld [vmem:[#allocation2 + $0x120] sm:$0xff]
      %v1609 = vld [vmem:[#allocation2 + $0x128] sm:$0xff]
      %v1610 = vld [vmem:[#allocation2 + $0x130] sm:$0xff]
      %v1611 = vld [vmem:[#allocation2 + $0x138] sm:$0xff]
      %v1612 = vld [vmem:[#allocation2 + $0x140] sm:$0xff]
      %v1613 = vld [vmem:[#allocation2 + $0x148] sm:$0xff]
      %v1614 = vld [vmem:[#allocation2 + $0x150] sm:$0xff]
      %v1615 = vld [vmem:[#allocation2 + $0x158] sm:$0xff]
      %v1616 = vld [vmem:[#allocation2 + $0x160] sm:$0xff]
      %v1617 = vld [vmem:[#allocation2 + $0x168] sm:$0xff]
      %v1618 = vld [vmem:[#allocation2 + $0x170] sm:$0xff]
      %v1619 = vld [vmem:[#allocation2 + $0x178] sm:$0xff]
      %v1620 = vld [vmem:[#allocation2 + $0x180] sm:$0xff]
      %v1621 = vld [vmem:[#allocation2 + $0x188] sm:$0xff]
      %v1622 = vld [vmem:[#allocation2 + $0x190] sm:$0xff]
      %v1623 = vld [vmem:[#allocation2 + $0x198] sm:$0xff]
      %v1624 = vld [vmem:[#allocation2 + $0x1a0] sm:$0xff]
      %v1625 = vld [vmem:[#allocation2 + $0x1a8] sm:$0xff]
      %v1626 = vld [vmem:[#allocation2 + $0x1b0] sm:$0xff]
      %v1627 = vld [vmem:[#allocation2 + $0x1b8] sm:$0xff]
      %v1628 = vld [vmem:[#allocation2 + $0x1c0] sm:$0xff]
      %v1629 = vld [vmem:[#allocation2 + $0x1c8] sm:$0xff]
      %v1630 = vld [vmem:[#allocation2 + $0x1d0] sm:$0xff]
      %v1631 = vld [vmem:[#allocation2 + $0x1d8] sm:$0xff]
      %v1632 = vld [vmem:[#allocation2 + $0x1e0] sm:$0xff]
      %v1633 = vld [vmem:[#allocation2 + $0x1e8] sm:$0xff]
      %v1634 = vld [vmem:[#allocation2 + $0x1f0] sm:$0xff]
      %v1635 = vld [vmem:[#allocation2 + $0x1f8] sm:$0xff]
      %1636 = vmatprep.subr.bf16.mxu0 %v1009
      %1637 = vmatpush1.bf16.xpose.msra.mxu0 %v1006
      %1638 = vmatprep.subr.bf16.mxu0 %v1003
      %1639 = vmatpush1.bf16.xpose.msra.mxu0 %v1000
      %1640 = vmatprep.subr.bf16.mxu0 %v997
      %1641 = vmatpush1.bf16.xpose.msra.mxu0 %v994
      %1642 = vmatprep.subr.bf16.mxu0 %v991
      %1643 = vmatpush1.bf16.xpose.msra.mxu0 %v988
      %1644 = vmatprep.subr.bf16.mxu0 %v985
      %1645 = vmatpush1.bf16.xpose.msra.mxu0 %v982
      %1646 = vmatprep.subr.bf16.mxu0 %v979
      %1647 = vmatpush1.bf16.xpose.msra.mxu0 %v976
      %1648 = vmatprep.subr.bf16.mxu0 %v973
      %1649 = vmatpush1.bf16.xpose.msra.mxu0 %v970
      %1650 = vmatprep.subr.bf16.mxu0 %v967
      %1651 = vmatpush1.bf16.xpose.msra.mxu0 %v964
      %1652 = vmatprep.subr.bf16.mxu0 %v1057
      %1653 = vmatpush2.bf16.xpose.msra.mxu0 %v1054
      %1654 = vmatprep.subr.bf16.mxu0 %v1051
      %1655 = vmatpush2.bf16.xpose.msra.mxu0 %v1048
      %1656 = vmatprep.subr.bf16.mxu0 %v1045
      %1657 = vmatpush2.bf16.xpose.msra.mxu0 %v1042
      %1658 = vmatprep.subr.bf16.mxu0 %v1039
      %1659 = vmatpush2.bf16.xpose.msra.mxu0 %v1036
      %1660 = vmatprep.subr.bf16.mxu0 %v1033
      %1661 = vmatpush2.bf16.xpose.msra.mxu0 %v1030
      %1662 = vmatprep.subr.bf16.mxu0 %v1027
      %1663 = vmatpush2.bf16.xpose.msra.mxu0 %v1024
      %1664 = vmatprep.subr.bf16.mxu0 %v1021
      %1665 = vmatpush2.bf16.xpose.msra.mxu0 %v1018
      %1666 = vmatprep.subr.bf16.mxu0 %v1015
      %1667 = vmatpush2.bf16.xpose.msra.mxu0 %v1012
      %1668 = vmatprep.mubr.bf16.mxu0 %v657
      %1669 = vmatmul.mubr.bf16.gmra.mxu0 %v654
      %v1670 = vpop.f32.mrf.mxu0
      %v1671 = vadd.f32 0.0, %v1670
      %v1672 = vpop.f32.mrf.mxu0
      %v1673 = vadd.f32 0.0, %v1672
      %v1674 = vpop.f32.mrf.mxu0
      %v1675 = vadd.f32 0.0, %v1674
      %v1676 = vpop.f32.mrf.mxu0
      %v1677 = vadd.f32 0.0, %v1676
      %1678 = vmatprep.mubr.bf16.mxu0 %v663
      %1679 = vmatmul.mubr.bf16.gmra.mxu0 %v660
      %v1680 = vpop.f32.mrf.mxu0
      %v1681 = vadd.f32 0.0, %v1680
      %v1682 = vpop.f32.mrf.mxu0
      %v1683 = vadd.f32 0.0, %v1682
      %v1684 = vpop.f32.mrf.mxu0
      %v1685 = vadd.f32 0.0, %v1684
      %v1686 = vpop.f32.mrf.mxu0
      %v1687 = vadd.f32 0.0, %v1686
      %1688 = vmatprep.mubr.bf16.mxu0 %v669
      %1689 = vmatmul.mubr.bf16.gmra.mxu0 %v666
      %v1690 = vpop.f32.mrf.mxu0
      %v1691 = vadd.f32 0.0, %v1690
      %v1692 = vpop.f32.mrf.mxu0
      %v1693 = vadd.f32 0.0, %v1692
      %v1694 = vpop.f32.mrf.mxu0
      %v1695 = vadd.f32 0.0, %v1694
      %v1696 = vpop.f32.mrf.mxu0
      %v1697 = vadd.f32 0.0, %v1696
      %1698 = vmatprep.mubr.bf16.mxu0 %v675
      %1699 = vmatmul.mubr.bf16.gmra.mxu0 %v672
      %v1700 = vpop.f32.mrf.mxu0
      %v1701 = vadd.f32 0.0, %v1700
      %v1702 = vpop.f32.mrf.mxu0
      %v1703 = vadd.f32 0.0, %v1702
      %v1704 = vpop.f32.mrf.mxu0
      %v1705 = vadd.f32 0.0, %v1704
      %v1706 = vpop.f32.mrf.mxu0
      %v1707 = vadd.f32 0.0, %v1706
      %1708 = vmatprep.mubr.bf16.mxu0 %v681
      %1709 = vmatmul.mubr.bf16.gmra.mxu0 %v678
      %v1710 = vpop.f32.mrf.mxu0
      %v1711 = vadd.f32 0.0, %v1710
      %v1712 = vpop.f32.mrf.mxu0
      %v1713 = vadd.f32 0.0, %v1712
      %v1714 = vpop.f32.mrf.mxu0
      %v1715 = vadd.f32 0.0, %v1714
      %v1716 = vpop.f32.mrf.mxu0
      %v1717 = vadd.f32 0.0, %v1716
      %1718 = vmatprep.mubr.bf16.mxu0 %v687
      %1719 = vmatmul.mubr.bf16.gmra.mxu0 %v684
      %v1720 = vpop.f32.mrf.mxu0
      %v1721 = vadd.f32 0.0, %v1720
      %v1722 = vpop.f32.mrf.mxu0
      %v1723 = vadd.f32 0.0, %v1722
      %v1724 = vpop.f32.mrf.mxu0
      %v1725 = vadd.f32 0.0, %v1724
      %v1726 = vpop.f32.mrf.mxu0
      %v1727 = vadd.f32 0.0, %v1726
      %1728 = vmatprep.mubr.bf16.mxu0 %v693
      %1729 = vmatmul.mubr.bf16.gmra.mxu0 %v690
      %v1730 = vpop.f32.mrf.mxu0
      %v1731 = vadd.f32 0.0, %v1730
      %v1732 = vpop.f32.mrf.mxu0
      %v1733 = vadd.f32 0.0, %v1732
      %v1734 = vpop.f32.mrf.mxu0
      %v1735 = vadd.f32 0.0, %v1734
      %v1736 = vpop.f32.mrf.mxu0
      %v1737 = vadd.f32 0.0, %v1736
      %1738 = vmatprep.mubr.bf16.mxu0 %v699
      %1739 = vmatmul.mubr.bf16.gmra.mxu0 %v696
      %v1740 = vpop.f32.mrf.mxu0
      %v1741 = vadd.f32 0.0, %v1740
      %v1742 = vpop.f32.mrf.mxu0
      %v1743 = vadd.f32 0.0, %v1742
      %v1744 = vpop.f32.mrf.mxu0
      %v1745 = vadd.f32 0.0, %v1744
      %v1746 = vpop.f32.mrf.mxu0
      %v1747 = vadd.f32 0.0, %v1746
      %1748 = vmatprep.mubr.bf16.mxu0 %v705
      %1749 = vmatmul.mubr.bf16.gmra.mxu0 %v702
      %v1750 = vpop.f32.mrf.mxu0
      %v1751 = vadd.f32 0.0, %v1750
      %v1752 = vpop.f32.mrf.mxu0
      %v1753 = vadd.f32 0.0, %v1752
      %v1754 = vpop.f32.mrf.mxu0
      %v1755 = vadd.f32 0.0, %v1754
      %v1756 = vpop.f32.mrf.mxu0
      %v1757 = vadd.f32 0.0, %v1756
      %1758 = vmatprep.mubr.bf16.mxu0 %v711
      %1759 = vmatmul.mubr.bf16.gmra.mxu0 %v708
      %v1760 = vpop.f32.mrf.mxu0
      %v1761 = vadd.f32 0.0, %v1760
      %v1762 = vpop.f32.mrf.mxu0
      %v1763 = vadd.f32 0.0, %v1762
      %v1764 = vpop.f32.mrf.mxu0
      %v1765 = vadd.f32 0.0, %v1764
      %v1766 = vpop.f32.mrf.mxu0
      %v1767 = vadd.f32 0.0, %v1766
      %1768 = vmatprep.mubr.bf16.mxu0 %v717
      %1769 = vmatmul.mubr.bf16.gmra.mxu0 %v714
      %v1770 = vpop.f32.mrf.mxu0
      %v1771 = vadd.f32 0.0, %v1770
      %v1772 = vpop.f32.mrf.mxu0
      %v1773 = vadd.f32 0.0, %v1772
      %v1774 = vpop.f32.mrf.mxu0
      %v1775 = vadd.f32 0.0, %v1774
      %v1776 = vpop.f32.mrf.mxu0
      %v1777 = vadd.f32 0.0, %v1776
      %1778 = vmatprep.mubr.bf16.mxu0 %v723
      %1779 = vmatmul.mubr.bf16.gmra.mxu0 %v720
      %v1780 = vpop.f32.mrf.mxu0
      %v1781 = vadd.f32 0.0, %v1780
      %v1782 = vpop.f32.mrf.mxu0
      %v1783 = vadd.f32 0.0, %v1782
      %v1784 = vpop.f32.mrf.mxu0
      %v1785 = vadd.f32 0.0, %v1784
      %v1786 = vpop.f32.mrf.mxu0
      %v1787 = vadd.f32 0.0, %v1786
      %1788 = vmatprep.mubr.bf16.mxu0 %v729
      %1789 = vmatmul.mubr.bf16.gmra.mxu0 %v726
      %v1790 = vpop.f32.mrf.mxu0
      %v1791 = vadd.f32 0.0, %v1790
      %v1792 = vpop.f32.mrf.mxu0
      %v1793 = vadd.f32 0.0, %v1792
      %v1794 = vpop.f32.mrf.mxu0
      %v1795 = vadd.f32 0.0, %v1794
      %v1796 = vpop.f32.mrf.mxu0
      %v1797 = vadd.f32 0.0, %v1796
      %1798 = vmatprep.mubr.bf16.mxu0 %v735
      %1799 = vmatmul.mubr.bf16.gmra.mxu0 %v732
      %v1800 = vpop.f32.mrf.mxu0
      %v1801 = vadd.f32 0.0, %v1800
      %v1802 = vpop.f32.mrf.mxu0
      %v1803 = vadd.f32 0.0, %v1802
      %v1804 = vpop.f32.mrf.mxu0
      %v1805 = vadd.f32 0.0, %v1804
      %v1806 = vpop.f32.mrf.mxu0
      %v1807 = vadd.f32 0.0, %v1806
      %1808 = vmatprep.mubr.bf16.mxu0 %v741
      %1809 = vmatmul.mubr.bf16.gmra.mxu0 %v738
      %v1810 = vpop.f32.mrf.mxu0
      %v1811 = vadd.f32 0.0, %v1810
      %v1812 = vpop.f32.mrf.mxu0
      %v1813 = vadd.f32 0.0, %v1812
      %v1814 = vpop.f32.mrf.mxu0
      %v1815 = vadd.f32 0.0, %v1814
      %v1816 = vpop.f32.mrf.mxu0
      %v1817 = vadd.f32 0.0, %v1816
      %1818 = vmatprep.mubr.bf16.mxu0 %v747
      %1819 = vmatmul.mubr.bf16.gmra.mxu0 %v744
      %v1820 = vpop.f32.mrf.mxu0
      %v1821 = vadd.f32 0.0, %v1820
      %v1822 = vpop.f32.mrf.mxu0
      %v1823 = vadd.f32 0.0, %v1822
      %v1824 = vpop.f32.mrf.mxu0
      %v1825 = vadd.f32 0.0, %v1824
      %v1826 = vpop.f32.mrf.mxu0
      %v1827 = vadd.f32 0.0, %v1826
      %1828 = vdwg.mxu0
      %v1829 = vadd.f32 %v1572, %v1671
      %v1830 = vadd.f32 %v1573, %v1673
      %v1831 = vadd.f32 %v1574, %v1675
      %v1832 = vadd.f32 %v1575, %v1677
      %v1833 = vadd.f32 %v1576, %v1681
      %v1834 = vadd.f32 %v1577, %v1683
      %v1835 = vadd.f32 %v1578, %v1685
      %v1836 = vadd.f32 %v1579, %v1687
      %v1837 = vadd.f32 %v1580, %v1691
      %v1838 = vadd.f32 %v1581, %v1693
      %v1839 = vadd.f32 %v1582, %v1695
      %v1840 = vadd.f32 %v1583, %v1697
      %v1841 = vadd.f32 %v1584, %v1701
      %v1842 = vadd.f32 %v1585, %v1703
      %v1843 = vadd.f32 %v1586, %v1705
      %v1844 = vadd.f32 %v1587, %v1707
      %v1845 = vadd.f32 %v1588, %v1711
      %v1846 = vadd.f32 %v1589, %v1713
      %v1847 = vadd.f32 %v1590, %v1715
      %v1848 = vadd.f32 %v1591, %v1717
      %v1849 = vadd.f32 %v1592, %v1721
      %v1850 = vadd.f32 %v1593, %v1723
      %v1851 = vadd.f32 %v1594, %v1725
      %v1852 = vadd.f32 %v1595, %v1727
      %v1853 = vadd.f32 %v1596, %v1731
      %v1854 = vadd.f32 %v1597, %v1733
      %v1855 = vadd.f32 %v1598, %v1735
      %v1856 = vadd.f32 %v1599, %v1737
      %v1857 = vadd.f32 %v1600, %v1741
      %v1858 = vadd.f32 %v1601, %v1743
      %v1859 = vadd.f32 %v1602, %v1745
      %v1860 = vadd.f32 %v1603, %v1747
      %v1861 = vadd.f32 %v1604, %v1751
      %v1862 = vadd.f32 %v1605, %v1753
      %v1863 = vadd.f32 %v1606, %v1755
      %v1864 = vadd.f32 %v1607, %v1757
      %v1865 = vadd.f32 %v1608, %v1761
      %v1866 = vadd.f32 %v1609, %v1763
      %v1867 = vadd.f32 %v1610, %v1765
      %v1868 = vadd.f32 %v1611, %v1767
      %v1869 = vadd.f32 %v1612, %v1771
      %v1870 = vadd.f32 %v1613, %v1773
      %v1871 = vadd.f32 %v1614, %v1775
      %v1872 = vadd.f32 %v1615, %v1777
      %v1873 = vadd.f32 %v1616, %v1781
      %v1874 = vadd.f32 %v1617, %v1783
      %v1875 = vadd.f32 %v1618, %v1785
      %v1876 = vadd.f32 %v1619, %v1787
      %v1877 = vadd.f32 %v1620, %v1791
      %v1878 = vadd.f32 %v1621, %v1793
      %v1879 = vadd.f32 %v1622, %v1795
      %v1880 = vadd.f32 %v1623, %v1797
      %v1881 = vadd.f32 %v1624, %v1801
      %v1882 = vadd.f32 %v1625, %v1803
      %v1883 = vadd.f32 %v1626, %v1805
      %v1884 = vadd.f32 %v1627, %v1807
      %v1885 = vadd.f32 %v1628, %v1811
      %v1886 = vadd.f32 %v1629, %v1813
      %v1887 = vadd.f32 %v1630, %v1815
      %v1888 = vadd.f32 %v1631, %v1817
      %v1889 = vadd.f32 %v1632, %v1821
      %v1890 = vadd.f32 %v1633, %v1823
      %v1891 = vadd.f32 %v1634, %v1825
      %v1892 = vadd.f32 %v1635, %v1827
      %1893 = vst [vmem:[#allocation2] sm:$0xff] %v1829
      %1894 = vst [vmem:[#allocation2 + $0x8] sm:$0xff] %v1830
      %1895 = vst [vmem:[#allocation2 + $0x10] sm:$0xff] %v1831
      %1896 = vst [vmem:[#allocation2 + $0x18] sm:$0xff] %v1832
      %1897 = vst [vmem:[#allocation2 + $0x20] sm:$0xff] %v1833
      %1898 = vst [vmem:[#allocation2 + $0x28] sm:$0xff] %v1834
      %1899 = vst [vmem:[#allocation2 + $0x30] sm:$0xff] %v1835
      %1900 = vst [vmem:[#allocation2 + $0x38] sm:$0xff] %v1836
      %1901 = vst [vmem:[#allocation2 + $0x40] sm:$0xff] %v1837
      %1902 = vst [vmem:[#allocation2 + $0x48] sm:$0xff] %v1838
      %1903 = vst [vmem:[#allocation2 + $0x50] sm:$0xff] %v1839
      %1904 = vst [vmem:[#allocation2 + $0x58] sm:$0xff] %v1840
      %1905 = vst [vmem:[#allocation2 + $0x60] sm:$0xff] %v1841
      %1906 = vst [vmem:[#allocation2 + $0x68] sm:$0xff] %v1842
      %1907 = vst [vmem:[#allocation2 + $0x70] sm:$0xff] %v1843
      %1908 = vst [vmem:[#allocation2 + $0x78] sm:$0xff] %v1844
      %1909 = vst [vmem:[#allocation2 + $0x80] sm:$0xff] %v1845
      %1910 = vst [vmem:[#allocation2 + $0x88] sm:$0xff] %v1846
      %1911 = vst [vmem:[#allocation2 + $0x90] sm:$0xff] %v1847
      %1912 = vst [vmem:[#allocation2 + $0x98] sm:$0xff] %v1848
      %1913 = vst [vmem:[#allocation2 + $0xa0] sm:$0xff] %v1849
      %1914 = vst [vmem:[#allocation2 + $0xa8] sm:$0xff] %v1850
      %1915 = vst [vmem:[#allocation2 + $0xb0] sm:$0xff] %v1851
      %1916 = vst [vmem:[#allocation2 + $0xb8] sm:$0xff] %v1852
      %1917 = vst [vmem:[#allocation2 + $0xc0] sm:$0xff] %v1853
      %1918 = vst [vmem:[#allocation2 + $0xc8] sm:$0xff] %v1854
      %1919 = vst [vmem:[#allocation2 + $0xd0] sm:$0xff] %v1855
      %1920 = vst [vmem:[#allocation2 + $0xd8] sm:$0xff] %v1856
      %1921 = vst [vmem:[#allocation2 + $0xe0] sm:$0xff] %v1857
      %1922 = vst [vmem:[#allocation2 + $0xe8] sm:$0xff] %v1858
      %1923 = vst [vmem:[#allocation2 + $0xf0] sm:$0xff] %v1859
      %1924 = vst [vmem:[#allocation2 + $0xf8] sm:$0xff] %v1860
      %1925 = vst [vmem:[#allocation2 + $0x100] sm:$0xff] %v1861
      %1926 = vst [vmem:[#allocation2 + $0x108] sm:$0xff] %v1862
      %1927 = vst [vmem:[#allocation2 + $0x110] sm:$0xff] %v1863
      %1928 = vst [vmem:[#allocation2 + $0x118] sm:$0xff] %v1864
      %1929 = vst [vmem:[#allocation2 + $0x120] sm:$0xff] %v1865
      %1930 = vst [vmem:[#allocation2 + $0x128] sm:$0xff] %v1866
      %1931 = vst [vmem:[#allocation2 + $0x130] sm:$0xff] %v1867
      %1932 = vst [vmem:[#allocation2 + $0x138] sm:$0xff] %v1868
      %1933 = vst [vmem:[#allocation2 + $0x140] sm:$0xff] %v1869
      %1934 = vst [vmem:[#allocation2 + $0x148] sm:$0xff] %v1870
      %1935 = vst [vmem:[#allocation2 + $0x150] sm:$0xff] %v1871
      %1936 = vst [vmem:[#allocation2 + $0x158] sm:$0xff] %v1872
      %1937 = vst [vmem:[#allocation2 + $0x160] sm:$0xff] %v1873
      %1938 = vst [vmem:[#allocation2 + $0x168] sm:$0xff] %v1874
      %1939 = vst [vmem:[#allocation2 + $0x170] sm:$0xff] %v1875
      %1940 = vst [vmem:[#allocation2 + $0x178] sm:$0xff] %v1876
      %1941 = vst [vmem:[#allocation2 + $0x180] sm:$0xff] %v1877
      %1942 = vst [vmem:[#allocation2 + $0x188] sm:$0xff] %v1878
      %1943 = vst [vmem:[#allocation2 + $0x190] sm:$0xff] %v1879
      %1944 = vst [vmem:[#allocation2 + $0x198] sm:$0xff] %v1880
      %1945 = vst [vmem:[#allocation2 + $0x1a0] sm:$0xff] %v1881
      %1946 = vst [vmem:[#allocation2 + $0x1a8] sm:$0xff] %v1882
      %1947 = vst [vmem:[#allocation2 + $0x1b0] sm:$0xff] %v1883
      %1948 = vst [vmem:[#allocation2 + $0x1b8] sm:$0xff] %v1884
      %1949 = vst [vmem:[#allocation2 + $0x1c0] sm:$0xff] %v1885
      %1950 = vst [vmem:[#allocation2 + $0x1c8] sm:$0xff] %v1886
      %1951 = vst [vmem:[#allocation2 + $0x1d0] sm:$0xff] %v1887
      %1952 = vst [vmem:[#allocation2 + $0x1d8] sm:$0xff] %v1888
      %1953 = vst [vmem:[#allocation2 + $0x1e0] sm:$0xff] %v1889
      %1954 = vst [vmem:[#allocation2 + $0x1e8] sm:$0xff] %v1890
      %1955 = vst [vmem:[#allocation2 + $0x1f0] sm:$0xff] %v1891
      %1956 = vst [vmem:[#allocation2 + $0x1f8] sm:$0xff] %v1892
      // Predicated region
      $region37: #{mutual_information.1} parent=31 // pred_check
        %p1957 = pneg %p229
      $region38: #{mutual_information.1} parent=31 // pred_check_branch
        %1959 = sbr.rel (%p1957) target = $region40
      $region39: #{mutual_information.1} parent=31 // pred_region
        %v1960 = vld [vmem:[#allocation3] sm:$0xff]
        %v1961 = vld [vmem:[#allocation3 + $0x8] sm:$0xff]
        %v1962 = vld [vmem:[#allocation3 + $0x10] sm:$0xff]
        %v1963 = vld [vmem:[#allocation3 + $0x18] sm:$0xff]
        %v1964 = vld [vmem:[#allocation3 + $0x20] sm:$0xff]
        %v1965 = vld [vmem:[#allocation3 + $0x28] sm:$0xff]
        %v1966 = vld [vmem:[#allocation3 + $0x30] sm:$0xff]
        %v1967 = vld [vmem:[#allocation3 + $0x38] sm:$0xff]
        %v1968 = vld [vmem:[#allocation3 + $0x40] sm:$0xff]
        %v1969 = vld [vmem:[#allocation3 + $0x48] sm:$0xff]
        %v1970 = vld [vmem:[#allocation3 + $0x50] sm:$0xff]
        %v1971 = vld [vmem:[#allocation3 + $0x58] sm:$0xff]
        %v1972 = vld [vmem:[#allocation3 + $0x60] sm:$0xff]
        %v1973 = vld [vmem:[#allocation3 + $0x68] sm:$0xff]
        %v1974 = vld [vmem:[#allocation3 + $0x70] sm:$0xff]
        %v1975 = vld [vmem:[#allocation3 + $0x78] sm:$0xff]
        %v1976 = vld [vmem:[#allocation3 + $0x80] sm:$0xff]
        %v1977 = vld [vmem:[#allocation3 + $0x88] sm:$0xff]
        %v1978 = vld [vmem:[#allocation3 + $0x90] sm:$0xff]
        %v1979 = vld [vmem:[#allocation3 + $0x98] sm:$0xff]
        %v1980 = vld [vmem:[#allocation3 + $0xa0] sm:$0xff]
        %v1981 = vld [vmem:[#allocation3 + $0xa8] sm:$0xff]
        %v1982 = vld [vmem:[#allocation3 + $0xb0] sm:$0xff]
        %v1983 = vld [vmem:[#allocation3 + $0xb8] sm:$0xff]
        %v1984 = vld [vmem:[#allocation3 + $0xc0] sm:$0xff]
        %v1985 = vld [vmem:[#allocation3 + $0xc8] sm:$0xff]
        %v1986 = vld [vmem:[#allocation3 + $0xd0] sm:$0xff]
        %v1987 = vld [vmem:[#allocation3 + $0xd8] sm:$0xff]
        %v1988 = vld [vmem:[#allocation3 + $0xe0] sm:$0xff]
        %v1989 = vld [vmem:[#allocation3 + $0xe8] sm:$0xff]
        %v1990 = vld [vmem:[#allocation3 + $0xf0] sm:$0xff]
        %v1991 = vld [vmem:[#allocation3 + $0xf8] sm:$0xff]
        %v1992 = vmul.f32 %v1960, 0.00390625
        %v1993 = vmul.f32 %v1961, 0.00390625
        %v1994 = vmul.f32 %v1962, 0.00390625
        %v1995 = vmul.f32 %v1963, 0.00390625
        %v1996 = vmul.f32 %v1964, 0.00390625
        %v1997 = vmul.f32 %v1965, 0.00390625
        %v1998 = vmul.f32 %v1966, 0.00390625
        %v1999 = vmul.f32 %v1967, 0.00390625
        %v2000 = vmul.f32 %v1968, 0.00390625
        %v2001 = vmul.f32 %v1969, 0.00390625
        %v2002 = vmul.f32 %v1970, 0.00390625
        %v2003 = vmul.f32 %v1971, 0.00390625
        %v2004 = vmul.f32 %v1972, 0.00390625
        %v2005 = vmul.f32 %v1973, 0.00390625
        %v2006 = vmul.f32 %v1974, 0.00390625
        %v2007 = vmul.f32 %v1975, 0.00390625
        %v2008 = vmul.f32 %v1976, 0.00390625
        %v2009 = vmul.f32 %v1977, 0.00390625
        %v2010 = vmul.f32 %v1978, 0.00390625
        %v2011 = vmul.f32 %v1979, 0.00390625
        %v2012 = vmul.f32 %v1980, 0.00390625
        %v2013 = vmul.f32 %v1981, 0.00390625
        %v2014 = vmul.f32 %v1982, 0.00390625
        %v2015 = vmul.f32 %v1983, 0.00390625
        %v2016 = vmul.f32 %v1984, 0.00390625
        %v2017 = vmul.f32 %v1985, 0.00390625
        %v2018 = vmul.f32 %v1986, 0.00390625
        %v2019 = vmul.f32 %v1987, 0.00390625
        %v2020 = vmul.f32 %v1988, 0.00390625
        %v2021 = vmul.f32 %v1989, 0.00390625
        %v2022 = vmul.f32 %v1990, 0.00390625
        %v2023 = vmul.f32 %v1991, 0.00390625
        %vm2024 = vcmask 7168
        %v2025 = vsel %vm2024, %v1992, 0.0
        %v2026 = vsel %vm2024, %v1993, 0.0
        %v2027 = vadd.f32 %v2025, %v2026
        %v2028 = vsel %vm2024, %v1994, 0.0
        %v2029 = vadd.f32 %v2027, %v2028
        %v2030 = vsel %vm2024, %v1995, 0.0
        %v2031 = vadd.f32 %v2029, %v2030
        %v2032 = vsel %vm2024, %v1996, 0.0
        %v2033 = vadd.f32 %v2031, %v2032
        %v2034 = vsel %vm2024, %v1997, 0.0
        %v2035 = vadd.f32 %v2033, %v2034
        %v2036 = vsel %vm2024, %v1998, 0.0
        %v2037 = vadd.f32 %v2035, %v2036
        %v2038 = vsel %vm2024, %v1999, 0.0
        %v2039 = vadd.f32 %v2037, %v2038
        %v2040 = vsel %vm2024, %v2000, 0.0
        %v2041 = vadd.f32 %v2039, %v2040
        %v2042 = vsel %vm2024, %v2001, 0.0
        %v2043 = vadd.f32 %v2041, %v2042
        %v2044 = vsel %vm2024, %v2002, 0.0
        %v2045 = vadd.f32 %v2043, %v2044
        %v2046 = vsel %vm2024, %v2003, 0.0
        %v2047 = vadd.f32 %v2045, %v2046
        %v2048 = vsel %vm2024, %v2004, 0.0
        %v2049 = vadd.f32 %v2047, %v2048
        %v2050 = vsel %vm2024, %v2005, 0.0
        %v2051 = vadd.f32 %v2049, %v2050
        %v2052 = vsel %vm2024, %v2006, 0.0
        %v2053 = vadd.f32 %v2051, %v2052
        %v2054 = vsel %vm2024, %v2007, 0.0
        %v2055 = vadd.f32 %v2053, %v2054
        %v2056 = vsel %vm2024, %v2008, 0.0
        %v2057 = vadd.f32 %v2055, %v2056
        %v2058 = vsel %vm2024, %v2009, 0.0
        %v2059 = vadd.f32 %v2057, %v2058
        %v2060 = vsel %vm2024, %v2010, 0.0
        %v2061 = vadd.f32 %v2059, %v2060
        %v2062 = vsel %vm2024, %v2011, 0.0
        %v2063 = vadd.f32 %v2061, %v2062
        %v2064 = vsel %vm2024, %v2012, 0.0
        %v2065 = vadd.f32 %v2063, %v2064
        %v2066 = vsel %vm2024, %v2013, 0.0
        %v2067 = vadd.f32 %v2065, %v2066
        %v2068 = vsel %vm2024, %v2014, 0.0
        %v2069 = vadd.f32 %v2067, %v2068
        %v2070 = vsel %vm2024, %v2015, 0.0
        %v2071 = vadd.f32 %v2069, %v2070
        %v2072 = vsel %vm2024, %v2016, 0.0
        %v2073 = vadd.f32 %v2071, %v2072
        %v2074 = vsel %vm2024, %v2017, 0.0
        %v2075 = vadd.f32 %v2073, %v2074
        %v2076 = vsel %vm2024, %v2018, 0.0
        %v2077 = vadd.f32 %v2075, %v2076
        %v2078 = vsel %vm2024, %v2019, 0.0
        %v2079 = vadd.f32 %v2077, %v2078
        %v2080 = vsel %vm2024, %v2020, 0.0
        %v2081 = vadd.f32 %v2079, %v2080
        %v2082 = vsel %vm2024, %v2021, 0.0
        %v2083 = vadd.f32 %v2081, %v2082
        %v2084 = vsel %vm2024, %v2022, 0.0
        %v2085 = vadd.f32 %v2083, %v2084
        %v2086 = vsel %vm2024, %v2023, 0.0
        %v2087 = vadd.f32 %v2085, %v2086
        %2088 = vadd.xlane.f32.xlu0 %v2087
        %v2089 = vpop.xlane.xlu0 %2088
        %v2090 = vrot.slane %v2089, 4
        %v2091 = vadd.f32 %v2089, %v2090
        %v2092 = vrot.slane %v2091, 2
        %v2093 = vadd.f32 %v2091, %v2092
        %v2094 = vrot.slane %v2093, 1
        %v2095 = vadd.f32 %v2093, %v2094
        %s2096 = vtos %v2095
        %v2097 = vstv %s2096
        %v2098 = vadd.f32 %v2097, 0.001
        %v2099 = vrcp.pop %v2098
        %v2100 = vmul.f32 %v1992, %v2099
        %v2101 = vmul.f32 %v1993, %v2099
        %v2102 = vmul.f32 %v1994, %v2099
        %v2103 = vmul.f32 %v1995, %v2099
        %v2104 = vmul.f32 %v1996, %v2099
        %v2105 = vmul.f32 %v1997, %v2099
        %v2106 = vmul.f32 %v1998, %v2099
        %v2107 = vmul.f32 %v1999, %v2099
        %v2108 = vmul.f32 %v2000, %v2099
        %v2109 = vmul.f32 %v2001, %v2099
        %v2110 = vmul.f32 %v2002, %v2099
        %v2111 = vmul.f32 %v2003, %v2099
        %v2112 = vmul.f32 %v2004, %v2099
        %v2113 = vmul.f32 %v2005, %v2099
        %v2114 = vmul.f32 %v2006, %v2099
        %v2115 = vmul.f32 %v2007, %v2099
        %v2116 = vmul.f32 %v2008, %v2099
        %v2117 = vmul.f32 %v2009, %v2099
        %v2118 = vmul.f32 %v2010, %v2099
        %v2119 = vmul.f32 %v2011, %v2099
        %v2120 = vmul.f32 %v2012, %v2099
        %v2121 = vmul.f32 %v2013, %v2099
        %v2122 = vmul.f32 %v2014, %v2099
        %v2123 = vmul.f32 %v2015, %v2099
        %v2124 = vmul.f32 %v2016, %v2099
        %v2125 = vmul.f32 %v2017, %v2099
        %v2126 = vmul.f32 %v2018, %v2099
        %v2127 = vmul.f32 %v2019, %v2099
        %v2128 = vmul.f32 %v2020, %v2099
        %v2129 = vmul.f32 %v2021, %v2099
        %v2130 = vmul.f32 %v2022, %v2099
        %v2131 = vmul.f32 %v2023, %v2099
        %v2132 = vld [vmem:[#allocation4] sm:$0xff]
        %v2133 = vld [vmem:[#allocation4 + $0x8] sm:$0xff]
        %v2134 = vld [vmem:[#allocation4 + $0x10] sm:$0xff]
        %v2135 = vld [vmem:[#allocation4 + $0x18] sm:$0xff]
        %v2136 = vld [vmem:[#allocation4 + $0x20] sm:$0xff]
        %v2137 = vld [vmem:[#allocation4 + $0x28] sm:$0xff]
        %v2138 = vld [vmem:[#allocation4 + $0x30] sm:$0xff]
        %v2139 = vld [vmem:[#allocation4 + $0x38] sm:$0xff]
        %v2140 = vld [vmem:[#allocation4 + $0x40] sm:$0xff]
        %v2141 = vld [vmem:[#allocation4 + $0x48] sm:$0xff]
        %v2142 = vld [vmem:[#allocation4 + $0x50] sm:$0xff]
        %v2143 = vld [vmem:[#allocation4 + $0x58] sm:$0xff]
        %v2144 = vld [vmem:[#allocation4 + $0x60] sm:$0xff]
        %v2145 = vld [vmem:[#allocation4 + $0x68] sm:$0xff]
        %v2146 = vld [vmem:[#allocation4 + $0x70] sm:$0xff]
        %v2147 = vld [vmem:[#allocation4 + $0x78] sm:$0xff]
        %v2148 = vld [vmem:[#allocation4 + $0x80] sm:$0xff]
        %v2149 = vld [vmem:[#allocation4 + $0x88] sm:$0xff]
        %v2150 = vld [vmem:[#allocation4 + $0x90] sm:$0xff]
        %v2151 = vld [vmem:[#allocation4 + $0x98] sm:$0xff]
        %v2152 = vld [vmem:[#allocation4 + $0xa0] sm:$0xff]
        %v2153 = vld [vmem:[#allocation4 + $0xa8] sm:$0xff]
        %v2154 = vld [vmem:[#allocation4 + $0xb0] sm:$0xff]
        %v2155 = vld [vmem:[#allocation4 + $0xb8] sm:$0xff]
        %v2156 = vld [vmem:[#allocation4 + $0xc0] sm:$0xff]
        %v2157 = vld [vmem:[#allocation4 + $0xc8] sm:$0xff]
        %v2158 = vld [vmem:[#allocation4 + $0xd0] sm:$0xff]
        %v2159 = vld [vmem:[#allocation4 + $0xd8] sm:$0xff]
        %v2160 = vld [vmem:[#allocation4 + $0xe0] sm:$0xff]
        %v2161 = vld [vmem:[#allocation4 + $0xe8] sm:$0xff]
        %v2162 = vld [vmem:[#allocation4 + $0xf0] sm:$0xff]
        %v2163 = vld [vmem:[#allocation4 + $0xf8] sm:$0xff]
        %v2164 = vmul.f32 %v2132, 0.00390625
        %v2165 = vmul.f32 %v2133, 0.00390625
        %v2166 = vmul.f32 %v2134, 0.00390625
        %v2167 = vmul.f32 %v2135, 0.00390625
        %v2168 = vmul.f32 %v2136, 0.00390625
        %v2169 = vmul.f32 %v2137, 0.00390625
        %v2170 = vmul.f32 %v2138, 0.00390625
        %v2171 = vmul.f32 %v2139, 0.00390625
        %v2172 = vmul.f32 %v2140, 0.00390625
        %v2173 = vmul.f32 %v2141, 0.00390625
        %v2174 = vmul.f32 %v2142, 0.00390625
        %v2175 = vmul.f32 %v2143, 0.00390625
        %v2176 = vmul.f32 %v2144, 0.00390625
        %v2177 = vmul.f32 %v2145, 0.00390625
        %v2178 = vmul.f32 %v2146, 0.00390625
        %v2179 = vmul.f32 %v2147, 0.00390625
        %v2180 = vmul.f32 %v2148, 0.00390625
        %v2181 = vmul.f32 %v2149, 0.00390625
        %v2182 = vmul.f32 %v2150, 0.00390625
        %v2183 = vmul.f32 %v2151, 0.00390625
        %v2184 = vmul.f32 %v2152, 0.00390625
        %v2185 = vmul.f32 %v2153, 0.00390625
        %v2186 = vmul.f32 %v2154, 0.00390625
        %v2187 = vmul.f32 %v2155, 0.00390625
        %v2188 = vmul.f32 %v2156, 0.00390625
        %v2189 = vmul.f32 %v2157, 0.00390625
        %v2190 = vmul.f32 %v2158, 0.00390625
        %v2191 = vmul.f32 %v2159, 0.00390625
        %v2192 = vmul.f32 %v2160, 0.00390625
        %v2193 = vmul.f32 %v2161, 0.00390625
        %v2194 = vmul.f32 %v2162, 0.00390625
        %v2195 = vmul.f32 %v2163, 0.00390625
        %v2196 = vsel %vm2024, %v2164, 0.0
        %v2197 = vsel %vm2024, %v2165, 0.0
        %v2198 = vadd.f32 %v2196, %v2197
        %v2199 = vsel %vm2024, %v2166, 0.0
        %v2200 = vadd.f32 %v2198, %v2199
        %v2201 = vsel %vm2024, %v2167, 0.0
        %v2202 = vadd.f32 %v2200, %v2201
        %v2203 = vsel %vm2024, %v2168, 0.0
        %v2204 = vadd.f32 %v2202, %v2203
        %v2205 = vsel %vm2024, %v2169, 0.0
        %v2206 = vadd.f32 %v2204, %v2205
        %v2207 = vsel %vm2024, %v2170, 0.0
        %v2208 = vadd.f32 %v2206, %v2207
        %v2209 = vsel %vm2024, %v2171, 0.0
        %v2210 = vadd.f32 %v2208, %v2209
        %v2211 = vsel %vm2024, %v2172, 0.0
        %v2212 = vadd.f32 %v2210, %v2211
        %v2213 = vsel %vm2024, %v2173, 0.0
        %v2214 = vadd.f32 %v2212, %v2213
        %v2215 = vsel %vm2024, %v2174, 0.0
        %v2216 = vadd.f32 %v2214, %v2215
        %v2217 = vsel %vm2024, %v2175, 0.0
        %v2218 = vadd.f32 %v2216, %v2217
        %v2219 = vsel %vm2024, %v2176, 0.0
        %v2220 = vadd.f32 %v2218, %v2219
        %v2221 = vsel %vm2024, %v2177, 0.0
        %v2222 = vadd.f32 %v2220, %v2221
        %v2223 = vsel %vm2024, %v2178, 0.0
        %v2224 = vadd.f32 %v2222, %v2223
        %v2225 = vsel %vm2024, %v2179, 0.0
        %v2226 = vadd.f32 %v2224, %v2225
        %v2227 = vsel %vm2024, %v2180, 0.0
        %v2228 = vadd.f32 %v2226, %v2227
        %v2229 = vsel %vm2024, %v2181, 0.0
        %v2230 = vadd.f32 %v2228, %v2229
        %v2231 = vsel %vm2024, %v2182, 0.0
        %v2232 = vadd.f32 %v2230, %v2231
        %v2233 = vsel %vm2024, %v2183, 0.0
        %v2234 = vadd.f32 %v2232, %v2233
        %v2235 = vsel %vm2024, %v2184, 0.0
        %v2236 = vadd.f32 %v2234, %v2235
        %v2237 = vsel %vm2024, %v2185, 0.0
        %v2238 = vadd.f32 %v2236, %v2237
        %v2239 = vsel %vm2024, %v2186, 0.0
        %v2240 = vadd.f32 %v2238, %v2239
        %v2241 = vsel %vm2024, %v2187, 0.0
        %v2242 = vadd.f32 %v2240, %v2241
        %v2243 = vsel %vm2024, %v2188, 0.0
        %v2244 = vadd.f32 %v2242, %v2243
        %v2245 = vsel %vm2024, %v2189, 0.0
        %v2246 = vadd.f32 %v2244, %v2245
        %v2247 = vsel %vm2024, %v2190, 0.0
        %v2248 = vadd.f32 %v2246, %v2247
        %v2249 = vsel %vm2024, %v2191, 0.0
        %v2250 = vadd.f32 %v2248, %v2249
        %v2251 = vsel %vm2024, %v2192, 0.0
        %v2252 = vadd.f32 %v2250, %v2251
        %v2253 = vsel %vm2024, %v2193, 0.0
        %v2254 = vadd.f32 %v2252, %v2253
        %v2255 = vsel %vm2024, %v2194, 0.0
        %v2256 = vadd.f32 %v2254, %v2255
        %v2257 = vsel %vm2024, %v2195, 0.0
        %v2258 = vadd.f32 %v2256, %v2257
        %2259 = vadd.xlane.f32.xlu0 %v2258
        %v2260 = vpop.xlane.xlu0 %2259
        %v2261 = vrot.slane %v2260, 4
        %v2262 = vadd.f32 %v2260, %v2261
        %v2263 = vrot.slane %v2262, 2
        %v2264 = vadd.f32 %v2262, %v2263
        %v2265 = vrot.slane %v2264, 1
        %v2266 = vadd.f32 %v2264, %v2265
        %s2267 = vtos %v2266
        %v2268 = vstv %s2267
        %v2269 = vadd.f32 %v2268, 0.001
        %v2270 = vrcp.pop %v2269
        %v2271 = vmul.f32 %v2164, %v2270
        %v2272 = vmul.f32 %v2165, %v2270
        %v2273 = vmul.f32 %v2166, %v2270
        %v2274 = vmul.f32 %v2167, %v2270
        %v2275 = vmul.f32 %v2168, %v2270
        %v2276 = vmul.f32 %v2169, %v2270
        %v2277 = vmul.f32 %v2170, %v2270
        %v2278 = vmul.f32 %v2171, %v2270
        %v2279 = vmul.f32 %v2172, %v2270
        %v2280 = vmul.f32 %v2173, %v2270
        %v2281 = vmul.f32 %v2174, %v2270
        %v2282 = vmul.f32 %v2175, %v2270
        %v2283 = vmul.f32 %v2176, %v2270
        %v2284 = vmul.f32 %v2177, %v2270
        %v2285 = vmul.f32 %v2178, %v2270
        %v2286 = vmul.f32 %v2179, %v2270
        %v2287 = vmul.f32 %v2180, %v2270
        %v2288 = vmul.f32 %v2181, %v2270
        %v2289 = vmul.f32 %v2182, %v2270
        %v2290 = vmul.f32 %v2183, %v2270
        %v2291 = vmul.f32 %v2184, %v2270
        %v2292 = vmul.f32 %v2185, %v2270
        %v2293 = vmul.f32 %v2186, %v2270
        %v2294 = vmul.f32 %v2187, %v2270
        %v2295 = vmul.f32 %v2188, %v2270
        %v2296 = vmul.f32 %v2189, %v2270
        %v2297 = vmul.f32 %v2190, %v2270
        %v2298 = vmul.f32 %v2191, %v2270
        %v2299 = vmul.f32 %v2192, %v2270
        %v2300 = vmul.f32 %v2193, %v2270
        %v2301 = vmul.f32 %v2194, %v2270
        %v2302 = vmul.f32 %v2195, %v2270
        %v2303 = vld [vmem:[#allocation2] sm:$0xff]
        %v2304 = vld [vmem:[#allocation2 + $0x8] sm:$0xff]
        %v2305 = vld [vmem:[#allocation2 + $0x10] sm:$0xff]
        %v2306 = vld [vmem:[#allocation2 + $0x18] sm:$0xff]
        %v2307 = vld [vmem:[#allocation2 + $0x20] sm:$0xff]
        %v2308 = vld [vmem:[#allocation2 + $0x28] sm:$0xff]
        %v2309 = vld [vmem:[#allocation2 + $0x30] sm:$0xff]
        %v2310 = vld [vmem:[#allocation2 + $0x38] sm:$0xff]
        %v2311 = vld [vmem:[#allocation2 + $0x40] sm:$0xff]
        %v2312 = vld [vmem:[#allocation2 + $0x48] sm:$0xff]
        %v2313 = vld [vmem:[#allocation2 + $0x50] sm:$0xff]
        %v2314 = vld [vmem:[#allocation2 + $0x58] sm:$0xff]
        %v2315 = vld [vmem:[#allocation2 + $0x60] sm:$0xff]
        %v2316 = vld [vmem:[#allocation2 + $0x68] sm:$0xff]
        %v2317 = vld [vmem:[#allocation2 + $0x70] sm:$0xff]
        %v2318 = vld [vmem:[#allocation2 + $0x78] sm:$0xff]
        %v2319 = vld [vmem:[#allocation2 + $0x80] sm:$0xff]
        %v2320 = vld [vmem:[#allocation2 + $0x88] sm:$0xff]
        %v2321 = vld [vmem:[#allocation2 + $0x90] sm:$0xff]
        %v2322 = vld [vmem:[#allocation2 + $0x98] sm:$0xff]
        %v2323 = vld [vmem:[#allocation2 + $0xa0] sm:$0xff]
        %v2324 = vld [vmem:[#allocation2 + $0xa8] sm:$0xff]
        %v2325 = vld [vmem:[#allocation2 + $0xb0] sm:$0xff]
        %v2326 = vld [vmem:[#allocation2 + $0xb8] sm:$0xff]
        %v2327 = vld [vmem:[#allocation2 + $0xc0] sm:$0xff]
        %v2328 = vld [vmem:[#allocation2 + $0xc8] sm:$0xff]
        %v2329 = vld [vmem:[#allocation2 + $0xd0] sm:$0xff]
        %v2330 = vld [vmem:[#allocation2 + $0xd8] sm:$0xff]
        %v2331 = vld [vmem:[#allocation2 + $0xe0] sm:$0xff]
        %v2332 = vld [vmem:[#allocation2 + $0xe8] sm:$0xff]
        %v2333 = vld [vmem:[#allocation2 + $0xf0] sm:$0xff]
        %v2334 = vld [vmem:[#allocation2 + $0xf8] sm:$0xff]
        %v2335 = vld [vmem:[#allocation2 + $0x100] sm:$0xff]
        %v2336 = vld [vmem:[#allocation2 + $0x108] sm:$0xff]
        %v2337 = vld [vmem:[#allocation2 + $0x110] sm:$0xff]
        %v2338 = vld [vmem:[#allocation2 + $0x118] sm:$0xff]
        %v2339 = vld [vmem:[#allocation2 + $0x120] sm:$0xff]
        %v2340 = vld [vmem:[#allocation2 + $0x128] sm:$0xff]
        %v2341 = vld [vmem:[#allocation2 + $0x130] sm:$0xff]
        %v2342 = vld [vmem:[#allocation2 + $0x138] sm:$0xff]
        %v2343 = vld [vmem:[#allocation2 + $0x140] sm:$0xff]
        %v2344 = vld [vmem:[#allocation2 + $0x148] sm:$0xff]
        %v2345 = vld [vmem:[#allocation2 + $0x150] sm:$0xff]
        %v2346 = vld [vmem:[#allocation2 + $0x158] sm:$0xff]
        %v2347 = vld [vmem:[#allocation2 + $0x160] sm:$0xff]
        %v2348 = vld [vmem:[#allocation2 + $0x168] sm:$0xff]
        %v2349 = vld [vmem:[#allocation2 + $0x170] sm:$0xff]
        %v2350 = vld [vmem:[#allocation2 + $0x178] sm:$0xff]
        %v2351 = vld [vmem:[#allocation2 + $0x180] sm:$0xff]
        %v2352 = vld [vmem:[#allocation2 + $0x188] sm:$0xff]
        %v2353 = vld [vmem:[#allocation2 + $0x190] sm:$0xff]
        %v2354 = vld [vmem:[#allocation2 + $0x198] sm:$0xff]
        %v2355 = vld [vmem:[#allocation2 + $0x1a0] sm:$0xff]
        %v2356 = vld [vmem:[#allocation2 + $0x1a8] sm:$0xff]
        %v2357 = vld [vmem:[#allocation2 + $0x1b0] sm:$0xff]
        %v2358 = vld [vmem:[#allocation2 + $0x1b8] sm:$0xff]
        %v2359 = vld [vmem:[#allocation2 + $0x1c0] sm:$0xff]
        %v2360 = vld [vmem:[#allocation2 + $0x1c8] sm:$0xff]
        %v2361 = vld [vmem:[#allocation2 + $0x1d0] sm:$0xff]
        %v2362 = vld [vmem:[#allocation2 + $0x1d8] sm:$0xff]
        %v2363 = vld [vmem:[#allocation2 + $0x1e0] sm:$0xff]
        %v2364 = vld [vmem:[#allocation2 + $0x1e8] sm:$0xff]
        %v2365 = vld [vmem:[#allocation2 + $0x1f0] sm:$0xff]
        %v2366 = vld [vmem:[#allocation2 + $0x1f8] sm:$0xff]
        %v2367 = vadd.f32 %v2303, %v2304
        %v2368 = vadd.f32 %v2367, %v2305
        %v2369 = vadd.f32 %v2368, %v2306
        %v2370 = vadd.f32 %v2369, %v2307
        %v2371 = vadd.f32 %v2370, %v2308
        %v2372 = vadd.f32 %v2371, %v2309
        %v2373 = vadd.f32 %v2372, %v2310
        %v2374 = vadd.f32 %v2373, %v2311
        %v2375 = vadd.f32 %v2374, %v2312
        %v2376 = vadd.f32 %v2375, %v2313
        %v2377 = vadd.f32 %v2376, %v2314
        %v2378 = vadd.f32 %v2377, %v2315
        %v2379 = vadd.f32 %v2378, %v2316
        %v2380 = vadd.f32 %v2379, %v2317
        %v2381 = vadd.f32 %v2380, %v2318
        %v2382 = vadd.f32 %v2381, %v2319
        %v2383 = vadd.f32 %v2382, %v2320
        %v2384 = vadd.f32 %v2383, %v2321
        %v2385 = vadd.f32 %v2384, %v2322
        %v2386 = vadd.f32 %v2385, %v2323
        %v2387 = vadd.f32 %v2386, %v2324
        %v2388 = vadd.f32 %v2387, %v2325
        %v2389 = vadd.f32 %v2388, %v2326
        %v2390 = vadd.f32 %v2389, %v2327
        %v2391 = vadd.f32 %v2390, %v2328
        %v2392 = vadd.f32 %v2391, %v2329
        %v2393 = vadd.f32 %v2392, %v2330
        %v2394 = vadd.f32 %v2393, %v2331
        %v2395 = vadd.f32 %v2394, %v2332
        %v2396 = vadd.f32 %v2395, %v2333
        %v2397 = vadd.f32 %v2396, %v2334
        %v2398 = vadd.f32 %v2397, %v2335
        %v2399 = vadd.f32 %v2398, %v2336
        %v2400 = vadd.f32 %v2399, %v2337
        %v2401 = vadd.f32 %v2400, %v2338
        %v2402 = vadd.f32 %v2401, %v2339
        %v2403 = vadd.f32 %v2402, %v2340
        %v2404 = vadd.f32 %v2403, %v2341
        %v2405 = vadd.f32 %v2404, %v2342
        %v2406 = vadd.f32 %v2405, %v2343
        %v2407 = vadd.f32 %v2406, %v2344
        %v2408 = vadd.f32 %v2407, %v2345
        %v2409 = vadd.f32 %v2408, %v2346
        %v2410 = vadd.f32 %v2409, %v2347
        %v2411 = vadd.f32 %v2410, %v2348
        %v2412 = vadd.f32 %v2411, %v2349
        %v2413 = vadd.f32 %v2412, %v2350
        %v2414 = vadd.f32 %v2413, %v2351
        %v2415 = vadd.f32 %v2414, %v2352
        %v2416 = vadd.f32 %v2415, %v2353
        %v2417 = vadd.f32 %v2416, %v2354
        %v2418 = vadd.f32 %v2417, %v2355
        %v2419 = vadd.f32 %v2418, %v2356
        %v2420 = vadd.f32 %v2419, %v2357
        %v2421 = vadd.f32 %v2420, %v2358
        %v2422 = vadd.f32 %v2421, %v2359
        %v2423 = vadd.f32 %v2422, %v2360
        %v2424 = vadd.f32 %v2423, %v2361
        %v2425 = vadd.f32 %v2424, %v2362
        %v2426 = vadd.f32 %v2425, %v2363
        %v2427 = vadd.f32 %v2426, %v2364
        %v2428 = vadd.f32 %v2427, %v2365
        %v2429 = vadd.f32 %v2428, %v2366
        %2430 = vadd.xlane.f32.xlu0 %v2429
        %v2431 = vpop.xlane.xlu0 %2430
        %v2432 = vrot.slane %v2431, 4
        %v2433 = vadd.f32 %v2431, %v2432
        %v2434 = vrot.slane %v2433, 2
        %v2435 = vadd.f32 %v2433, %v2434
        %v2436 = vrot.slane %v2435, 1
        %v2437 = vadd.f32 %v2435, %v2436
        %s2438 = vtos %v2437
        %v2439 = vstv %s2438
        %v2440 = vadd.f32 %v2439, 0.001
        %v2441 = vrcp.pop %v2440
        %v2442 = vmul.f32 %v2303, %v2441
        %v2443 = vmul.f32 %v2304, %v2441
        %v2444 = vmul.f32 %v2305, %v2441
        %v2445 = vmul.f32 %v2306, %v2441
        %v2446 = vmul.f32 %v2307, %v2441
        %v2447 = vmul.f32 %v2308, %v2441
        %v2448 = vmul.f32 %v2309, %v2441
        %v2449 = vmul.f32 %v2310, %v2441
        %v2450 = vmul.f32 %v2311, %v2441
        %v2451 = vmul.f32 %v2312, %v2441
        %v2452 = vmul.f32 %v2313, %v2441
        %v2453 = vmul.f32 %v2314, %v2441
        %v2454 = vmul.f32 %v2315, %v2441
        %v2455 = vmul.f32 %v2316, %v2441
        %v2456 = vmul.f32 %v2317, %v2441
        %v2457 = vmul.f32 %v2318, %v2441
        %v2458 = vmul.f32 %v2319, %v2441
        %v2459 = vmul.f32 %v2320, %v2441
        %v2460 = vmul.f32 %v2321, %v2441
        %v2461 = vmul.f32 %v2322, %v2441
        %v2462 = vmul.f32 %v2323, %v2441
        %v2463 = vmul.f32 %v2324, %v2441
        %v2464 = vmul.f32 %v2325, %v2441
        %v2465 = vmul.f32 %v2326, %v2441
        %v2466 = vmul.f32 %v2327, %v2441
        %v2467 = vmul.f32 %v2328, %v2441
        %v2468 = vmul.f32 %v2329, %v2441
        %v2469 = vmul.f32 %v2330, %v2441
        %v2470 = vmul.f32 %v2331, %v2441
        %v2471 = vmul.f32 %v2332, %v2441
        %v2472 = vmul.f32 %v2333, %v2441
        %v2473 = vmul.f32 %v2334, %v2441
        %v2474 = vmul.f32 %v2335, %v2441
        %v2475 = vmul.f32 %v2336, %v2441
        %v2476 = vmul.f32 %v2337, %v2441
        %v2477 = vmul.f32 %v2338, %v2441
        %v2478 = vmul.f32 %v2339, %v2441
        %v2479 = vmul.f32 %v2340, %v2441
        %v2480 = vmul.f32 %v2341, %v2441
        %v2481 = vmul.f32 %v2342, %v2441
        %v2482 = vmul.f32 %v2343, %v2441
        %v2483 = vmul.f32 %v2344, %v2441
        %v2484 = vmul.f32 %v2345, %v2441
        %v2485 = vmul.f32 %v2346, %v2441
        %v2486 = vmul.f32 %v2347, %v2441
        %v2487 = vmul.f32 %v2348, %v2441
        %v2488 = vmul.f32 %v2349, %v2441
        %v2489 = vmul.f32 %v2350, %v2441
        %v2490 = vmul.f32 %v2351, %v2441
        %v2491 = vmul.f32 %v2352, %v2441
        %v2492 = vmul.f32 %v2353, %v2441
        %v2493 = vmul.f32 %v2354, %v2441
        %v2494 = vmul.f32 %v2355, %v2441
        %v2495 = vmul.f32 %v2356, %v2441
        %v2496 = vmul.f32 %v2357, %v2441
        %v2497 = vmul.f32 %v2358, %v2441
        %v2498 = vmul.f32 %v2359, %v2441
        %v2499 = vmul.f32 %v2360, %v2441
        %v2500 = vmul.f32 %v2361, %v2441
        %v2501 = vmul.f32 %v2362, %v2441
        %v2502 = vmul.f32 %v2363, %v2441
        %v2503 = vmul.f32 %v2364, %v2441
        %v2504 = vmul.f32 %v2365, %v2441
        %v2505 = vmul.f32 %v2366, %v2441
        %v2506 = vadd.f32 %v2100, 0.001
        %v2507 = vadd.f32 %v2101, 0.001
        %v2508 = vadd.f32 %v2102, 0.001
        %v2509 = vadd.f32 %v2103, 0.001
        %v2510 = vadd.f32 %v2104, 0.001
        %v2511 = vadd.f32 %v2105, 0.001
        %v2512 = vadd.f32 %v2106, 0.001
        %v2513 = vadd.f32 %v2107, 0.001
        %v2514 = vadd.f32 %v2108, 0.001
        %v2515 = vadd.f32 %v2109, 0.001
        %v2516 = vadd.f32 %v2110, 0.001
        %v2517 = vadd.f32 %v2111, 0.001
        %v2518 = vadd.f32 %v2112, 0.001
        %v2519 = vadd.f32 %v2113, 0.001
        %v2520 = vadd.f32 %v2114, 0.001
        %v2521 = vadd.f32 %v2115, 0.001
        %v2522 = vadd.f32 %v2116, 0.001
        %v2523 = vadd.f32 %v2117, 0.001
        %v2524 = vadd.f32 %v2118, 0.001
        %v2525 = vadd.f32 %v2119, 0.001
        %v2526 = vadd.f32 %v2120, 0.001
        %v2527 = vadd.f32 %v2121, 0.001
        %v2528 = vadd.f32 %v2122, 0.001
        %v2529 = vadd.f32 %v2123, 0.001
        %v2530 = vadd.f32 %v2124, 0.001
        %v2531 = vadd.f32 %v2125, 0.001
        %v2532 = vadd.f32 %v2126, 0.001
        %v2533 = vadd.f32 %v2127, 0.001
        %v2534 = vadd.f32 %v2128, 0.001
        %v2535 = vadd.f32 %v2129, 0.001
        %v2536 = vadd.f32 %v2130, 0.001
        %v2537 = vadd.f32 %v2131, 0.001
        %v2538 = vlog2.pop %v2506
        %v2539 = vmul.f32 %v2538, 0.6931472
        %v2540 = vlog2.pop %v2507
        %v2541 = vmul.f32 %v2540, 0.6931472
        %v2542 = vlog2.pop %v2508
        %v2543 = vmul.f32 %v2542, 0.6931472
        %v2544 = vlog2.pop %v2509
        %v2545 = vmul.f32 %v2544, 0.6931472
        %v2546 = vlog2.pop %v2510
        %v2547 = vmul.f32 %v2546, 0.6931472
        %v2548 = vlog2.pop %v2511
        %v2549 = vmul.f32 %v2548, 0.6931472
        %v2550 = vlog2.pop %v2512
        %v2551 = vmul.f32 %v2550, 0.6931472
        %v2552 = vlog2.pop %v2513
        %v2553 = vmul.f32 %v2552, 0.6931472
        %v2554 = vlog2.pop %v2514
        %v2555 = vmul.f32 %v2554, 0.6931472
        %v2556 = vlog2.pop %v2515
        %v2557 = vmul.f32 %v2556, 0.6931472
        %v2558 = vlog2.pop %v2516
        %v2559 = vmul.f32 %v2558, 0.6931472
        %v2560 = vlog2.pop %v2517
        %v2561 = vmul.f32 %v2560, 0.6931472
        %v2562 = vlog2.pop %v2518
        %v2563 = vmul.f32 %v2562, 0.6931472
        %v2564 = vlog2.pop %v2519
        %v2565 = vmul.f32 %v2564, 0.6931472
        %v2566 = vlog2.pop %v2520
        %v2567 = vmul.f32 %v2566, 0.6931472
        %v2568 = vlog2.pop %v2521
        %v2569 = vmul.f32 %v2568, 0.6931472
        %v2570 = vlog2.pop %v2522
        %v2571 = vmul.f32 %v2570, 0.6931472
        %v2572 = vlog2.pop %v2523
        %v2573 = vmul.f32 %v2572, 0.6931472
        %v2574 = vlog2.pop %v2524
        %v2575 = vmul.f32 %v2574, 0.6931472
        %v2576 = vlog2.pop %v2525
        %v2577 = vmul.f32 %v2576, 0.6931472
        %v2578 = vlog2.pop %v2526
        %v2579 = vmul.f32 %v2578, 0.6931472
        %v2580 = vlog2.pop %v2527
        %v2581 = vmul.f32 %v2580, 0.6931472
        %v2582 = vlog2.pop %v2528
        %v2583 = vmul.f32 %v2582, 0.6931472
        %v2584 = vlog2.pop %v2529
        %v2585 = vmul.f32 %v2584, 0.6931472
        %v2586 = vlog2.pop %v2530
        %v2587 = vmul.f32 %v2586, 0.6931472
        %v2588 = vlog2.pop %v2531
        %v2589 = vmul.f32 %v2588, 0.6931472
        %v2590 = vlog2.pop %v2532
        %v2591 = vmul.f32 %v2590, 0.6931472
        %v2592 = vlog2.pop %v2533
        %v2593 = vmul.f32 %v2592, 0.6931472
        %v2594 = vlog2.pop %v2534
        %v2595 = vmul.f32 %v2594, 0.6931472
        %v2596 = vlog2.pop %v2535
        %v2597 = vmul.f32 %v2596, 0.6931472
        %v2598 = vlog2.pop %v2536
        %v2599 = vmul.f32 %v2598, 0.6931472
        %v2600 = vlog2.pop %v2537
        %v2601 = vmul.f32 %v2600, 0.6931472
        %v2602 = vrcp.pop 0.6931472
        %v2603 = vmul.f32 %v2539, %v2602
        %v2604 = vmul.f32 %v2541, %v2602
        %v2605 = vmul.f32 %v2543, %v2602
        %v2606 = vmul.f32 %v2545, %v2602
        %v2607 = vmul.f32 %v2547, %v2602
        %v2608 = vmul.f32 %v2549, %v2602
        %v2609 = vmul.f32 %v2551, %v2602
        %v2610 = vmul.f32 %v2553, %v2602
        %v2611 = vmul.f32 %v2555, %v2602
        %v2612 = vmul.f32 %v2557, %v2602
        %v2613 = vmul.f32 %v2559, %v2602
        %v2614 = vmul.f32 %v2561, %v2602
        %v2615 = vmul.f32 %v2563, %v2602
        %v2616 = vmul.f32 %v2565, %v2602
        %v2617 = vmul.f32 %v2567, %v2602
        %v2618 = vmul.f32 %v2569, %v2602
        %v2619 = vmul.f32 %v2571, %v2602
        %v2620 = vmul.f32 %v2573, %v2602
        %v2621 = vmul.f32 %v2575, %v2602
        %v2622 = vmul.f32 %v2577, %v2602
        %v2623 = vmul.f32 %v2579, %v2602
        %v2624 = vmul.f32 %v2581, %v2602
        %v2625 = vmul.f32 %v2583, %v2602
        %v2626 = vmul.f32 %v2585, %v2602
        %v2627 = vmul.f32 %v2587, %v2602
        %v2628 = vmul.f32 %v2589, %v2602
        %v2629 = vmul.f32 %v2591, %v2602
        %v2630 = vmul.f32 %v2593, %v2602
        %v2631 = vmul.f32 %v2595, %v2602
        %v2632 = vmul.f32 %v2597, %v2602
        %v2633 = vmul.f32 %v2599, %v2602
        %v2634 = vmul.f32 %v2601, %v2602
        %v2635 = vmul.f32 %v2100, %v2603
        %v2636 = vmul.f32 %v2101, %v2604
        %v2637 = vmul.f32 %v2102, %v2605
        %v2638 = vmul.f32 %v2103, %v2606
        %v2639 = vmul.f32 %v2104, %v2607
        %v2640 = vmul.f32 %v2105, %v2608
        %v2641 = vmul.f32 %v2106, %v2609
        %v2642 = vmul.f32 %v2107, %v2610
        %v2643 = vmul.f32 %v2108, %v2611
        %v2644 = vmul.f32 %v2109, %v2612
        %v2645 = vmul.f32 %v2110, %v2613
        %v2646 = vmul.f32 %v2111, %v2614
        %v2647 = vmul.f32 %v2112, %v2615
        %v2648 = vmul.f32 %v2113, %v2616
        %v2649 = vmul.f32 %v2114, %v2617
        %v2650 = vmul.f32 %v2115, %v2618
        %v2651 = vmul.f32 %v2116, %v2619
        %v2652 = vmul.f32 %v2117, %v2620
        %v2653 = vmul.f32 %v2118, %v2621
        %v2654 = vmul.f32 %v2119, %v2622
        %v2655 = vmul.f32 %v2120, %v2623
        %v2656 = vmul.f32 %v2121, %v2624
        %v2657 = vmul.f32 %v2122, %v2625
        %v2658 = vmul.f32 %v2123, %v2626
        %v2659 = vmul.f32 %v2124, %v2627
        %v2660 = vmul.f32 %v2125, %v2628
        %v2661 = vmul.f32 %v2126, %v2629
        %v2662 = vmul.f32 %v2127, %v2630
        %v2663 = vmul.f32 %v2128, %v2631
        %v2664 = vmul.f32 %v2129, %v2632
        %v2665 = vmul.f32 %v2130, %v2633
        %v2666 = vmul.f32 %v2131, %v2634
        %v2667 = vsel %vm2024, %v2635, 0.0
        %v2668 = vsel %vm2024, %v2636, 0.0
        %v2669 = vadd.f32 %v2667, %v2668
        %v2670 = vsel %vm2024, %v2637, 0.0
        %v2671 = vadd.f32 %v2669, %v2670
        %v2672 = vsel %vm2024, %v2638, 0.0
        %v2673 = vadd.f32 %v2671, %v2672
        %v2674 = vsel %vm2024, %v2639, 0.0
        %v2675 = vadd.f32 %v2673, %v2674
        %v2676 = vsel %vm2024, %v2640, 0.0
        %v2677 = vadd.f32 %v2675, %v2676
        %v2678 = vsel %vm2024, %v2641, 0.0
        %v2679 = vadd.f32 %v2677, %v2678
        %v2680 = vsel %vm2024, %v2642, 0.0
        %v2681 = vadd.f32 %v2679, %v2680
        %v2682 = vsel %vm2024, %v2643, 0.0
        %v2683 = vadd.f32 %v2681, %v2682
        %v2684 = vsel %vm2024, %v2644, 0.0
        %v2685 = vadd.f32 %v2683, %v2684
        %v2686 = vsel %vm2024, %v2645, 0.0
        %v2687 = vadd.f32 %v2685, %v2686
        %v2688 = vsel %vm2024, %v2646, 0.0
        %v2689 = vadd.f32 %v2687, %v2688
        %v2690 = vsel %vm2024, %v2647, 0.0
        %v2691 = vadd.f32 %v2689, %v2690
        %v2692 = vsel %vm2024, %v2648, 0.0
        %v2693 = vadd.f32 %v2691, %v2692
        %v2694 = vsel %vm2024, %v2649, 0.0
        %v2695 = vadd.f32 %v2693, %v2694
        %v2696 = vsel %vm2024, %v2650, 0.0
        %v2697 = vadd.f32 %v2695, %v2696
        %v2698 = vsel %vm2024, %v2651, 0.0
        %v2699 = vadd.f32 %v2697, %v2698
        %v2700 = vsel %vm2024, %v2652, 0.0
        %v2701 = vadd.f32 %v2699, %v2700
        %v2702 = vsel %vm2024, %v2653, 0.0
        %v2703 = vadd.f32 %v2701, %v2702
        %v2704 = vsel %vm2024, %v2654, 0.0
        %v2705 = vadd.f32 %v2703, %v2704
        %v2706 = vsel %vm2024, %v2655, 0.0
        %v2707 = vadd.f32 %v2705, %v2706
        %v2708 = vsel %vm2024, %v2656, 0.0
        %v2709 = vadd.f32 %v2707, %v2708
        %v2710 = vsel %vm2024, %v2657, 0.0
        %v2711 = vadd.f32 %v2709, %v2710
        %v2712 = vsel %vm2024, %v2658, 0.0
        %v2713 = vadd.f32 %v2711, %v2712
        %v2714 = vsel %vm2024, %v2659, 0.0
        %v2715 = vadd.f32 %v2713, %v2714
        %v2716 = vsel %vm2024, %v2660, 0.0
        %v2717 = vadd.f32 %v2715, %v2716
        %v2718 = vsel %vm2024, %v2661, 0.0
        %v2719 = vadd.f32 %v2717, %v2718
        %v2720 = vsel %vm2024, %v2662, 0.0
        %v2721 = vadd.f32 %v2719, %v2720
        %v2722 = vsel %vm2024, %v2663, 0.0
        %v2723 = vadd.f32 %v2721, %v2722
        %v2724 = vsel %vm2024, %v2664, 0.0
        %v2725 = vadd.f32 %v2723, %v2724
        %v2726 = vsel %vm2024, %v2665, 0.0
        %v2727 = vadd.f32 %v2725, %v2726
        %v2728 = vsel %vm2024, %v2666, 0.0
        %v2729 = vadd.f32 %v2727, %v2728
        %2730 = vadd.xlane.f32.xlu0 %v2729
        %v2731 = vpop.xlane.xlu0 %2730
        %v2732 = vrot.slane %v2731, 4
        %v2733 = vadd.f32 %v2731, %v2732
        %v2734 = vrot.slane %v2733, 2
        %v2735 = vadd.f32 %v2733, %v2734
        %v2736 = vrot.slane %v2735, 1
        %v2737 = vadd.f32 %v2735, %v2736
        %s2738 = vtos %v2737
        %s2739 = ssub.f32 0.0, %s2738
        %v2740 = vadd.f32 %v2271, 0.001
        %v2741 = vadd.f32 %v2272, 0.001
        %v2742 = vadd.f32 %v2273, 0.001
        %v2743 = vadd.f32 %v2274, 0.001
        %v2744 = vadd.f32 %v2275, 0.001
        %v2745 = vadd.f32 %v2276, 0.001
        %v2746 = vadd.f32 %v2277, 0.001
        %v2747 = vadd.f32 %v2278, 0.001
        %v2748 = vadd.f32 %v2279, 0.001
        %v2749 = vadd.f32 %v2280, 0.001
        %v2750 = vadd.f32 %v2281, 0.001
        %v2751 = vadd.f32 %v2282, 0.001
        %v2752 = vadd.f32 %v2283, 0.001
        %v2753 = vadd.f32 %v2284, 0.001
        %v2754 = vadd.f32 %v2285, 0.001
        %v2755 = vadd.f32 %v2286, 0.001
        %v2756 = vadd.f32 %v2287, 0.001
        %v2757 = vadd.f32 %v2288, 0.001
        %v2758 = vadd.f32 %v2289, 0.001
        %v2759 = vadd.f32 %v2290, 0.001
        %v2760 = vadd.f32 %v2291, 0.001
        %v2761 = vadd.f32 %v2292, 0.001
        %v2762 = vadd.f32 %v2293, 0.001
        %v2763 = vadd.f32 %v2294, 0.001
        %v2764 = vadd.f32 %v2295, 0.001
        %v2765 = vadd.f32 %v2296, 0.001
        %v2766 = vadd.f32 %v2297, 0.001
        %v2767 = vadd.f32 %v2298, 0.001
        %v2768 = vadd.f32 %v2299, 0.001
        %v2769 = vadd.f32 %v2300, 0.001
        %v2770 = vadd.f32 %v2301, 0.001
        %v2771 = vadd.f32 %v2302, 0.001
        %v2772 = vlog2.pop %v2740
        %v2773 = vmul.f32 %v2772, 0.6931472
        %v2774 = vlog2.pop %v2741
        %v2775 = vmul.f32 %v2774, 0.6931472
        %v2776 = vlog2.pop %v2742
        %v2777 = vmul.f32 %v2776, 0.6931472
        %v2778 = vlog2.pop %v2743
        %v2779 = vmul.f32 %v2778, 0.6931472
        %v2780 = vlog2.pop %v2744
        %v2781 = vmul.f32 %v2780, 0.6931472
        %v2782 = vlog2.pop %v2745
        %v2783 = vmul.f32 %v2782, 0.6931472
        %v2784 = vlog2.pop %v2746
        %v2785 = vmul.f32 %v2784, 0.6931472
        %v2786 = vlog2.pop %v2747
        %v2787 = vmul.f32 %v2786, 0.6931472
        %v2788 = vlog2.pop %v2748
        %v2789 = vmul.f32 %v2788, 0.6931472
        %v2790 = vlog2.pop %v2749
        %v2791 = vmul.f32 %v2790, 0.6931472
        %v2792 = vlog2.pop %v2750
        %v2793 = vmul.f32 %v2792, 0.6931472
        %v2794 = vlog2.pop %v2751
        %v2795 = vmul.f32 %v2794, 0.6931472
        %v2796 = vlog2.pop %v2752
        %v2797 = vmul.f32 %v2796, 0.6931472
        %v2798 = vlog2.pop %v2753
        %v2799 = vmul.f32 %v2798, 0.6931472
        %v2800 = vlog2.pop %v2754
        %v2801 = vmul.f32 %v2800, 0.6931472
        %v2802 = vlog2.pop %v2755
        %v2803 = vmul.f32 %v2802, 0.6931472
        %v2804 = vlog2.pop %v2756
        %v2805 = vmul.f32 %v2804, 0.6931472
        %v2806 = vlog2.pop %v2757
        %v2807 = vmul.f32 %v2806, 0.6931472
        %v2808 = vlog2.pop %v2758
        %v2809 = vmul.f32 %v2808, 0.6931472
        %v2810 = vlog2.pop %v2759
        %v2811 = vmul.f32 %v2810, 0.6931472
        %v2812 = vlog2.pop %v2760
        %v2813 = vmul.f32 %v2812, 0.6931472
        %v2814 = vlog2.pop %v2761
        %v2815 = vmul.f32 %v2814, 0.6931472
        %v2816 = vlog2.pop %v2762
        %v2817 = vmul.f32 %v2816, 0.6931472
        %v2818 = vlog2.pop %v2763
        %v2819 = vmul.f32 %v2818, 0.6931472
        %v2820 = vlog2.pop %v2764
        %v2821 = vmul.f32 %v2820, 0.6931472
        %v2822 = vlog2.pop %v2765
        %v2823 = vmul.f32 %v2822, 0.6931472
        %v2824 = vlog2.pop %v2766
        %v2825 = vmul.f32 %v2824, 0.6931472
        %v2826 = vlog2.pop %v2767
        %v2827 = vmul.f32 %v2826, 0.6931472
        %v2828 = vlog2.pop %v2768
        %v2829 = vmul.f32 %v2828, 0.6931472
        %v2830 = vlog2.pop %v2769
        %v2831 = vmul.f32 %v2830, 0.6931472
        %v2832 = vlog2.pop %v2770
        %v2833 = vmul.f32 %v2832, 0.6931472
        %v2834 = vlog2.pop %v2771
        %v2835 = vmul.f32 %v2834, 0.6931472
        %v2836 = vmul.f32 %v2773, %v2602
        %v2837 = vmul.f32 %v2775, %v2602
        %v2838 = vmul.f32 %v2777, %v2602
        %v2839 = vmul.f32 %v2779, %v2602
        %v2840 = vmul.f32 %v2781, %v2602
        %v2841 = vmul.f32 %v2783, %v2602
        %v2842 = vmul.f32 %v2785, %v2602
        %v2843 = vmul.f32 %v2787, %v2602
        %v2844 = vmul.f32 %v2789, %v2602
        %v2845 = vmul.f32 %v2791, %v2602
        %v2846 = vmul.f32 %v2793, %v2602
        %v2847 = vmul.f32 %v2795, %v2602
        %v2848 = vmul.f32 %v2797, %v2602
        %v2849 = vmul.f32 %v2799, %v2602
        %v2850 = vmul.f32 %v2801, %v2602
        %v2851 = vmul.f32 %v2803, %v2602
        %v2852 = vmul.f32 %v2805, %v2602
        %v2853 = vmul.f32 %v2807, %v2602
        %v2854 = vmul.f32 %v2809, %v2602
        %v2855 = vmul.f32 %v2811, %v2602
        %v2856 = vmul.f32 %v2813, %v2602
        %v2857 = vmul.f32 %v2815, %v2602
        %v2858 = vmul.f32 %v2817, %v2602
        %v2859 = vmul.f32 %v2819, %v2602
        %v2860 = vmul.f32 %v2821, %v2602
        %v2861 = vmul.f32 %v2823, %v2602
        %v2862 = vmul.f32 %v2825, %v2602
        %v2863 = vmul.f32 %v2827, %v2602
        %v2864 = vmul.f32 %v2829, %v2602
        %v2865 = vmul.f32 %v2831, %v2602
        %v2866 = vmul.f32 %v2833, %v2602
        %v2867 = vmul.f32 %v2835, %v2602
        %v2868 = vmul.f32 %v2271, %v2836
        %v2869 = vmul.f32 %v2272, %v2837
        %v2870 = vmul.f32 %v2273, %v2838
        %v2871 = vmul.f32 %v2274, %v2839
        %v2872 = vmul.f32 %v2275, %v2840
        %v2873 = vmul.f32 %v2276, %v2841
        %v2874 = vmul.f32 %v2277, %v2842
        %v2875 = vmul.f32 %v2278, %v2843
        %v2876 = vmul.f32 %v2279, %v2844
        %v2877 = vmul.f32 %v2280, %v2845
        %v2878 = vmul.f32 %v2281, %v2846
        %v2879 = vmul.f32 %v2282, %v2847
        %v2880 = vmul.f32 %v2283, %v2848
        %v2881 = vmul.f32 %v2284, %v2849
        %v2882 = vmul.f32 %v2285, %v2850
        %v2883 = vmul.f32 %v2286, %v2851
        %v2884 = vmul.f32 %v2287, %v2852
        %v2885 = vmul.f32 %v2288, %v2853
        %v2886 = vmul.f32 %v2289, %v2854
        %v2887 = vmul.f32 %v2290, %v2855
        %v2888 = vmul.f32 %v2291, %v2856
        %v2889 = vmul.f32 %v2292, %v2857
        %v2890 = vmul.f32 %v2293, %v2858
        %v2891 = vmul.f32 %v2294, %v2859
        %v2892 = vmul.f32 %v2295, %v2860
        %v2893 = vmul.f32 %v2296, %v2861
        %v2894 = vmul.f32 %v2297, %v2862
        %v2895 = vmul.f32 %v2298, %v2863
        %v2896 = vmul.f32 %v2299, %v2864
        %v2897 = vmul.f32 %v2300, %v2865
        %v2898 = vmul.f32 %v2301, %v2866
        %v2899 = vmul.f32 %v2302, %v2867
        %v2900 = vsel %vm2024, %v2868, 0.0
        %v2901 = vsel %vm2024, %v2869, 0.0
        %v2902 = vadd.f32 %v2900, %v2901
        %v2903 = vsel %vm2024, %v2870, 0.0
        %v2904 = vadd.f32 %v2902, %v2903
        %v2905 = vsel %vm2024, %v2871, 0.0
        %v2906 = vadd.f32 %v2904, %v2905
        %v2907 = vsel %vm2024, %v2872, 0.0
        %v2908 = vadd.f32 %v2906, %v2907
        %v2909 = vsel %vm2024, %v2873, 0.0
        %v2910 = vadd.f32 %v2908, %v2909
        %v2911 = vsel %vm2024, %v2874, 0.0
        %v2912 = vadd.f32 %v2910, %v2911
        %v2913 = vsel %vm2024, %v2875, 0.0
        %v2914 = vadd.f32 %v2912, %v2913
        %v2915 = vsel %vm2024, %v2876, 0.0
        %v2916 = vadd.f32 %v2914, %v2915
        %v2917 = vsel %vm2024, %v2877, 0.0
        %v2918 = vadd.f32 %v2916, %v2917
        %v2919 = vsel %vm2024, %v2878, 0.0
        %v2920 = vadd.f32 %v2918, %v2919
        %v2921 = vsel %vm2024, %v2879, 0.0
        %v2922 = vadd.f32 %v2920, %v2921
        %v2923 = vsel %vm2024, %v2880, 0.0
        %v2924 = vadd.f32 %v2922, %v2923
        %v2925 = vsel %vm2024, %v2881, 0.0
        %v2926 = vadd.f32 %v2924, %v2925
        %v2927 = vsel %vm2024, %v2882, 0.0
        %v2928 = vadd.f32 %v2926, %v2927
        %v2929 = vsel %vm2024, %v2883, 0.0
        %v2930 = vadd.f32 %v2928, %v2929
        %v2931 = vsel %vm2024, %v2884, 0.0
        %v2932 = vadd.f32 %v2930, %v2931
        %v2933 = vsel %vm2024, %v2885, 0.0
        %v2934 = vadd.f32 %v2932, %v2933
        %v2935 = vsel %vm2024, %v2886, 0.0
        %v2936 = vadd.f32 %v2934, %v2935
        %v2937 = vsel %vm2024, %v2887, 0.0
        %v2938 = vadd.f32 %v2936, %v2937
        %v2939 = vsel %vm2024, %v2888, 0.0
        %v2940 = vadd.f32 %v2938, %v2939
        %v2941 = vsel %vm2024, %v2889, 0.0
        %v2942 = vadd.f32 %v2940, %v2941
        %v2943 = vsel %vm2024, %v2890, 0.0
        %v2944 = vadd.f32 %v2942, %v2943
        %v2945 = vsel %vm2024, %v2891, 0.0
        %v2946 = vadd.f32 %v2944, %v2945
        %v2947 = vsel %vm2024, %v2892, 0.0
        %v2948 = vadd.f32 %v2946, %v2947
        %v2949 = vsel %vm2024, %v2893, 0.0
        %v2950 = vadd.f32 %v2948, %v2949
        %v2951 = vsel %vm2024, %v2894, 0.0
        %v2952 = vadd.f32 %v2950, %v2951
        %v2953 = vsel %vm2024, %v2895, 0.0
        %v2954 = vadd.f32 %v2952, %v2953
        %v2955 = vsel %vm2024, %v2896, 0.0
        %v2956 = vadd.f32 %v2954, %v2955
        %v2957 = vsel %vm2024, %v2897, 0.0
        %v2958 = vadd.f32 %v2956, %v2957
        %v2959 = vsel %vm2024, %v2898, 0.0
        %v2960 = vadd.f32 %v2958, %v2959
        %v2961 = vsel %vm2024, %v2899, 0.0
        %v2962 = vadd.f32 %v2960, %v2961
        %2963 = vadd.xlane.f32.xlu0 %v2962
        %v2964 = vpop.xlane.xlu0 %2963
        %v2965 = vrot.slane %v2964, 4
        %v2966 = vadd.f32 %v2964, %v2965
        %v2967 = vrot.slane %v2966, 2
        %v2968 = vadd.f32 %v2966, %v2967
        %v2969 = vrot.slane %v2968, 1
        %v2970 = vadd.f32 %v2968, %v2969
        %s2971 = vtos %v2970
        %s2972 = ssub.f32 0.0, %s2971
        %v2973 = vadd.f32 %v2442, 0.001
        %v2974 = vadd.f32 %v2443, 0.001
        %v2975 = vadd.f32 %v2444, 0.001
        %v2976 = vadd.f32 %v2445, 0.001
        %v2977 = vadd.f32 %v2446, 0.001
        %v2978 = vadd.f32 %v2447, 0.001
        %v2979 = vadd.f32 %v2448, 0.001
        %v2980 = vadd.f32 %v2449, 0.001
        %v2981 = vadd.f32 %v2450, 0.001
        %v2982 = vadd.f32 %v2451, 0.001
        %v2983 = vadd.f32 %v2452, 0.001
        %v2984 = vadd.f32 %v2453, 0.001
        %v2985 = vadd.f32 %v2454, 0.001
        %v2986 = vadd.f32 %v2455, 0.001
        %v2987 = vadd.f32 %v2456, 0.001
        %v2988 = vadd.f32 %v2457, 0.001
        %v2989 = vadd.f32 %v2458, 0.001
        %v2990 = vadd.f32 %v2459, 0.001
        %v2991 = vadd.f32 %v2460, 0.001
        %v2992 = vadd.f32 %v2461, 0.001
        %v2993 = vadd.f32 %v2462, 0.001
        %v2994 = vadd.f32 %v2463, 0.001
        %v2995 = vadd.f32 %v2464, 0.001
        %v2996 = vadd.f32 %v2465, 0.001
        %v2997 = vadd.f32 %v2466, 0.001
        %v2998 = vadd.f32 %v2467, 0.001
        %v2999 = vadd.f32 %v2468, 0.001
        %v3000 = vadd.f32 %v2469, 0.001
        %v3001 = vadd.f32 %v2470, 0.001
        %v3002 = vadd.f32 %v2471, 0.001
        %v3003 = vadd.f32 %v2472, 0.001
        %v3004 = vadd.f32 %v2473, 0.001
        %v3005 = vadd.f32 %v2474, 0.001
        %v3006 = vadd.f32 %v2475, 0.001
        %v3007 = vadd.f32 %v2476, 0.001
        %v3008 = vadd.f32 %v2477, 0.001
        %v3009 = vadd.f32 %v2478, 0.001
        %v3010 = vadd.f32 %v2479, 0.001
        %v3011 = vadd.f32 %v2480, 0.001
        %v3012 = vadd.f32 %v2481, 0.001
        %v3013 = vadd.f32 %v2482, 0.001
        %v3014 = vadd.f32 %v2483, 0.001
        %v3015 = vadd.f32 %v2484, 0.001
        %v3016 = vadd.f32 %v2485, 0.001
        %v3017 = vadd.f32 %v2486, 0.001
        %v3018 = vadd.f32 %v2487, 0.001
        %v3019 = vadd.f32 %v2488, 0.001
        %v3020 = vadd.f32 %v2489, 0.001
        %v3021 = vadd.f32 %v2490, 0.001
        %v3022 = vadd.f32 %v2491, 0.001
        %v3023 = vadd.f32 %v2492, 0.001
        %v3024 = vadd.f32 %v2493, 0.001
        %v3025 = vadd.f32 %v2494, 0.001
        %v3026 = vadd.f32 %v2495, 0.001
        %v3027 = vadd.f32 %v2496, 0.001
        %v3028 = vadd.f32 %v2497, 0.001
        %v3029 = vadd.f32 %v2498, 0.001
        %v3030 = vadd.f32 %v2499, 0.001
        %v3031 = vadd.f32 %v2500, 0.001
        %v3032 = vadd.f32 %v2501, 0.001
        %v3033 = vadd.f32 %v2502, 0.001
        %v3034 = vadd.f32 %v2503, 0.001
        %v3035 = vadd.f32 %v2504, 0.001
        %v3036 = vadd.f32 %v2505, 0.001
        %v3037 = vlog2.pop %v2973
        %v3038 = vmul.f32 %v3037, 0.6931472
        %v3039 = vlog2.pop %v2974
        %v3040 = vmul.f32 %v3039, 0.6931472
        %v3041 = vlog2.pop %v2975
        %v3042 = vmul.f32 %v3041, 0.6931472
        %v3043 = vlog2.pop %v2976
        %v3044 = vmul.f32 %v3043, 0.6931472
        %v3045 = vlog2.pop %v2977
        %v3046 = vmul.f32 %v3045, 0.6931472
        %v3047 = vlog2.pop %v2978
        %v3048 = vmul.f32 %v3047, 0.6931472
        %v3049 = vlog2.pop %v2979
        %v3050 = vmul.f32 %v3049, 0.6931472
        %v3051 = vlog2.pop %v2980
        %v3052 = vmul.f32 %v3051, 0.6931472
        %v3053 = vlog2.pop %v2981
        %v3054 = vmul.f32 %v3053, 0.6931472
        %v3055 = vlog2.pop %v2982
        %v3056 = vmul.f32 %v3055, 0.6931472
        %v3057 = vlog2.pop %v2983
        %v3058 = vmul.f32 %v3057, 0.6931472
        %v3059 = vlog2.pop %v2984
        %v3060 = vmul.f32 %v3059, 0.6931472
        %v3061 = vlog2.pop %v2985
        %v3062 = vmul.f32 %v3061, 0.6931472
        %v3063 = vlog2.pop %v2986
        %v3064 = vmul.f32 %v3063, 0.6931472
        %v3065 = vlog2.pop %v2987
        %v3066 = vmul.f32 %v3065, 0.6931472
        %v3067 = vlog2.pop %v2988
        %v3068 = vmul.f32 %v3067, 0.6931472
        %v3069 = vlog2.pop %v2989
        %v3070 = vmul.f32 %v3069, 0.6931472
        %v3071 = vlog2.pop %v2990
        %v3072 = vmul.f32 %v3071, 0.6931472
        %v3073 = vlog2.pop %v2991
        %v3074 = vmul.f32 %v3073, 0.6931472
        %v3075 = vlog2.pop %v2992
        %v3076 = vmul.f32 %v3075, 0.6931472
        %v3077 = vlog2.pop %v2993
        %v3078 = vmul.f32 %v3077, 0.6931472
        %v3079 = vlog2.pop %v2994
        %v3080 = vmul.f32 %v3079, 0.6931472
        %v3081 = vlog2.pop %v2995
        %v3082 = vmul.f32 %v3081, 0.6931472
        %v3083 = vlog2.pop %v2996
        %v3084 = vmul.f32 %v3083, 0.6931472
        %v3085 = vlog2.pop %v2997
        %v3086 = vmul.f32 %v3085, 0.6931472
        %v3087 = vlog2.pop %v2998
        %v3088 = vmul.f32 %v3087, 0.6931472
        %v3089 = vlog2.pop %v2999
        %v3090 = vmul.f32 %v3089, 0.6931472
        %v3091 = vlog2.pop %v3000
        %v3092 = vmul.f32 %v3091, 0.6931472
        %v3093 = vlog2.pop %v3001
        %v3094 = vmul.f32 %v3093, 0.6931472
        %v3095 = vlog2.pop %v3002
        %v3096 = vmul.f32 %v3095, 0.6931472
        %v3097 = vlog2.pop %v3003
        %v3098 = vmul.f32 %v3097, 0.6931472
        %v3099 = vlog2.pop %v3004
        %v3100 = vmul.f32 %v3099, 0.6931472
        %v3101 = vlog2.pop %v3005
        %v3102 = vmul.f32 %v3101, 0.6931472
        %v3103 = vlog2.pop %v3006
        %v3104 = vmul.f32 %v3103, 0.6931472
        %v3105 = vlog2.pop %v3007
        %v3106 = vmul.f32 %v3105, 0.6931472
        %v3107 = vlog2.pop %v3008
        %v3108 = vmul.f32 %v3107, 0.6931472
        %v3109 = vlog2.pop %v3009
        %v3110 = vmul.f32 %v3109, 0.6931472
        %v3111 = vlog2.pop %v3010
        %v3112 = vmul.f32 %v3111, 0.6931472
        %v3113 = vlog2.pop %v3011
        %v3114 = vmul.f32 %v3113, 0.6931472
        %v3115 = vlog2.pop %v3012
        %v3116 = vmul.f32 %v3115, 0.6931472
        %v3117 = vlog2.pop %v3013
        %v3118 = vmul.f32 %v3117, 0.6931472
        %v3119 = vlog2.pop %v3014
        %v3120 = vmul.f32 %v3119, 0.6931472
        %v3121 = vlog2.pop %v3015
        %v3122 = vmul.f32 %v3121, 0.6931472
        %v3123 = vlog2.pop %v3016
        %v3124 = vmul.f32 %v3123, 0.6931472
        %v3125 = vlog2.pop %v3017
        %v3126 = vmul.f32 %v3125, 0.6931472
        %v3127 = vlog2.pop %v3018
        %v3128 = vmul.f32 %v3127, 0.6931472
        %v3129 = vlog2.pop %v3019
        %v3130 = vmul.f32 %v3129, 0.6931472
        %v3131 = vlog2.pop %v3020
        %v3132 = vmul.f32 %v3131, 0.6931472
        %v3133 = vlog2.pop %v3021
        %v3134 = vmul.f32 %v3133, 0.6931472
        %v3135 = vlog2.pop %v3022
        %v3136 = vmul.f32 %v3135, 0.6931472
        %v3137 = vlog2.pop %v3023
        %v3138 = vmul.f32 %v3137, 0.6931472
        %v3139 = vlog2.pop %v3024
        %v3140 = vmul.f32 %v3139, 0.6931472
        %v3141 = vlog2.pop %v3025
        %v3142 = vmul.f32 %v3141, 0.6931472
        %v3143 = vlog2.pop %v3026
        %v3144 = vmul.f32 %v3143, 0.6931472
        %v3145 = vlog2.pop %v3027
        %v3146 = vmul.f32 %v3145, 0.6931472
        %v3147 = vlog2.pop %v3028
        %v3148 = vmul.f32 %v3147, 0.6931472
        %v3149 = vlog2.pop %v3029
        %v3150 = vmul.f32 %v3149, 0.6931472
        %v3151 = vlog2.pop %v3030
        %v3152 = vmul.f32 %v3151, 0.6931472
        %v3153 = vlog2.pop %v3031
        %v3154 = vmul.f32 %v3153, 0.6931472
        %v3155 = vlog2.pop %v3032
        %v3156 = vmul.f32 %v3155, 0.6931472
        %v3157 = vlog2.pop %v3033
        %v3158 = vmul.f32 %v3157, 0.6931472
        %v3159 = vlog2.pop %v3034
        %v3160 = vmul.f32 %v3159, 0.6931472
        %v3161 = vlog2.pop %v3035
        %v3162 = vmul.f32 %v3161, 0.6931472
        %v3163 = vlog2.pop %v3036
        %v3164 = vmul.f32 %v3163, 0.6931472
        %v3165 = vmul.f32 %v3038, %v2602
        %v3166 = vmul.f32 %v3040, %v2602
        %v3167 = vmul.f32 %v3042, %v2602
        %v3168 = vmul.f32 %v3044, %v2602
        %v3169 = vmul.f32 %v3046, %v2602
        %v3170 = vmul.f32 %v3048, %v2602
        %v3171 = vmul.f32 %v3050, %v2602
        %v3172 = vmul.f32 %v3052, %v2602
        %v3173 = vmul.f32 %v3054, %v2602
        %v3174 = vmul.f32 %v3056, %v2602
        %v3175 = vmul.f32 %v3058, %v2602
        %v3176 = vmul.f32 %v3060, %v2602
        %v3177 = vmul.f32 %v3062, %v2602
        %v3178 = vmul.f32 %v3064, %v2602
        %v3179 = vmul.f32 %v3066, %v2602
        %v3180 = vmul.f32 %v3068, %v2602
        %v3181 = vmul.f32 %v3070, %v2602
        %v3182 = vmul.f32 %v3072, %v2602
        %v3183 = vmul.f32 %v3074, %v2602
        %v3184 = vmul.f32 %v3076, %v2602
        %v3185 = vmul.f32 %v3078, %v2602
        %v3186 = vmul.f32 %v3080, %v2602
        %v3187 = vmul.f32 %v3082, %v2602
        %v3188 = vmul.f32 %v3084, %v2602
        %v3189 = vmul.f32 %v3086, %v2602
        %v3190 = vmul.f32 %v3088, %v2602
        %v3191 = vmul.f32 %v3090, %v2602
        %v3192 = vmul.f32 %v3092, %v2602
        %v3193 = vmul.f32 %v3094, %v2602
        %v3194 = vmul.f32 %v3096, %v2602
        %v3195 = vmul.f32 %v3098, %v2602
        %v3196 = vmul.f32 %v3100, %v2602
        %v3197 = vmul.f32 %v3102, %v2602
        %v3198 = vmul.f32 %v3104, %v2602
        %v3199 = vmul.f32 %v3106, %v2602
        %v3200 = vmul.f32 %v3108, %v2602
        %v3201 = vmul.f32 %v3110, %v2602
        %v3202 = vmul.f32 %v3112, %v2602
        %v3203 = vmul.f32 %v3114, %v2602
        %v3204 = vmul.f32 %v3116, %v2602
        %v3205 = vmul.f32 %v3118, %v2602
        %v3206 = vmul.f32 %v3120, %v2602
        %v3207 = vmul.f32 %v3122, %v2602
        %v3208 = vmul.f32 %v3124, %v2602
        %v3209 = vmul.f32 %v3126, %v2602
        %v3210 = vmul.f32 %v3128, %v2602
        %v3211 = vmul.f32 %v3130, %v2602
        %v3212 = vmul.f32 %v3132, %v2602
        %v3213 = vmul.f32 %v3134, %v2602
        %v3214 = vmul.f32 %v3136, %v2602
        %v3215 = vmul.f32 %v3138, %v2602
        %v3216 = vmul.f32 %v3140, %v2602
        %v3217 = vmul.f32 %v3142, %v2602
        %v3218 = vmul.f32 %v3144, %v2602
        %v3219 = vmul.f32 %v3146, %v2602
        %v3220 = vmul.f32 %v3148, %v2602
        %v3221 = vmul.f32 %v3150, %v2602
        %v3222 = vmul.f32 %v3152, %v2602
        %v3223 = vmul.f32 %v3154, %v2602
        %v3224 = vmul.f32 %v3156, %v2602
        %v3225 = vmul.f32 %v3158, %v2602
        %v3226 = vmul.f32 %v3160, %v2602
        %v3227 = vmul.f32 %v3162, %v2602
        %v3228 = vmul.f32 %v3164, %v2602
        %v3229 = vmul.f32 %v2442, %v3165
        %v3230 = vmul.f32 %v2443, %v3166
        %v3231 = vmul.f32 %v2444, %v3167
        %v3232 = vmul.f32 %v2445, %v3168
        %v3233 = vmul.f32 %v2446, %v3169
        %v3234 = vmul.f32 %v2447, %v3170
        %v3235 = vmul.f32 %v2448, %v3171
        %v3236 = vmul.f32 %v2449, %v3172
        %v3237 = vmul.f32 %v2450, %v3173
        %v3238 = vmul.f32 %v2451, %v3174
        %v3239 = vmul.f32 %v2452, %v3175
        %v3240 = vmul.f32 %v2453, %v3176
        %v3241 = vmul.f32 %v2454, %v3177
        %v3242 = vmul.f32 %v2455, %v3178
        %v3243 = vmul.f32 %v2456, %v3179
        %v3244 = vmul.f32 %v2457, %v3180
        %v3245 = vmul.f32 %v2458, %v3181
        %v3246 = vmul.f32 %v2459, %v3182
        %v3247 = vmul.f32 %v2460, %v3183
        %v3248 = vmul.f32 %v2461, %v3184
        %v3249 = vmul.f32 %v2462, %v3185
        %v3250 = vmul.f32 %v2463, %v3186
        %v3251 = vmul.f32 %v2464, %v3187
        %v3252 = vmul.f32 %v2465, %v3188
        %v3253 = vmul.f32 %v2466, %v3189
        %v3254 = vmul.f32 %v2467, %v3190
        %v3255 = vmul.f32 %v2468, %v3191
        %v3256 = vmul.f32 %v2469, %v3192
        %v3257 = vmul.f32 %v2470, %v3193
        %v3258 = vmul.f32 %v2471, %v3194
        %v3259 = vmul.f32 %v2472, %v3195
        %v3260 = vmul.f32 %v2473, %v3196
        %v3261 = vmul.f32 %v2474, %v3197
        %v3262 = vmul.f32 %v2475, %v3198
        %v3263 = vmul.f32 %v2476, %v3199
        %v3264 = vmul.f32 %v2477, %v3200
        %v3265 = vmul.f32 %v2478, %v3201
        %v3266 = vmul.f32 %v2479, %v3202
        %v3267 = vmul.f32 %v2480, %v3203
        %v3268 = vmul.f32 %v2481, %v3204
        %v3269 = vmul.f32 %v2482, %v3205
        %v3270 = vmul.f32 %v2483, %v3206
        %v3271 = vmul.f32 %v2484, %v3207
        %v3272 = vmul.f32 %v2485, %v3208
        %v3273 = vmul.f32 %v2486, %v3209
        %v3274 = vmul.f32 %v2487, %v3210
        %v3275 = vmul.f32 %v2488, %v3211
        %v3276 = vmul.f32 %v2489, %v3212
        %v3277 = vmul.f32 %v2490, %v3213
        %v3278 = vmul.f32 %v2491, %v3214
        %v3279 = vmul.f32 %v2492, %v3215
        %v3280 = vmul.f32 %v2493, %v3216
        %v3281 = vmul.f32 %v2494, %v3217
        %v3282 = vmul.f32 %v2495, %v3218
        %v3283 = vmul.f32 %v2496, %v3219
        %v3284 = vmul.f32 %v2497, %v3220
        %v3285 = vmul.f32 %v2498, %v3221
        %v3286 = vmul.f32 %v2499, %v3222
        %v3287 = vmul.f32 %v2500, %v3223
        %v3288 = vmul.f32 %v2501, %v3224
        %v3289 = vmul.f32 %v2502, %v3225
        %v3290 = vmul.f32 %v2503, %v3226
        %v3291 = vmul.f32 %v2504, %v3227
        %v3292 = vmul.f32 %v2505, %v3228
        %v3293 = vadd.f32 %v3229, %v3230
        %v3294 = vadd.f32 %v3293, %v3231
        %v3295 = vadd.f32 %v3294, %v3232
        %v3296 = vadd.f32 %v3295, %v3233
        %v3297 = vadd.f32 %v3296, %v3234
        %v3298 = vadd.f32 %v3297, %v3235
        %v3299 = vadd.f32 %v3298, %v3236
        %v3300 = vadd.f32 %v3299, %v3237
        %v3301 = vadd.f32 %v3300, %v3238
        %v3302 = vadd.f32 %v3301, %v3239
        %v3303 = vadd.f32 %v3302, %v3240
        %v3304 = vadd.f32 %v3303, %v3241
        %v3305 = vadd.f32 %v3304, %v3242
        %v3306 = vadd.f32 %v3305, %v3243
        %v3307 = vadd.f32 %v3306, %v3244
        %v3308 = vadd.f32 %v3307, %v3245
        %v3309 = vadd.f32 %v3308, %v3246
        %v3310 = vadd.f32 %v3309, %v3247
        %v3311 = vadd.f32 %v3310, %v3248
        %v3312 = vadd.f32 %v3311, %v3249
        %v3313 = vadd.f32 %v3312, %v3250
        %v3314 = vadd.f32 %v3313, %v3251
        %v3315 = vadd.f32 %v3314, %v3252
        %v3316 = vadd.f32 %v3315, %v3253
        %v3317 = vadd.f32 %v3316, %v3254
        %v3318 = vadd.f32 %v3317, %v3255
        %v3319 = vadd.f32 %v3318, %v3256
        %v3320 = vadd.f32 %v3319, %v3257
        %v3321 = vadd.f32 %v3320, %v3258
        %v3322 = vadd.f32 %v3321, %v3259
        %v3323 = vadd.f32 %v3322, %v3260
        %v3324 = vadd.f32 %v3323, %v3261
        %v3325 = vadd.f32 %v3324, %v3262
        %v3326 = vadd.f32 %v3325, %v3263
        %v3327 = vadd.f32 %v3326, %v3264
        %v3328 = vadd.f32 %v3327, %v3265
        %v3329 = vadd.f32 %v3328, %v3266
        %v3330 = vadd.f32 %v3329, %v3267
        %v3331 = vadd.f32 %v3330, %v3268
        %v3332 = vadd.f32 %v3331, %v3269
        %v3333 = vadd.f32 %v3332, %v3270
        %v3334 = vadd.f32 %v3333, %v3271
        %v3335 = vadd.f32 %v3334, %v3272
        %v3336 = vadd.f32 %v3335, %v3273
        %v3337 = vadd.f32 %v3336, %v3274
        %v3338 = vadd.f32 %v3337, %v3275
        %v3339 = vadd.f32 %v3338, %v3276
        %v3340 = vadd.f32 %v3339, %v3277
        %v3341 = vadd.f32 %v3340, %v3278
        %v3342 = vadd.f32 %v3341, %v3279
        %v3343 = vadd.f32 %v3342, %v3280
        %v3344 = vadd.f32 %v3343, %v3281
        %v3345 = vadd.f32 %v3344, %v3282
        %v3346 = vadd.f32 %v3345, %v3283
        %v3347 = vadd.f32 %v3346, %v3284
        %v3348 = vadd.f32 %v3347, %v3285
        %v3349 = vadd.f32 %v3348, %v3286
        %v3350 = vadd.f32 %v3349, %v3287
        %v3351 = vadd.f32 %v3350, %v3288
        %v3352 = vadd.f32 %v3351, %v3289
        %v3353 = vadd.f32 %v3352, %v3290
        %v3354 = vadd.f32 %v3353, %v3291
        %v3355 = vadd.f32 %v3354, %v3292
        %3356 = vadd.xlane.f32.xlu0 %v3355
        %v3357 = vpop.xlane.xlu0 %3356
        %v3358 = vrot.slane %v3357, 4
        %v3359 = vadd.f32 %v3357, %v3358
        %v3360 = vrot.slane %v3359, 2
        %v3361 = vadd.f32 %v3359, %v3360
        %v3362 = vrot.slane %v3361, 1
        %v3363 = vadd.f32 %v3361, %v3362
        %s3364 = vtos %v3363
        %s3365 = ssub.f32 0.0, %s3364
        %s3366 = sadd.f32 %s2739, %s2972
        %s3367 = ssub.f32 %s3366, %s3365
        %s3368 = smul.f32 %s3367, 2.0
        %s3369 = sadd.f32 %s3368, 0.001
        %s3370 = sadd.f32 %s3366, 0.001
        %v3371 = vstv %s3370
        %v3372 = vrcp.pop %v3371
        %s3373 = vtos %v3372
        %s3374 = smul.f32 %s3369, %s3373
        %vm3375 = vcmp.eq.s32.totalorder %v365, 0
        %v3376 = vstv %s3374
        %v3377 = vsel %vm3375, %v3376, 0.0
        %vm3378 = vcmp.eq.s32.totalorder %v365, 1
        %v3379 = vld [vmem:[#allocation5] sm:$0x1]
        %v3381 = vlaneseq
        %v3382 = vshrl.u32 %v3381, 7
        %v3383 = vsub.s32 0, %v3382
        %v3384 = vrot.slane %v3379, %v3383
        %3385 = vset.pattern.permute.xlu0 0
        %3386 = vperm.xlu0 %3385, %v3384
        %v3387 = vpop.permute.xlu0 %3386
        %v3389 = vsel %vm3378, %v3387, 0.0
        %v3390 = vadd.f32 %v3377, %v3389
        %vm3391 = vcmp.eq.s32.totalorder %v365, 2
        %v3392 = vld [vmem:[#allocation6] sm:$0x1]
        %v3394 = vlaneseq
        %v3395 = vshrl.u32 %v3394, 7
        %v3396 = vsub.s32 0, %v3395
        %v3397 = vrot.slane %v3392, %v3396
        %3398 = vset.pattern.permute.xlu0 0
        %3399 = vperm.xlu0 %3398, %v3397
        %v3400 = vpop.permute.xlu0 %3399
        %v3402 = vsel %vm3391, %v3400, 0.0
        %v3403 = vadd.f32 %v3390, %v3402
        %3404 = vst [vmem:[%s226] sm:$0xff] %v3403
      $region40: #{mutual_information.1} parent=31 // pred_fallthru
        _
      %p3405 = scmp.lt.s32.totalorder %s18, 1
      %s3406 = scalar_select %p3405, %s18, 1
      %s3407 = smul.addr %s3406, 8
      %s3408 = scalar_lea.vmem %s3, %s3407
      // Predicated region
      $region41: #{mutual_information.1} parent=31 // pred_check
        %p3409 = pneg %p121
      $region42: #{mutual_information.1} parent=31 // pred_check_branch
        %3411 = sbr.rel (%p3409) target = $region44
      $region43: #{mutual_information.1} parent=31 // pred_region
        _
      $region44: #{mutual_information.1} parent=31 // pred_fallthru
        _
    $region32: #{mutual_information.1} parent=5 // pred_fallthru
      _
    %p3412 = scmp.le.s32.totalorder 2, %s9
    // Predicated region
    $region45: #{mutual_information.1} parent=5 // pred_check
      %p3413 = pneg %p3412
    $region46: #{mutual_information.1} parent=5 // pred_check_branch
      %3415 = sbr.rel (%p3413) target = $region48
    $region47: #{mutual_information.1} parent=5 // pred_region
      %s3416 = ssub.s32 %s9, 2
      // Predicated region
      $region49: #{mutual_information.1} parent=47 // pred_check
        %p3417 = pneg %p127
      $region50: #{mutual_information.1} parent=47 // pred_check_branch
        %3419 = sbr.rel (%p3417) target = $region52
      $region51: #{mutual_information.1} parent=47 // pred_region
        %p3420 = scmp.lt.s32.totalorder %s20, 1
        %s3421 = scalar_select %p3420, %s20, 1
        %s3422 = smul.addr %s3421, 8
        %s3423 = scalar_lea.vmem %s3, %s3422
      $region52: #{mutual_information.1} parent=47 // pred_fallthru
        _
    $region48: #{mutual_information.1} parent=5 // pred_fallthru
      _
  $region6: #{mutual_information.1} parent=0 // loop_footer
    %s13 = sadd.s32 1, %s9
  $region7: #{mutual_information.1} parent=0 // loop_footer_branch
    %8 = sbr.rel target = $region3
  $region8: #{mutual_information.1} parent=0 // loop_exit
    _

</llo_original>
